<compile_context>
chip_gen: v6e
topology: v6e:2x2x1
jax: 0.10.0
libtpu: 0.0.40
codegen_flags: <defaults>
</compile_context>

<pallas_src>
import numpy as np
import jax
import jax.numpy as jnp
from jax.experimental import pallas as pl
from jax.experimental.pallas import tpu as pltpu

EPS = 1e-5

# ---- fixed problem geometry (Tic Tac Toe) ----------------------------------
H = 3
W = 3
HW = H * W                  # 9 spatial positions per board
NUM_TAPS = 9                # 3x3 kernel taps
CIN = 2                     # input planes
HIDDEN = 64                 # hidden channels (also the channel padding width)
NUM_BLOCKS = 3
POLICY_CH = 32
VALUE_CH = 3
HEAD_CH_PAD = 64            # fused head-conv channels: [0:32] policy, [32:35] value
ACTIONS = 9
OUT_PAD = 128               # lane-dense head output: cols 0..8 policy, col 9 value
BATCH = 2
M = BATCH * HW              # 18 valid activation rows (NHWC flattened)
M_PAD = 32                  # padded rows (multiple of 16 for bf16 sublane packing)
KDIM = NUM_TAPS * HIDDEN    # 576: im2col contraction width per conv
FC_KCAT = NUM_TAPS * OUT_PAD  # 1152: head-FC concatenated output width

# Row offset of the input row feeding output row m for tap k = dh*3 + dw.
DELTAS = tuple((dh - 1) * W + (dw - 1) for dh in range(3) for dw in range(3))


# ----------------------------------------------------------------------------
# Fused forward kernel (single program, everything VMEM-resident)
# ----------------------------------------------------------------------------
def qnet_kernel(x_ref, mask_ref, wf_ref, shf_ref, wb_ref, shb_ref,
                whc_ref, shhc_ref, whf_ref, bhf_ref, out_ref):
    # Load the 9 tap masks once (hoisted out of the unrolled conv loops).
    masks = [mask_ref[k] for k in range(NUM_TAPS)]

    def conv(x, w, shift):
        """3x3 'same' conv == ONE MXU matmul on a lane-im2col of x.

        x: (M_PAD, HIDDEN) f32 activations.
        w: (NUM_TAPS*HIDDEN, Cout) bf16 folded weights (taps stacked along K).
        shift: (1, Cout) f32 folded bias + BN shift.
        Tap gathers are XLU sublane rolls + 0/1 VPU masks — no gather matmuls.
        Masks also zero the padding rows, so padded-row garbage never leaks
        into valid rows and stays bounded.
        """
        pieces = []
        for k in range(NUM_TAPS):
            d = DELTAS[k]
            r = x if d == 0 else pltpu.roll(x, shift=(-d) % M_PAD, axis=0)
            pieces.append(r * masks[k])
        p = jnp.concatenate(pieces, axis=-1).astype(jnp.bfloat16)   # (M_PAD, 576)
        return jnp.dot(p, w, preferred_element_type=jnp.float32) + shift

    # first block: conv -> BN(folded) -> relu
    x = jnp.maximum(conv(x_ref[...], wf_ref[...], shf_ref[...]), 0.0)

    # residual tower
    for blk in range(NUM_BLOCKS):
        res = x
        h = jnp.maximum(conv(x, wb_ref[2 * blk], shb_ref[2 * blk]), 0.0)
        x = jnp.maximum(conv(h, wb_ref[2 * blk + 1], shb_ref[2 * blk + 1]) + res, 0.0)

    # fused policy/value head conv -> BN(folded) -> relu : (M_PAD, 64)
    hf = jnp.maximum(conv(x, whc_ref[...], shhc_ref[...]), 0.0)

    # Fused head FC (Flatten(NCHW) + Linear for both heads) as ONE wide matmul:
    #   z[:, s*128:(s+1)*128] = hf @ W_s ;  raw[b] = sum_s z[b*HW + s, s-block]
    # realized with 128-lane-aligned column slices + XLU sublane rolls.
    z = jnp.dot(hf.astype(jnp.bfloat16), whf_ref[...],
                preferred_element_type=jnp.float32)                 # (M_PAD, 1152)
    raw = z[:, :OUT_PAD]
    for s in range(1, HW):
        raw = raw + pltpu.roll(z[:, s * OUT_PAD:(s + 1) * OUT_PAD],
                               shift=(-s) % M_PAD, axis=0)
    raw = raw + bhf_ref[...]        # valid results live in rows b*HW (b < BATCH)

    # Epilogue stays f32 (v5e has no bf16 VPU/EUP).  Softmax over the 9 action
    # columns, tanh on column 9.  Rows other than b*HW hold garbage that the
    # wrapper slices away; max-subtraction keeps it finite.
    col = jax.lax.broadcasted_iota(jnp.int32, raw.shape, 1)
    logits = jnp.where(col < ACTIONS, raw, -1e30)
    mx = jnp.max(logits, axis=-1, keepdims=True)
    e = jnp.exp(logits - mx)
    policy = e * pl.reciprocal(jnp.sum(e, axis=-1, keepdims=True), approx=True)
    value = jnp.tanh(raw)
    out_ref[...] = jnp.where(col == ACTIONS, value, policy)


def _vmem_spec(shape):
    return pl.BlockSpec(shape, lambda: (0,) * len(shape))


# ----------------------------------------------------------------------------
# Parameter construction (deterministic, synthetic) with BN/bias folding
# ----------------------------------------------------------------------------
def make_folded_conv(key, cin, cout):
    """Conv2d(3x3) + BatchNorm2d (eval, fresh running stats) folded together."""
    k1, k2, k3 = jax.random.split(key, 3)
    w = jax.random.normal(k1, (3, 3, cin, cout), jnp.float32) * 0.1
    b = jnp.linspace(-0.05, 0.05, cout, dtype=jnp.float32)
    gamma = 1.0 + 0.1 * jax.random.normal(k2, (cout,), jnp.float32)
    beta = 0.05 * jax.random.normal(k3, (cout,), jnp.float32)
    scale = gamma / jnp.sqrt(1.0 + EPS)             # running_mean=0, running_var=1
    w_taps = (w * scale).reshape(NUM_TAPS, cin, cout)   # fold BN scale into weight
    shift = b * scale + beta                             # folded bias + BN shift
    return w_taps, shift


def make_linear(key, fin, fout):
    w = jax.random.normal(key, (fin, fout), jnp.float32) / jnp.sqrt(fin)
    b = jnp.linspace(-0.02, 0.02, fout, dtype=jnp.float32)
    return w, b


def pack_conv(w_taps, cout_pad):
    """(9, cin, cout) folded taps -> (9*HIDDEN, cout_pad) bf16 (taps along K)."""
    _, cin, cout = w_taps.shape
    w = jnp.zeros((NUM_TAPS, HIDDEN, cout_pad), jnp.float32)
    w = w.at[:, :cin, :cout].set(w_taps)
    return w.reshape(NUM_TAPS * HIDDEN, cout_pad).astype(jnp.bfloat16)


def build_tap_masks(batch):
    """0/1 per-tap validity masks (board boundaries + padding rows zeroed)."""
    mask = np.zeros((NUM_TAPS, M_PAD, HIDDEN), np.float32)
    for b in range(batch):
        for i in range(H):
            for j in range(W):
                m = (b * H + i) * W + j
                for dh in range(3):
                    for dw in range(3):
                        if 0 <= i + dh - 1 < H and 0 <= j + dw - 1 < W:
                            mask[dh * 3 + dw, m, :] = 1.0
    return jnp.asarray(mask)


def init_qnetwork_params(key, batch, in_channels=CIN, hidden=HIDDEN,
                         num_blocks=NUM_BLOCKS, policy_ch=POLICY_CH,
                         value_ch=VALUE_CH, action_space=ACTIONS):
    keys = jax.random.split(key, 2 * num_blocks + 5)
    params = {}
    # NOTE: masks are built for this batch (rows >= batch*HW are masked off).
    params["tap_mask"] = build_tap_masks(batch)

    # first block
    w, sh = make_folded_conv(keys[0], in_channels, hidden)
    params["w_first"] = pack_conv(w, hidden)                    # (576, 64) bf16
    params["sh_first"] = sh.reshape(1, hidden)

    # residual tower (2 convs per block), stacked
    wbs, shs = [], []
    for i in range(2 * num_blocks):
        w, sh = make_folded_conv(keys[1 + i], hidden, hidden)
        wbs.append(pack_conv(w, hidden))
        shs.append(sh.reshape(1, hidden))
    params["w_blocks"] = jnp.stack(wbs)                         # (6, 576, 64) bf16
    params["sh_blocks"] = jnp.stack(shs)                        # (6, 1, 64)

    base = 1 + 2 * num_blocks
    # fused policy/value head conv: channels [0:32] policy, [32:35] value, rest 0
    wp, shp = make_folded_conv(keys[base], hidden, policy_ch)
    wv, shv = make_folded_conv(keys[base + 1], hidden, value_ch)
    params["w_hconv"] = pack_conv(jnp.concatenate([wp, wv], axis=2), HEAD_CH_PAD)
    sh_head = jnp.concatenate([shp, shv])
    params["sh_hconv"] = jnp.pad(
        sh_head, (0, HEAD_CH_PAD - sh_head.shape[0])).reshape(1, HEAD_CH_PAD)

    # Head FC: Flatten(NCHW) feature index = c*HW + s.  Re-packed so the kernel
    # can do hf @ W_cat once: W_cat[c, s*128 + o] = W_fc[c*HW + s, o].
    wp_fc, bp_fc = make_linear(keys[base + 2], policy_ch * HW, action_space)
    wv_fc, bv_fc = make_linear(keys[base + 3], value_ch * HW, 1)
    w_cat = jnp.zeros((HEAD_CH_PAD, NUM_TAPS, OUT_PAD), jnp.float32)
    w_cat = w_cat.at[:policy_ch, :, :action_space].set(
        wp_fc.reshape(policy_ch, HW, action_space))
    w_cat = w_cat.at[policy_ch:policy_ch + value_ch, :,
                     action_space:action_space + 1].set(
        wv_fc.reshape(value_ch, HW, 1))
    params["w_hfc"] = w_cat.reshape(HEAD_CH_PAD, FC_KCAT).astype(jnp.bfloat16)
    b_hfc = jnp.zeros((1, OUT_PAD), jnp.float32)
    b_hfc = b_hfc.at[0, :action_space].set(bp_fc)
    b_hfc = b_hfc.at[0, action_space].set(bv_fc[0])
    params["b_hfc"] = b_hfc
    return params


# ----------------------------------------------------------------------------
# Forward pass (single pallas_call)
# ----------------------------------------------------------------------------
@jax.jit
def qnetwork_forward(params, state_nchw):
    B, Cin, Hs, Ws = state_nchw.shape
    x = jnp.transpose(state_nchw, (0, 2, 3, 1)).reshape(B * Hs * Ws, Cin)
    x = jnp.pad(x, ((0, M_PAD - B * Hs * Ws), (0, HIDDEN - Cin))).astype(jnp.float32)

    out = pl.pallas_call(
        qnet_kernel,
        out_shape=jax.ShapeDtypeStruct((M_PAD, OUT_PAD), jnp.float32),
        in_specs=[
            _vmem_spec((M_PAD, HIDDEN)),
            _vmem_spec((NUM_TAPS, M_PAD, HIDDEN)),
            _vmem_spec((KDIM, HIDDEN)),
            _vmem_spec((1, HIDDEN)),
            _vmem_spec((2 * NUM_BLOCKS, KDIM, HIDDEN)),
            _vmem_spec((2 * NUM_BLOCKS, 1, HIDDEN)),
            _vmem_spec((KDIM, HEAD_CH_PAD)),
            _vmem_spec((1, HEAD_CH_PAD)),
            _vmem_spec((HEAD_CH_PAD, FC_KCAT)),
            _vmem_spec((1, OUT_PAD)),
        ],
        out_specs=_vmem_spec((M_PAD, OUT_PAD)),
    )(x, params["tap_mask"],
      params["w_first"], params["sh_first"],
      params["w_blocks"], params["sh_blocks"],
      params["w_hconv"], params["sh_hconv"],
      params["w_hfc"], params["b_hfc"])

    rows = out[::HW]                      # rows b*HW hold batch b's head outputs
    policy = rows[:B, :ACTIONS]
    value = rows[:B, ACTIONS:ACTIONS + 1]
    return policy, value


# ----------------------------------------------------------------------------
# Pure-JAX reference with the same bf16-operand / f32-accumulate discipline
# ----------------------------------------------------------------------------
def reference_forward(params, state_nchw):
    B, Cin, Hs, Ws = state_nchw.shape
    x = jnp.transpose(state_nchw, (0, 2, 3, 1))
    x = jnp.pad(x, ((0, 0), (0, 0), (0, 0), (0, HIDDEN - Cin))).astype(jnp.float32)

    def conv(xf, w_packed, shift):
        w_taps = w_packed.reshape(NUM_TAPS, HIDDEN, -1)         # bf16
        xb = xf.astype(jnp.bfloat16)
        xp = jnp.pad(xb, ((0, 0), (1, 1), (1, 1), (0, 0)))
        acc = jnp.zeros(xf.shape[:3] + (w_taps.shape[-1],), jnp.float32)
        for k in range(NUM_TAPS):
            dh, dw = divmod(k, 3)
            patch = xp[:, dh:dh + Hs, dw:dw + Ws, :]
            acc = acc + jnp.einsum("bhwc,co->bhwo", patch, w_taps[k],
                                   preferred_element_type=jnp.float32)
        return acc + shift.reshape(1, 1, 1, -1)

    x = jax.nn.relu(conv(x, params["w_first"], params["sh_first"]))
    for blk in range(NUM_BLOCKS):
        res = x
        h = jax.nn.relu(conv(x, params["w_blocks"][2 * blk], params["sh_blocks"][2 * blk]))
        x = jax.nn.relu(
            conv(h, params["w_blocks"][2 * blk + 1], params["sh_blocks"][2 * blk + 1]) + res)
    hf = jax.nn.relu(conv(x, params["w_hconv"], params["sh_hconv"]))
    hfb = hf.astype(jnp.bfloat16).reshape(B, HW, HEAD_CH_PAD)
    w_fc = params["w_hfc"].reshape(HEAD_CH_PAD, HW, OUT_PAD)
    raw = jnp.einsum("bsc,cso->bo", hfb, w_fc,
                     preferred_element_type=jnp.float32) + params["b_hfc"]
    policy = jax.nn.softmax(raw[:, :ACTIONS], axis=-1)
    value = jnp.tanh(raw[:, ACTIONS:ACTIONS + 1])
    return policy, value


if __name__ == "__main__":
    # Tic Tac Toe: 3x3 board, 2 input planes, 9 actions.
    key = jax.random.PRNGKey(0)
    k_param, k_input = jax.random.split(key)
    params = init_qnetwork_params(k_param, batch=BATCH)
    state = jax.random.normal(k_input, (BATCH, CIN, H, W), jnp.float32)

    policy, value = qnetwork_forward(params, state)
    policy = jax.block_until_ready(policy)
    value = jax.block_until_ready(value)

    assert policy.shape == (BATCH, ACTIONS)
    assert value.shape == (BATCH, 1)
    assert bool(jnp.allclose(jnp.sum(policy, axis=1), 1.0, atol=2e-2))
    assert bool(jnp.all(jnp.abs(value) <= 1.0))

    policy_ref, value_ref = reference_forward(params, state)
    assert bool(jnp.allclose(policy, policy_ref, atol=2e-2))
    assert bool(jnp.allclose(value, value_ref, atol=2e-2))

    print("KERNEL_OK")
</pallas_src>

<mosaic_0001>
module attributes {stable_mosaic.version = 11 : i64} {
  func.func @qnet_kernel(%arg0: memref<32x64xf32, #tpu.memory_space<vmem>>, %arg1: memref<9x32x64xf32, #tpu.memory_space<vmem>>, %arg2: memref<576x64xbf16, #tpu.memory_space<vmem>>, %arg3: memref<1x64xf32, #tpu.memory_space<vmem>>, %arg4: memref<6x576x64xbf16, #tpu.memory_space<vmem>>, %arg5: memref<6x1x64xf32, #tpu.memory_space<vmem>>, %arg6: memref<576x64xbf16, #tpu.memory_space<vmem>>, %arg7: memref<1x64xf32, #tpu.memory_space<vmem>>, %arg8: memref<64x1152xbf16, #tpu.memory_space<vmem>>, %arg9: memref<1x128xf32, #tpu.memory_space<vmem>>, %arg10: memref<32x128xf32, #tpu.memory_space<vmem>>) attributes {dimension_semantics = [], scalar_prefetch = 0 : i64, scratch_operands = 0 : i64, tpu.core_type = #tpu.core_type<tc>} {
    %c0 = arith.constant 0 : index
    %c0_0 = arith.constant 0 : index
    %c0_1 = arith.constant 0 : index
    %0 = vector.load %arg1[%c0, %c0_0, %c0_1] : memref<9x32x64xf32, #tpu.memory_space<vmem>>, vector<1x32x64xf32>
    %1 = vector.shape_cast %0 : vector<1x32x64xf32> to vector<32x64xf32>
    %c1 = arith.constant 1 : index
    %c0_2 = arith.constant 0 : index
    %c0_3 = arith.constant 0 : index
    %2 = vector.load %arg1[%c1, %c0_2, %c0_3] : memref<9x32x64xf32, #tpu.memory_space<vmem>>, vector<1x32x64xf32>
    %3 = vector.shape_cast %2 : vector<1x32x64xf32> to vector<32x64xf32>
    %c2 = arith.constant 2 : index
    %c0_4 = arith.constant 0 : index
    %c0_5 = arith.constant 0 : index
    %4 = vector.load %arg1[%c2, %c0_4, %c0_5] : memref<9x32x64xf32, #tpu.memory_space<vmem>>, vector<1x32x64xf32>
    %5 = vector.shape_cast %4 : vector<1x32x64xf32> to vector<32x64xf32>
    %c3 = arith.constant 3 : index
    %c0_6 = arith.constant 0 : index
    %c0_7 = arith.constant 0 : index
    %6 = vector.load %arg1[%c3, %c0_6, %c0_7] : memref<9x32x64xf32, #tpu.memory_space<vmem>>, vector<1x32x64xf32>
    %7 = vector.shape_cast %6 : vector<1x32x64xf32> to vector<32x64xf32>
    %c4 = arith.constant 4 : index
    %c0_8 = arith.constant 0 : index
    %c0_9 = arith.constant 0 : index
    %8 = vector.load %arg1[%c4, %c0_8, %c0_9] : memref<9x32x64xf32, #tpu.memory_space<vmem>>, vector<1x32x64xf32>
    %9 = vector.shape_cast %8 : vector<1x32x64xf32> to vector<32x64xf32>
    %c5 = arith.constant 5 : index
    %c0_10 = arith.constant 0 : index
    %c0_11 = arith.constant 0 : index
    %10 = vector.load %arg1[%c5, %c0_10, %c0_11] : memref<9x32x64xf32, #tpu.memory_space<vmem>>, vector<1x32x64xf32>
    %11 = vector.shape_cast %10 : vector<1x32x64xf32> to vector<32x64xf32>
    %c6 = arith.constant 6 : index
    %c0_12 = arith.constant 0 : index
    %c0_13 = arith.constant 0 : index
    %12 = vector.load %arg1[%c6, %c0_12, %c0_13] : memref<9x32x64xf32, #tpu.memory_space<vmem>>, vector<1x32x64xf32>
    %13 = vector.shape_cast %12 : vector<1x32x64xf32> to vector<32x64xf32>
    %c7 = arith.constant 7 : index
    %c0_14 = arith.constant 0 : index
    %c0_15 = arith.constant 0 : index
    %14 = vector.load %arg1[%c7, %c0_14, %c0_15] : memref<9x32x64xf32, #tpu.memory_space<vmem>>, vector<1x32x64xf32>
    %15 = vector.shape_cast %14 : vector<1x32x64xf32> to vector<32x64xf32>
    %c8 = arith.constant 8 : index
    %c0_16 = arith.constant 0 : index
    %c0_17 = arith.constant 0 : index
    %16 = vector.load %arg1[%c8, %c0_16, %c0_17] : memref<9x32x64xf32, #tpu.memory_space<vmem>>, vector<1x32x64xf32>
    %17 = vector.shape_cast %16 : vector<1x32x64xf32> to vector<32x64xf32>
    %c0_18 = arith.constant 0 : index
    %c0_19 = arith.constant 0 : index
    %18 = vector.load %arg0[%c0_18, %c0_19] : memref<32x64xf32, #tpu.memory_space<vmem>>, vector<32x64xf32>
    %c0_20 = arith.constant 0 : index
    %c0_21 = arith.constant 0 : index
    %19 = vector.load %arg2[%c0_20, %c0_21] : memref<576x64xbf16, #tpu.memory_space<vmem>>, vector<576x64xbf16>
    %c0_22 = arith.constant 0 : index
    %c0_23 = arith.constant 0 : index
    %20 = vector.load %arg3[%c0_22, %c0_23] : memref<1x64xf32, #tpu.memory_space<vmem>>, vector<1x64xf32>
    %c4_i32 = arith.constant 4 : i32
    %21 = tpu.dynamic_rotate %18 by %c4_i32 dim 0 : vector<32x64xf32>, i32 -> vector<32x64xf32>
    %22 = arith.mulf %21, %1 : vector<32x64xf32>
    %c3_i32 = arith.constant 3 : i32
    %23 = tpu.dynamic_rotate %18 by %c3_i32 dim 0 : vector<32x64xf32>, i32 -> vector<32x64xf32>
    %24 = arith.mulf %23, %3 : vector<32x64xf32>
    %c2_i32 = arith.constant 2 : i32
    %25 = tpu.dynamic_rotate %18 by %c2_i32 dim 0 : vector<32x64xf32>, i32 -> vector<32x64xf32>
    %26 = arith.mulf %25, %5 : vector<32x64xf32>
    %c1_i32 = arith.constant 1 : i32
    %27 = tpu.dynamic_rotate %18 by %c1_i32 dim 0 : vector<32x64xf32>, i32 -> vector<32x64xf32>
    %28 = arith.mulf %27, %7 : vector<32x64xf32>
    %29 = arith.mulf %18, %9 : vector<32x64xf32>
    %c31_i32 = arith.constant 31 : i32
    %30 = tpu.dynamic_rotate %18 by %c31_i32 dim 0 : vector<32x64xf32>, i32 -> vector<32x64xf32>
    %31 = arith.mulf %30, %11 : vector<32x64xf32>
    %c30_i32 = arith.constant 30 : i32
    %32 = tpu.dynamic_rotate %18 by %c30_i32 dim 0 : vector<32x64xf32>, i32 -> vector<32x64xf32>
    %33 = arith.mulf %32, %13 : vector<32x64xf32>
    %c29_i32 = arith.constant 29 : i32
    %34 = tpu.dynamic_rotate %18 by %c29_i32 dim 0 : vector<32x64xf32>, i32 -> vector<32x64xf32>
    %35 = arith.mulf %34, %15 : vector<32x64xf32>
    %c28_i32 = arith.constant 28 : i32
    %36 = tpu.dynamic_rotate %18 by %c28_i32 dim 0 : vector<32x64xf32>, i32 -> vector<32x64xf32>
    %37 = arith.mulf %36, %17 : vector<32x64xf32>
    %38 = tpu.concatenate %22, %24, %26, %28, %29, %31, %33, %35, %37 in 1 : vector<32x64xf32>, vector<32x64xf32>, vector<32x64xf32>, vector<32x64xf32>, vector<32x64xf32>, vector<32x64xf32>, vector<32x64xf32>, vector<32x64xf32>, vector<32x64xf32> -> vector<32x576xf32>
    %39 = arith.truncf %38 : vector<32x576xf32> to vector<32x576xbf16>
    %cst = arith.constant dense<0.000000e+00> : vector<32x64xf32>
    %40 = tpu.matmul %39, %19, %cst {dimension_numbers = #tpu.dot_dimension_numbers<[1], [0], [0], [1], [0, 0, 1, 1], [], []>} : vector<32x576xbf16>, vector<576x64xbf16>, vector<32x64xf32> -> vector<32x64xf32>
    %41 = vector.broadcast %20 : vector<1x64xf32> to vector<32x64xf32>
    %42 = arith.addf %40, %41 : vector<32x64xf32>
    %cst_24 = arith.constant 0.000000e+00 : f32
    %43 = vector.broadcast %cst_24 : f32 to vector<32x64xf32>
    %44 = arith.maximumf %42, %43 : vector<32x64xf32>
    %c0_25 = arith.constant 0 : index
    %c0_26 = arith.constant 0 : index
    %c0_27 = arith.constant 0 : index
    %45 = vector.load %arg4[%c0_25, %c0_26, %c0_27] : memref<6x576x64xbf16, #tpu.memory_space<vmem>>, vector<1x576x64xbf16>
    %46 = vector.shape_cast %45 : vector<1x576x64xbf16> to vector<576x64xbf16>
    %c0_28 = arith.constant 0 : index
    %c0_29 = arith.constant 0 : index
    %c0_30 = arith.constant 0 : index
    %47 = vector.load %arg5[%c0_28, %c0_29, %c0_30] : memref<6x1x64xf32, #tpu.memory_space<vmem>>, vector<1x1x64xf32>
    %48 = vector.shape_cast %47 : vector<1x1x64xf32> to vector<1x64xf32>
    %c4_i32_31 = arith.constant 4 : i32
    %49 = tpu.dynamic_rotate %44 by %c4_i32_31 dim 0 : vector<32x64xf32>, i32 -> vector<32x64xf32>
    %50 = arith.mulf %49, %1 : vector<32x64xf32>
    %c3_i32_32 = arith.constant 3 : i32
    %51 = tpu.dynamic_rotate %44 by %c3_i32_32 dim 0 : vector<32x64xf32>, i32 -> vector<32x64xf32>
    %52 = arith.mulf %51, %3 : vector<32x64xf32>
    %c2_i32_33 = arith.constant 2 : i32
    %53 = tpu.dynamic_rotate %44 by %c2_i32_33 dim 0 : vector<32x64xf32>, i32 -> vector<32x64xf32>
    %54 = arith.mulf %53, %5 : vector<32x64xf32>
    %c1_i32_34 = arith.constant 1 : i32
    %55 = tpu.dynamic_rotate %44 by %c1_i32_34 dim 0 : vector<32x64xf32>, i32 -> vector<32x64xf32>
    %56 = arith.mulf %55, %7 : vector<32x64xf32>
    %57 = arith.mulf %44, %9 : vector<32x64xf32>
    %c31_i32_35 = arith.constant 31 : i32
    %58 = tpu.dynamic_rotate %44 by %c31_i32_35 dim 0 : vector<32x64xf32>, i32 -> vector<32x64xf32>
    %59 = arith.mulf %58, %11 : vector<32x64xf32>
    %c30_i32_36 = arith.constant 30 : i32
    %60 = tpu.dynamic_rotate %44 by %c30_i32_36 dim 0 : vector<32x64xf32>, i32 -> vector<32x64xf32>
    %61 = arith.mulf %60, %13 : vector<32x64xf32>
    %c29_i32_37 = arith.constant 29 : i32
    %62 = tpu.dynamic_rotate %44 by %c29_i32_37 dim 0 : vector<32x64xf32>, i32 -> vector<32x64xf32>
    %63 = arith.mulf %62, %15 : vector<32x64xf32>
    %c28_i32_38 = arith.constant 28 : i32
    %64 = tpu.dynamic_rotate %44 by %c28_i32_38 dim 0 : vector<32x64xf32>, i32 -> vector<32x64xf32>
    %65 = arith.mulf %64, %17 : vector<32x64xf32>
    %66 = tpu.concatenate %50, %52, %54, %56, %57, %59, %61, %63, %65 in 1 : vector<32x64xf32>, vector<32x64xf32>, vector<32x64xf32>, vector<32x64xf32>, vector<32x64xf32>, vector<32x64xf32>, vector<32x64xf32>, vector<32x64xf32>, vector<32x64xf32> -> vector<32x576xf32>
    %67 = arith.truncf %66 : vector<32x576xf32> to vector<32x576xbf16>
    %cst_39 = arith.constant dense<0.000000e+00> : vector<32x64xf32>
    %68 = tpu.matmul %67, %46, %cst_39 {dimension_numbers = #tpu.dot_dimension_numbers<[1], [0], [0], [1], [0, 0, 1, 1], [], []>} : vector<32x576xbf16>, vector<576x64xbf16>, vector<32x64xf32> -> vector<32x64xf32>
    %69 = vector.broadcast %48 : vector<1x64xf32> to vector<32x64xf32>
    %70 = arith.addf %68, %69 : vector<32x64xf32>
    %cst_40 = arith.constant 0.000000e+00 : f32
    %71 = vector.broadcast %cst_40 : f32 to vector<32x64xf32>
    %72 = arith.maximumf %70, %71 : vector<32x64xf32>
    %c1_41 = arith.constant 1 : index
    %c0_42 = arith.constant 0 : index
    %c0_43 = arith.constant 0 : index
    %73 = vector.load %arg4[%c1_41, %c0_42, %c0_43] : memref<6x576x64xbf16, #tpu.memory_space<vmem>>, vector<1x576x64xbf16>
    %74 = vector.shape_cast %73 : vector<1x576x64xbf16> to vector<576x64xbf16>
    %c1_44 = arith.constant 1 : index
    %c0_45 = arith.constant 0 : index
    %c0_46 = arith.constant 0 : index
    %75 = vector.load %arg5[%c1_44, %c0_45, %c0_46] : memref<6x1x64xf32, #tpu.memory_space<vmem>>, vector<1x1x64xf32>
    %76 = vector.shape_cast %75 : vector<1x1x64xf32> to vector<1x64xf32>
    %c4_i32_47 = arith.constant 4 : i32
    %77 = tpu.dynamic_rotate %72 by %c4_i32_47 dim 0 : vector<32x64xf32>, i32 -> vector<32x64xf32>
    %78 = arith.mulf %77, %1 : vector<32x64xf32>
    %c3_i32_48 = arith.constant 3 : i32
    %79 = tpu.dynamic_rotate %72 by %c3_i32_48 dim 0 : vector<32x64xf32>, i32 -> vector<32x64xf32>
    %80 = arith.mulf %79, %3 : vector<32x64xf32>
    %c2_i32_49 = arith.constant 2 : i32
    %81 = tpu.dynamic_rotate %72 by %c2_i32_49 dim 0 : vector<32x64xf32>, i32 -> vector<32x64xf32>
    %82 = arith.mulf %81, %5 : vector<32x64xf32>
    %c1_i32_50 = arith.constant 1 : i32
    %83 = tpu.dynamic_rotate %72 by %c1_i32_50 dim 0 : vector<32x64xf32>, i32 -> vector<32x64xf32>
    %84 = arith.mulf %83, %7 : vector<32x64xf32>
    %85 = arith.mulf %72, %9 : vector<32x64xf32>
    %c31_i32_51 = arith.constant 31 : i32
    %86 = tpu.dynamic_rotate %72 by %c31_i32_51 dim 0 : vector<32x64xf32>, i32 -> vector<32x64xf32>
    %87 = arith.mulf %86, %11 : vector<32x64xf32>
    %c30_i32_52 = arith.constant 30 : i32
    %88 = tpu.dynamic_rotate %72 by %c30_i32_52 dim 0 : vector<32x64xf32>, i32 -> vector<32x64xf32>
    %89 = arith.mulf %88, %13 : vector<32x64xf32>
    %c29_i32_53 = arith.constant 29 : i32
    %90 = tpu.dynamic_rotate %72 by %c29_i32_53 dim 0 : vector<32x64xf32>, i32 -> vector<32x64xf32>
    %91 = arith.mulf %90, %15 : vector<32x64xf32>
    %c28_i32_54 = arith.constant 28 : i32
    %92 = tpu.dynamic_rotate %72 by %c28_i32_54 dim 0 : vector<32x64xf32>, i32 -> vector<32x64xf32>
    %93 = arith.mulf %92, %17 : vector<32x64xf32>
    %94 = tpu.concatenate %78, %80, %82, %84, %85, %87, %89, %91, %93 in 1 : vector<32x64xf32>, vector<32x64xf32>, vector<32x64xf32>, vector<32x64xf32>, vector<32x64xf32>, vector<32x64xf32>, vector<32x64xf32>, vector<32x64xf32>, vector<32x64xf32> -> vector<32x576xf32>
    %95 = arith.truncf %94 : vector<32x576xf32> to vector<32x576xbf16>
    %cst_55 = arith.constant dense<0.000000e+00> : vector<32x64xf32>
    %96 = tpu.matmul %95, %74, %cst_55 {dimension_numbers = #tpu.dot_dimension_numbers<[1], [0], [0], [1], [0, 0, 1, 1], [], []>} : vector<32x576xbf16>, vector<576x64xbf16>, vector<32x64xf32> -> vector<32x64xf32>
    %97 = vector.broadcast %76 : vector<1x64xf32> to vector<32x64xf32>
    %98 = arith.addf %96, %97 : vector<32x64xf32>
    %99 = arith.addf %98, %44 : vector<32x64xf32>
    %cst_56 = arith.constant 0.000000e+00 : f32
    %100 = vector.broadcast %cst_56 : f32 to vector<32x64xf32>
    %101 = arith.maximumf %99, %100 : vector<32x64xf32>
    %c2_57 = arith.constant 2 : index
    %c0_58 = arith.constant 0 : index
    %c0_59 = arith.constant 0 : index
    %102 = vector.load %arg4[%c2_57, %c0_58, %c0_59] : memref<6x576x64xbf16, #tpu.memory_space<vmem>>, vector<1x576x64xbf16>
    %103 = vector.shape_cast %102 : vector<1x576x64xbf16> to vector<576x64xbf16>
    %c2_60 = arith.constant 2 : index
    %c0_61 = arith.constant 0 : index
    %c0_62 = arith.constant 0 : index
    %104 = vector.load %arg5[%c2_60, %c0_61, %c0_62] : memref<6x1x64xf32, #tpu.memory_space<vmem>>, vector<1x1x64xf32>
    %105 = vector.shape_cast %104 : vector<1x1x64xf32> to vector<1x64xf32>
    %c4_i32_63 = arith.constant 4 : i32
    %106 = tpu.dynamic_rotate %101 by %c4_i32_63 dim 0 : vector<32x64xf32>, i32 -> vector<32x64xf32>
    %107 = arith.mulf %106, %1 : vector<32x64xf32>
    %c3_i32_64 = arith.constant 3 : i32
    %108 = tpu.dynamic_rotate %101 by %c3_i32_64 dim 0 : vector<32x64xf32>, i32 -> vector<32x64xf32>
    %109 = arith.mulf %108, %3 : vector<32x64xf32>
    %c2_i32_65 = arith.constant 2 : i32
    %110 = tpu.dynamic_rotate %101 by %c2_i32_65 dim 0 : vector<32x64xf32>, i32 -> vector<32x64xf32>
    %111 = arith.mulf %110, %5 : vector<32x64xf32>
    %c1_i32_66 = arith.constant 1 : i32
    %112 = tpu.dynamic_rotate %101 by %c1_i32_66 dim 0 : vector<32x64xf32>, i32 -> vector<32x64xf32>
    %113 = arith.mulf %112, %7 : vector<32x64xf32>
    %114 = arith.mulf %101, %9 : vector<32x64xf32>
    %c31_i32_67 = arith.constant 31 : i32
    %115 = tpu.dynamic_rotate %101 by %c31_i32_67 dim 0 : vector<32x64xf32>, i32 -> vector<32x64xf32>
    %116 = arith.mulf %115, %11 : vector<32x64xf32>
    %c30_i32_68 = arith.constant 30 : i32
    %117 = tpu.dynamic_rotate %101 by %c30_i32_68 dim 0 : vector<32x64xf32>, i32 -> vector<32x64xf32>
    %118 = arith.mulf %117, %13 : vector<32x64xf32>
    %c29_i32_69 = arith.constant 29 : i32
    %119 = tpu.dynamic_rotate %101 by %c29_i32_69 dim 0 : vector<32x64xf32>, i32 -> vector<32x64xf32>
    %120 = arith.mulf %119, %15 : vector<32x64xf32>
    %c28_i32_70 = arith.constant 28 : i32
    %121 = tpu.dynamic_rotate %101 by %c28_i32_70 dim 0 : vector<32x64xf32>, i32 -> vector<32x64xf32>
    %122 = arith.mulf %121, %17 : vector<32x64xf32>
    %123 = tpu.concatenate %107, %109, %111, %113, %114, %116, %118, %120, %122 in 1 : vector<32x64xf32>, vector<32x64xf32>, vector<32x64xf32>, vector<32x64xf32>, vector<32x64xf32>, vector<32x64xf32>, vector<32x64xf32>, vector<32x64xf32>, vector<32x64xf32> -> vector<32x576xf32>
    %124 = arith.truncf %123 : vector<32x576xf32> to vector<32x576xbf16>
    %cst_71 = arith.constant dense<0.000000e+00> : vector<32x64xf32>
    %125 = tpu.matmul %124, %103, %cst_71 {dimension_numbers = #tpu.dot_dimension_numbers<[1], [0], [0], [1], [0, 0, 1, 1], [], []>} : vector<32x576xbf16>, vector<576x64xbf16>, vector<32x64xf32> -> vector<32x64xf32>
    %126 = vector.broadcast %105 : vector<1x64xf32> to vector<32x64xf32>
    %127 = arith.addf %125, %126 : vector<32x64xf32>
    %cst_72 = arith.constant 0.000000e+00 : f32
    %128 = vector.broadcast %cst_72 : f32 to vector<32x64xf32>
    %129 = arith.maximumf %127, %128 : vector<32x64xf32>
    %c3_73 = arith.constant 3 : index
    %c0_74 = arith.constant 0 : index
    %c0_75 = arith.constant 0 : index
    %130 = vector.load %arg4[%c3_73, %c0_74, %c0_75] : memref<6x576x64xbf16, #tpu.memory_space<vmem>>, vector<1x576x64xbf16>
    %131 = vector.shape_cast %130 : vector<1x576x64xbf16> to vector<576x64xbf16>
    %c3_76 = arith.constant 3 : index
    %c0_77 = arith.constant 0 : index
    %c0_78 = arith.constant 0 : index
    %132 = vector.load %arg5[%c3_76, %c0_77, %c0_78] : memref<6x1x64xf32, #tpu.memory_space<vmem>>, vector<1x1x64xf32>
    %133 = vector.shape_cast %132 : vector<1x1x64xf32> to vector<1x64xf32>
    %c4_i32_79 = arith.constant 4 : i32
    %134 = tpu.dynamic_rotate %129 by %c4_i32_79 dim 0 : vector<32x64xf32>, i32 -> vector<32x64xf32>
    %135 = arith.mulf %134, %1 : vector<32x64xf32>
    %c3_i32_80 = arith.constant 3 : i32
    %136 = tpu.dynamic_rotate %129 by %c3_i32_80 dim 0 : vector<32x64xf32>, i32 -> vector<32x64xf32>
    %137 = arith.mulf %136, %3 : vector<32x64xf32>
    %c2_i32_81 = arith.constant 2 : i32
    %138 = tpu.dynamic_rotate %129 by %c2_i32_81 dim 0 : vector<32x64xf32>, i32 -> vector<32x64xf32>
    %139 = arith.mulf %138, %5 : vector<32x64xf32>
    %c1_i32_82 = arith.constant 1 : i32
    %140 = tpu.dynamic_rotate %129 by %c1_i32_82 dim 0 : vector<32x64xf32>, i32 -> vector<32x64xf32>
    %141 = arith.mulf %140, %7 : vector<32x64xf32>
    %142 = arith.mulf %129, %9 : vector<32x64xf32>
    %c31_i32_83 = arith.constant 31 : i32
    %143 = tpu.dynamic_rotate %129 by %c31_i32_83 dim 0 : vector<32x64xf32>, i32 -> vector<32x64xf32>
    %144 = arith.mulf %143, %11 : vector<32x64xf32>
    %c30_i32_84 = arith.constant 30 : i32
    %145 = tpu.dynamic_rotate %129 by %c30_i32_84 dim 0 : vector<32x64xf32>, i32 -> vector<32x64xf32>
    %146 = arith.mulf %145, %13 : vector<32x64xf32>
    %c29_i32_85 = arith.constant 29 : i32
    %147 = tpu.dynamic_rotate %129 by %c29_i32_85 dim 0 : vector<32x64xf32>, i32 -> vector<32x64xf32>
    %148 = arith.mulf %147, %15 : vector<32x64xf32>
    %c28_i32_86 = arith.constant 28 : i32
    %149 = tpu.dynamic_rotate %129 by %c28_i32_86 dim 0 : vector<32x64xf32>, i32 -> vector<32x64xf32>
    %150 = arith.mulf %149, %17 : vector<32x64xf32>
    %151 = tpu.concatenate %135, %137, %139, %141, %142, %144, %146, %148, %150 in 1 : vector<32x64xf32>, vector<32x64xf32>, vector<32x64xf32>, vector<32x64xf32>, vector<32x64xf32>, vector<32x64xf32>, vector<32x64xf32>, vector<32x64xf32>, vector<32x64xf32> -> vector<32x576xf32>
    %152 = arith.truncf %151 : vector<32x576xf32> to vector<32x576xbf16>
    %cst_87 = arith.constant dense<0.000000e+00> : vector<32x64xf32>
    %153 = tpu.matmul %152, %131, %cst_87 {dimension_numbers = #tpu.dot_dimension_numbers<[1], [0], [0], [1], [0, 0, 1, 1], [], []>} : vector<32x576xbf16>, vector<576x64xbf16>, vector<32x64xf32> -> vector<32x64xf32>
    %154 = vector.broadcast %133 : vector<1x64xf32> to vector<32x64xf32>
    %155 = arith.addf %153, %154 : vector<32x64xf32>
    %156 = arith.addf %155, %101 : vector<32x64xf32>
    %cst_88 = arith.constant 0.000000e+00 : f32
    %157 = vector.broadcast %cst_88 : f32 to vector<32x64xf32>
    %158 = arith.maximumf %156, %157 : vector<32x64xf32>
    %c4_89 = arith.constant 4 : index
    %c0_90 = arith.constant 0 : index
    %c0_91 = arith.constant 0 : index
    %159 = vector.load %arg4[%c4_89, %c0_90, %c0_91] : memref<6x576x64xbf16, #tpu.memory_space<vmem>>, vector<1x576x64xbf16>
    %160 = vector.shape_cast %159 : vector<1x576x64xbf16> to vector<576x64xbf16>
    %c4_92 = arith.constant 4 : index
    %c0_93 = arith.constant 0 : index
    %c0_94 = arith.constant 0 : index
    %161 = vector.load %arg5[%c4_92, %c0_93, %c0_94] : memref<6x1x64xf32, #tpu.memory_space<vmem>>, vector<1x1x64xf32>
    %162 = vector.shape_cast %161 : vector<1x1x64xf32> to vector<1x64xf32>
    %c4_i32_95 = arith.constant 4 : i32
    %163 = tpu.dynamic_rotate %158 by %c4_i32_95 dim 0 : vector<32x64xf32>, i32 -> vector<32x64xf32>
    %164 = arith.mulf %163, %1 : vector<32x64xf32>
    %c3_i32_96 = arith.constant 3 : i32
    %165 = tpu.dynamic_rotate %158 by %c3_i32_96 dim 0 : vector<32x64xf32>, i32 -> vector<32x64xf32>
    %166 = arith.mulf %165, %3 : vector<32x64xf32>
    %c2_i32_97 = arith.constant 2 : i32
    %167 = tpu.dynamic_rotate %158 by %c2_i32_97 dim 0 : vector<32x64xf32>, i32 -> vector<32x64xf32>
    %168 = arith.mulf %167, %5 : vector<32x64xf32>
    %c1_i32_98 = arith.constant 1 : i32
    %169 = tpu.dynamic_rotate %158 by %c1_i32_98 dim 0 : vector<32x64xf32>, i32 -> vector<32x64xf32>
    %170 = arith.mulf %169, %7 : vector<32x64xf32>
    %171 = arith.mulf %158, %9 : vector<32x64xf32>
    %c31_i32_99 = arith.constant 31 : i32
    %172 = tpu.dynamic_rotate %158 by %c31_i32_99 dim 0 : vector<32x64xf32>, i32 -> vector<32x64xf32>
    %173 = arith.mulf %172, %11 : vector<32x64xf32>
    %c30_i32_100 = arith.constant 30 : i32
    %174 = tpu.dynamic_rotate %158 by %c30_i32_100 dim 0 : vector<32x64xf32>, i32 -> vector<32x64xf32>
    %175 = arith.mulf %174, %13 : vector<32x64xf32>
    %c29_i32_101 = arith.constant 29 : i32
    %176 = tpu.dynamic_rotate %158 by %c29_i32_101 dim 0 : vector<32x64xf32>, i32 -> vector<32x64xf32>
    %177 = arith.mulf %176, %15 : vector<32x64xf32>
    %c28_i32_102 = arith.constant 28 : i32
    %178 = tpu.dynamic_rotate %158 by %c28_i32_102 dim 0 : vector<32x64xf32>, i32 -> vector<32x64xf32>
    %179 = arith.mulf %178, %17 : vector<32x64xf32>
    %180 = tpu.concatenate %164, %166, %168, %170, %171, %173, %175, %177, %179 in 1 : vector<32x64xf32>, vector<32x64xf32>, vector<32x64xf32>, vector<32x64xf32>, vector<32x64xf32>, vector<32x64xf32>, vector<32x64xf32>, vector<32x64xf32>, vector<32x64xf32> -> vector<32x576xf32>
    %181 = arith.truncf %180 : vector<32x576xf32> to vector<32x576xbf16>
    %cst_103 = arith.constant dense<0.000000e+00> : vector<32x64xf32>
    %182 = tpu.matmul %181, %160, %cst_103 {dimension_numbers = #tpu.dot_dimension_numbers<[1], [0], [0], [1], [0, 0, 1, 1], [], []>} : vector<32x576xbf16>, vector<576x64xbf16>, vector<32x64xf32> -> vector<32x64xf32>
    %183 = vector.broadcast %162 : vector<1x64xf32> to vector<32x64xf32>
    %184 = arith.addf %182, %183 : vector<32x64xf32>
    %cst_104 = arith.constant 0.000000e+00 : f32
    %185 = vector.broadcast %cst_104 : f32 to vector<32x64xf32>
    %186 = arith.maximumf %184, %185 : vector<32x64xf32>
    %c5_105 = arith.constant 5 : index
    %c0_106 = arith.constant 0 : index
    %c0_107 = arith.constant 0 : index
    %187 = vector.load %arg4[%c5_105, %c0_106, %c0_107] : memref<6x576x64xbf16, #tpu.memory_space<vmem>>, vector<1x576x64xbf16>
    %188 = vector.shape_cast %187 : vector<1x576x64xbf16> to vector<576x64xbf16>
    %c5_108 = arith.constant 5 : index
    %c0_109 = arith.constant 0 : index
    %c0_110 = arith.constant 0 : index
    %189 = vector.load %arg5[%c5_108, %c0_109, %c0_110] : memref<6x1x64xf32, #tpu.memory_space<vmem>>, vector<1x1x64xf32>
    %190 = vector.shape_cast %189 : vector<1x1x64xf32> to vector<1x64xf32>
    %c4_i32_111 = arith.constant 4 : i32
    %191 = tpu.dynamic_rotate %186 by %c4_i32_111 dim 0 : vector<32x64xf32>, i32 -> vector<32x64xf32>
    %192 = arith.mulf %191, %1 : vector<32x64xf32>
    %c3_i32_112 = arith.constant 3 : i32
    %193 = tpu.dynamic_rotate %186 by %c3_i32_112 dim 0 : vector<32x64xf32>, i32 -> vector<32x64xf32>
    %194 = arith.mulf %193, %3 : vector<32x64xf32>
    %c2_i32_113 = arith.constant 2 : i32
    %195 = tpu.dynamic_rotate %186 by %c2_i32_113 dim 0 : vector<32x64xf32>, i32 -> vector<32x64xf32>
    %196 = arith.mulf %195, %5 : vector<32x64xf32>
    %c1_i32_114 = arith.constant 1 : i32
    %197 = tpu.dynamic_rotate %186 by %c1_i32_114 dim 0 : vector<32x64xf32>, i32 -> vector<32x64xf32>
    %198 = arith.mulf %197, %7 : vector<32x64xf32>
    %199 = arith.mulf %186, %9 : vector<32x64xf32>
    %c31_i32_115 = arith.constant 31 : i32
    %200 = tpu.dynamic_rotate %186 by %c31_i32_115 dim 0 : vector<32x64xf32>, i32 -> vector<32x64xf32>
    %201 = arith.mulf %200, %11 : vector<32x64xf32>
    %c30_i32_116 = arith.constant 30 : i32
    %202 = tpu.dynamic_rotate %186 by %c30_i32_116 dim 0 : vector<32x64xf32>, i32 -> vector<32x64xf32>
    %203 = arith.mulf %202, %13 : vector<32x64xf32>
    %c29_i32_117 = arith.constant 29 : i32
    %204 = tpu.dynamic_rotate %186 by %c29_i32_117 dim 0 : vector<32x64xf32>, i32 -> vector<32x64xf32>
    %205 = arith.mulf %204, %15 : vector<32x64xf32>
    %c28_i32_118 = arith.constant 28 : i32
    %206 = tpu.dynamic_rotate %186 by %c28_i32_118 dim 0 : vector<32x64xf32>, i32 -> vector<32x64xf32>
    %207 = arith.mulf %206, %17 : vector<32x64xf32>
    %208 = tpu.concatenate %192, %194, %196, %198, %199, %201, %203, %205, %207 in 1 : vector<32x64xf32>, vector<32x64xf32>, vector<32x64xf32>, vector<32x64xf32>, vector<32x64xf32>, vector<32x64xf32>, vector<32x64xf32>, vector<32x64xf32>, vector<32x64xf32> -> vector<32x576xf32>
    %209 = arith.truncf %208 : vector<32x576xf32> to vector<32x576xbf16>
    %cst_119 = arith.constant dense<0.000000e+00> : vector<32x64xf32>
    %210 = tpu.matmul %209, %188, %cst_119 {dimension_numbers = #tpu.dot_dimension_numbers<[1], [0], [0], [1], [0, 0, 1, 1], [], []>} : vector<32x576xbf16>, vector<576x64xbf16>, vector<32x64xf32> -> vector<32x64xf32>
    %211 = vector.broadcast %190 : vector<1x64xf32> to vector<32x64xf32>
    %212 = arith.addf %210, %211 : vector<32x64xf32>
    %213 = arith.addf %212, %158 : vector<32x64xf32>
    %cst_120 = arith.constant 0.000000e+00 : f32
    %214 = vector.broadcast %cst_120 : f32 to vector<32x64xf32>
    %215 = arith.maximumf %213, %214 : vector<32x64xf32>
    %c0_121 = arith.constant 0 : index
    %c0_122 = arith.constant 0 : index
    %216 = vector.load %arg6[%c0_121, %c0_122] : memref<576x64xbf16, #tpu.memory_space<vmem>>, vector<576x64xbf16>
    %c0_123 = arith.constant 0 : index
    %c0_124 = arith.constant 0 : index
    %217 = vector.load %arg7[%c0_123, %c0_124] : memref<1x64xf32, #tpu.memory_space<vmem>>, vector<1x64xf32>
    %c4_i32_125 = arith.constant 4 : i32
    %218 = tpu.dynamic_rotate %215 by %c4_i32_125 dim 0 : vector<32x64xf32>, i32 -> vector<32x64xf32>
    %219 = arith.mulf %218, %1 : vector<32x64xf32>
    %c3_i32_126 = arith.constant 3 : i32
    %220 = tpu.dynamic_rotate %215 by %c3_i32_126 dim 0 : vector<32x64xf32>, i32 -> vector<32x64xf32>
    %221 = arith.mulf %220, %3 : vector<32x64xf32>
    %c2_i32_127 = arith.constant 2 : i32
    %222 = tpu.dynamic_rotate %215 by %c2_i32_127 dim 0 : vector<32x64xf32>, i32 -> vector<32x64xf32>
    %223 = arith.mulf %222, %5 : vector<32x64xf32>
    %c1_i32_128 = arith.constant 1 : i32
    %224 = tpu.dynamic_rotate %215 by %c1_i32_128 dim 0 : vector<32x64xf32>, i32 -> vector<32x64xf32>
    %225 = arith.mulf %224, %7 : vector<32x64xf32>
    %226 = arith.mulf %215, %9 : vector<32x64xf32>
    %c31_i32_129 = arith.constant 31 : i32
    %227 = tpu.dynamic_rotate %215 by %c31_i32_129 dim 0 : vector<32x64xf32>, i32 -> vector<32x64xf32>
    %228 = arith.mulf %227, %11 : vector<32x64xf32>
    %c30_i32_130 = arith.constant 30 : i32
    %229 = tpu.dynamic_rotate %215 by %c30_i32_130 dim 0 : vector<32x64xf32>, i32 -> vector<32x64xf32>
    %230 = arith.mulf %229, %13 : vector<32x64xf32>
    %c29_i32_131 = arith.constant 29 : i32
    %231 = tpu.dynamic_rotate %215 by %c29_i32_131 dim 0 : vector<32x64xf32>, i32 -> vector<32x64xf32>
    %232 = arith.mulf %231, %15 : vector<32x64xf32>
    %c28_i32_132 = arith.constant 28 : i32
    %233 = tpu.dynamic_rotate %215 by %c28_i32_132 dim 0 : vector<32x64xf32>, i32 -> vector<32x64xf32>
    %234 = arith.mulf %233, %17 : vector<32x64xf32>
    %235 = tpu.concatenate %219, %221, %223, %225, %226, %228, %230, %232, %234 in 1 : vector<32x64xf32>, vector<32x64xf32>, vector<32x64xf32>, vector<32x64xf32>, vector<32x64xf32>, vector<32x64xf32>, vector<32x64xf32>, vector<32x64xf32>, vector<32x64xf32> -> vector<32x576xf32>
    %236 = arith.truncf %235 : vector<32x576xf32> to vector<32x576xbf16>
    %cst_133 = arith.constant dense<0.000000e+00> : vector<32x64xf32>
    %237 = tpu.matmul %236, %216, %cst_133 {dimension_numbers = #tpu.dot_dimension_numbers<[1], [0], [0], [1], [0, 0, 1, 1], [], []>} : vector<32x576xbf16>, vector<576x64xbf16>, vector<32x64xf32> -> vector<32x64xf32>
    %238 = vector.broadcast %217 : vector<1x64xf32> to vector<32x64xf32>
    %239 = arith.addf %237, %238 : vector<32x64xf32>
    %cst_134 = arith.constant 0.000000e+00 : f32
    %240 = vector.broadcast %cst_134 : f32 to vector<32x64xf32>
    %241 = arith.maximumf %239, %240 : vector<32x64xf32>
    %242 = arith.truncf %241 : vector<32x64xf32> to vector<32x64xbf16>
    %c0_135 = arith.constant 0 : index
    %c0_136 = arith.constant 0 : index
    %243 = vector.load %arg8[%c0_135, %c0_136] : memref<64x1152xbf16, #tpu.memory_space<vmem>>, vector<64x1152xbf16>
    %cst_137 = arith.constant dense<0.000000e+00> : vector<32x1152xf32>
    %244 = tpu.matmul %242, %243, %cst_137 {dimension_numbers = #tpu.dot_dimension_numbers<[1], [0], [0], [1], [0, 0, 1, 1], [], []>} : vector<32x64xbf16>, vector<64x1152xbf16>, vector<32x1152xf32> -> vector<32x1152xf32>
    %245 = vector.extract_strided_slice %244 {offsets = [0, 0], sizes = [32, 128], strides = [1, 1]} : vector<32x1152xf32> to vector<32x128xf32>
    %246 = vector.extract_strided_slice %244 {offsets = [0, 128], sizes = [32, 128], strides = [1, 1]} : vector<32x1152xf32> to vector<32x128xf32>
    %c31_i32_138 = arith.constant 31 : i32
    %247 = tpu.dynamic_rotate %246 by %c31_i32_138 dim 0 : vector<32x128xf32>, i32 -> vector<32x128xf32>
    %248 = arith.addf %245, %247 : vector<32x128xf32>
    %249 = vector.extract_strided_slice %244 {offsets = [0, 256], sizes = [32, 128], strides = [1, 1]} : vector<32x1152xf32> to vector<32x128xf32>
    %c30_i32_139 = arith.constant 30 : i32
    %250 = tpu.dynamic_rotate %249 by %c30_i32_139 dim 0 : vector<32x128xf32>, i32 -> vector<32x128xf32>
    %251 = arith.addf %248, %250 : vector<32x128xf32>
    %252 = vector.extract_strided_slice %244 {offsets = [0, 384], sizes = [32, 128], strides = [1, 1]} : vector<32x1152xf32> to vector<32x128xf32>
    %c29_i32_140 = arith.constant 29 : i32
    %253 = tpu.dynamic_rotate %252 by %c29_i32_140 dim 0 : vector<32x128xf32>, i32 -> vector<32x128xf32>
    %254 = arith.addf %251, %253 : vector<32x128xf32>
    %255 = vector.extract_strided_slice %244 {offsets = [0, 512], sizes = [32, 128], strides = [1, 1]} : vector<32x1152xf32> to vector<32x128xf32>
    %c28_i32_141 = arith.constant 28 : i32
    %256 = tpu.dynamic_rotate %255 by %c28_i32_141 dim 0 : vector<32x128xf32>, i32 -> vector<32x128xf32>
    %257 = arith.addf %254, %256 : vector<32x128xf32>
    %258 = vector.extract_strided_slice %244 {offsets = [0, 640], sizes = [32, 128], strides = [1, 1]} : vector<32x1152xf32> to vector<32x128xf32>
    %c27_i32 = arith.constant 27 : i32
    %259 = tpu.dynamic_rotate %258 by %c27_i32 dim 0 : vector<32x128xf32>, i32 -> vector<32x128xf32>
    %260 = arith.addf %257, %259 : vector<32x128xf32>
    %261 = vector.extract_strided_slice %244 {offsets = [0, 768], sizes = [32, 128], strides = [1, 1]} : vector<32x1152xf32> to vector<32x128xf32>
    %c26_i32 = arith.constant 26 : i32
    %262 = tpu.dynamic_rotate %261 by %c26_i32 dim 0 : vector<32x128xf32>, i32 -> vector<32x128xf32>
    %263 = arith.addf %260, %262 : vector<32x128xf32>
    %264 = vector.extract_strided_slice %244 {offsets = [0, 896], sizes = [32, 128], strides = [1, 1]} : vector<32x1152xf32> to vector<32x128xf32>
    %c25_i32 = arith.constant 25 : i32
    %265 = tpu.dynamic_rotate %264 by %c25_i32 dim 0 : vector<32x128xf32>, i32 -> vector<32x128xf32>
    %266 = arith.addf %263, %265 : vector<32x128xf32>
    %267 = vector.extract_strided_slice %244 {offsets = [0, 1024], sizes = [32, 128], strides = [1, 1]} : vector<32x1152xf32> to vector<32x128xf32>
    %c24_i32 = arith.constant 24 : i32
    %268 = tpu.dynamic_rotate %267 by %c24_i32 dim 0 : vector<32x128xf32>, i32 -> vector<32x128xf32>
    %269 = arith.addf %266, %268 : vector<32x128xf32>
    %c0_142 = arith.constant 0 : index
    %c0_143 = arith.constant 0 : index
    %270 = vector.load %arg9[%c0_142, %c0_143] : memref<1x128xf32, #tpu.memory_space<vmem>>, vector<1x128xf32>
    %271 = vector.broadcast %270 : vector<1x128xf32> to vector<32x128xf32>
    %272 = arith.addf %269, %271 : vector<32x128xf32>
    %273 = tpu.iota {dimensions = array<i32: 1>} : vector<32x128xi32>
    %c9_i32 = arith.constant 9 : i32
    %274 = vector.broadcast %c9_i32 : i32 to vector<32x128xi32>
    %275 = arith.cmpi slt, %273, %274 : vector<32x128xi32>
    %cst_144 = arith.constant -1.000000e+30 : f32
    %276 = vector.broadcast %cst_144 : f32 to vector<32x128xf32>
    %277 = arith.select %275, %272, %276 : vector<32x128xi1>, vector<32x128xf32>
    %cst_145 = arith.constant dense<0xFF800000> : vector<32xf32>
    %278 = vector.multi_reduction <maximumf>, %277, %cst_145 [1] : vector<32x128xf32> to vector<32xf32>
    %279 = vector.shape_cast %278 : vector<32xf32> to vector<32x1xf32>
    %280 = vector.broadcast %279 : vector<32x1xf32> to vector<32x128xf32>
    %281 = arith.subf %277, %280 : vector<32x128xf32>
    %282 = math.exp %281 : vector<32x128xf32>
    %cst_146 = arith.constant dense<0.000000e+00> : vector<32xf32>
    %283 = vector.multi_reduction <add>, %282, %cst_146 [1] : vector<32x128xf32> to vector<32xf32>
    %284 = vector.shape_cast %283 : vector<32xf32> to vector<32x1xf32>
    %285 = tpu.reciprocal %284 {approx = true} : vector<32x1xf32> -> vector<32x1xf32>
    %286 = vector.broadcast %285 : vector<32x1xf32> to vector<32x128xf32>
    %287 = arith.mulf %282, %286 : vector<32x128xf32>
    %288 = math.tanh %272 : vector<32x128xf32>
    %c9_i32_147 = arith.constant 9 : i32
    %289 = vector.broadcast %c9_i32_147 : i32 to vector<32x128xi32>
    %290 = arith.cmpi eq, %273, %289 : vector<32x128xi32>
    %291 = arith.select %290, %288, %287 : vector<32x128xi1>, vector<32x128xf32>
    %c0_148 = arith.constant 0 : index
    %c0_149 = arith.constant 0 : index
    %292 = vector.load %arg10[%c0_148, %c0_149] : memref<32x128xf32, #tpu.memory_space<vmem>>, vector<32x128xf32>
    tpu.vector_store %arg10[%c0_148, %c0_149], %291 {strides = array<i32>} : memref<32x128xf32, #tpu.memory_space<vmem>>, vector<32x128xf32>,
    return
  }
}

</mosaic_0001>

<llo_original>
// kernel: qnetwork_forward.1
$region0: #{qnetwork_forward.1}
  #allocation0 [shape = 'u32[]', space=smem, size = 0x4, offset = 0x4, fixed_abs, tag = 'smem constant byte address 0x4 - core index']
  #allocation1 [shape = 'u32[144,128]{1,0:T(1,128)}', space=vmem, size = 0x12000, scoped, tag = 'internal scratch']
  %s0 = inlined_call_operand.vmem [shape: f32[32,64], index: 0, kind: input, shape index: {}]
  %s1 = inlined_call_operand.vmem [shape: f32[9,32,64], index: 1, kind: input, shape index: {}]
  %s2 = inlined_call_operand.vmem [shape: bf16[576,64], index: 2, kind: input, shape index: {}]
  %s3 = inlined_call_operand.vmem [shape: f32[1,64], index: 3, kind: input, shape index: {}]
  %s4 = inlined_call_operand.vmem [shape: bf16[6,576,64], index: 4, kind: input, shape index: {}]
  %s5 = inlined_call_operand.vmem [shape: f32[6,1,64], index: 5, kind: input, shape index: {}]
  %s6 = inlined_call_operand.vmem [shape: bf16[576,64], index: 6, kind: input, shape index: {}]
  %s7 = inlined_call_operand.vmem [shape: f32[1,64], index: 7, kind: input, shape index: {}]
  %s8 = inlined_call_operand.vmem [shape: bf16[64,1152], index: 8, kind: input, shape index: {}]
  %s9 = inlined_call_operand.vmem [shape: f32[1,128], index: 9, kind: input, shape index: {}]
  %s10 = inlined_call_operand.vmem [shape: f32[32,128], index: 10, kind: output, shape index: {}]
  %s11 = sld [smem:[#allocation0]]
  $region50: #{qnetwork_forward.1} parent=0
    _
  %s13 = ssub.s32 1, %s11
  %s14 = scalar_select 0, %s13, %s11
  // Predicated region
  $region2: #{qnetwork_forward.1} parent=0 // pred_check
    _
  $region3: #{qnetwork_forward.1} parent=0 // pred_check_branch
    %16 = sbr.rel (0) target = $region5
  $region4: #{qnetwork_forward.1} parent=0 // pred_region
    _
  $region5: #{qnetwork_forward.1} parent=0 // pred_fallthru
    _
  // Predicated region
  $region6: #{qnetwork_forward.1} parent=0 // pred_check
    _
  $region7: #{qnetwork_forward.1} parent=0 // pred_check_branch
    %18 = sbr.rel (0) target = $region9
  $region8: #{qnetwork_forward.1} parent=0 // pred_region
    _
  $region9: #{qnetwork_forward.1} parent=0 // pred_fallthru
    _
  // Predicated region
  $region10: #{qnetwork_forward.1} parent=0 // pred_check
    _
  $region11: #{qnetwork_forward.1} parent=0 // pred_check_branch
    %20 = sbr.rel (0) target = $region13
  $region12: #{qnetwork_forward.1} parent=0 // pred_region
    _
  $region13: #{qnetwork_forward.1} parent=0 // pred_fallthru
    _
  // Predicated region
  $region14: #{qnetwork_forward.1} parent=0 // pred_check
    _
  $region15: #{qnetwork_forward.1} parent=0 // pred_check_branch
    %22 = sbr.rel (0) target = $region17
  $region16: #{qnetwork_forward.1} parent=0 // pred_region
    _
  $region17: #{qnetwork_forward.1} parent=0 // pred_fallthru
    _
  // Predicated region
  $region18: #{qnetwork_forward.1} parent=0 // pred_check
    _
  $region19: #{qnetwork_forward.1} parent=0 // pred_check_branch
    %24 = sbr.rel (0) target = $region21
  $region20: #{qnetwork_forward.1} parent=0 // pred_region
    _
  $region21: #{qnetwork_forward.1} parent=0 // pred_fallthru
    _
  // Predicated region
  $region22: #{qnetwork_forward.1} parent=0 // pred_check
    _
  $region23: #{qnetwork_forward.1} parent=0 // pred_check_branch
    %26 = sbr.rel (0) target = $region25
  $region24: #{qnetwork_forward.1} parent=0 // pred_region
    _
  $region25: #{qnetwork_forward.1} parent=0 // pred_fallthru
    _
  // Predicated region
  $region26: #{qnetwork_forward.1} parent=0 // pred_check
    _
  $region27: #{qnetwork_forward.1} parent=0 // pred_check_branch
    %28 = sbr.rel (0) target = $region29
  $region28: #{qnetwork_forward.1} parent=0 // pred_region
    _
  $region29: #{qnetwork_forward.1} parent=0 // pred_fallthru
    _
  // Predicated region
  $region30: #{qnetwork_forward.1} parent=0 // pred_check
    _
  $region31: #{qnetwork_forward.1} parent=0 // pred_check_branch
    %30 = sbr.rel (0) target = $region33
  $region32: #{qnetwork_forward.1} parent=0 // pred_region
    _
  $region33: #{qnetwork_forward.1} parent=0 // pred_fallthru
    _
  // Predicated region
  $region34: #{qnetwork_forward.1} parent=0 // pred_check
    _
  $region35: #{qnetwork_forward.1} parent=0 // pred_check_branch
    %32 = sbr.rel (0) target = $region37
  $region36: #{qnetwork_forward.1} parent=0 // pred_region
    _
  $region37: #{qnetwork_forward.1} parent=0 // pred_fallthru
    _
  // Predicated region
  $region38: #{qnetwork_forward.1} parent=0 // pred_check
    _
  $region39: #{qnetwork_forward.1} parent=0 // pred_check_branch
    %34 = sbr.rel (0) target = $region41
  $region40: #{qnetwork_forward.1} parent=0 // pred_region
    _
  $region41: #{qnetwork_forward.1} parent=0 // pred_fallthru
    _
  %v36 = vld [vmem:[%s1] sm:$0xff]
  %v37 = vld [vmem:[%s1 + $0x8] sm:$0xff]
  %v38 = vld [vmem:[%s1 + $0x10] sm:$0xff]
  %v39 = vld [vmem:[%s1 + $0x18] sm:$0xff]
  %s40 = scalar_lea.vmem %s1, 32
  %v41 = vld [vmem:[%s40] sm:$0xff]
  %v42 = vld [vmem:[%s40 + $0x8] sm:$0xff]
  %v43 = vld [vmem:[%s40 + $0x10] sm:$0xff]
  %v44 = vld [vmem:[%s40 + $0x18] sm:$0xff]
  %s45 = scalar_lea.vmem %s1, 64
  %v46 = vld [vmem:[%s45] sm:$0xff]
  %v47 = vld [vmem:[%s45 + $0x8] sm:$0xff]
  %v48 = vld [vmem:[%s45 + $0x10] sm:$0xff]
  %v49 = vld [vmem:[%s45 + $0x18] sm:$0xff]
  %s50 = scalar_lea.vmem %s1, 96
  %v51 = vld [vmem:[%s50] sm:$0xff]
  %v52 = vld [vmem:[%s50 + $0x8] sm:$0xff]
  %v53 = vld [vmem:[%s50 + $0x10] sm:$0xff]
  %v54 = vld [vmem:[%s50 + $0x18] sm:$0xff]
  %s55 = scalar_lea.vmem %s1, 128
  %v56 = vld [vmem:[%s55] sm:$0xff]
  %v57 = vld [vmem:[%s55 + $0x8] sm:$0xff]
  %v58 = vld [vmem:[%s55 + $0x10] sm:$0xff]
  %v59 = vld [vmem:[%s55 + $0x18] sm:$0xff]
  %s60 = scalar_lea.vmem %s1, 160
  %v61 = vld [vmem:[%s60] sm:$0xff]
  %v62 = vld [vmem:[%s60 + $0x8] sm:$0xff]
  %v63 = vld [vmem:[%s60 + $0x10] sm:$0xff]
  %v64 = vld [vmem:[%s60 + $0x18] sm:$0xff]
  %s65 = scalar_lea.vmem %s1, 192
  %v66 = vld [vmem:[%s65] sm:$0xff]
  %v67 = vld [vmem:[%s65 + $0x8] sm:$0xff]
  %v68 = vld [vmem:[%s65 + $0x10] sm:$0xff]
  %v69 = vld [vmem:[%s65 + $0x18] sm:$0xff]
  %s70 = scalar_lea.vmem %s1, 224
  %v71 = vld [vmem:[%s70] sm:$0xff]
  %v72 = vld [vmem:[%s70 + $0x8] sm:$0xff]
  %v73 = vld [vmem:[%s70 + $0x10] sm:$0xff]
  %v74 = vld [vmem:[%s70 + $0x18] sm:$0xff]
  %s75 = scalar_lea.vmem %s1, 256
  %v76 = vld [vmem:[%s75] sm:$0xff]
  %v77 = vld [vmem:[%s75 + $0x8] sm:$0xff]
  %v78 = vld [vmem:[%s75 + $0x10] sm:$0xff]
  %v79 = vld [vmem:[%s75 + $0x18] sm:$0xff]
  %v80 = vld [vmem:[%s0] sm:$0xff]
  %v81 = vld [vmem:[%s0 + $0x8] sm:$0xff]
  %v82 = vld [vmem:[%s0 + $0x10] sm:$0xff]
  %v83 = vld [vmem:[%s0 + $0x18] sm:$0xff]
  %v84 = vld [vmem:[%s2] sm:$0xf]
  %v85 = vld [vmem:[%s2 + $0x4] sm:$0xf]
  %v86 = vld [vmem:[%s2 + $0x8] sm:$0xf]
  %v87 = vld [vmem:[%s2 + $0xc] sm:$0xf]
  %v88 = vld [vmem:[%s2 + $0x10] sm:$0xf]
  %v89 = vld [vmem:[%s2 + $0x14] sm:$0xf]
  %v90 = vld [vmem:[%s2 + $0x18] sm:$0xf]
  %v91 = vld [vmem:[%s2 + $0x1c] sm:$0xf]
  %v92 = vld [vmem:[%s2 + $0x20] sm:$0xf]
  %v93 = vld [vmem:[%s2 + $0x24] sm:$0xf]
  %v94 = vld [vmem:[%s2 + $0x28] sm:$0xf]
  %v95 = vld [vmem:[%s2 + $0x2c] sm:$0xf]
  %v96 = vld [vmem:[%s2 + $0x30] sm:$0xf]
  %v97 = vld [vmem:[%s2 + $0x34] sm:$0xf]
  %v98 = vld [vmem:[%s2 + $0x38] sm:$0xf]
  %v99 = vld [vmem:[%s2 + $0x3c] sm:$0xf]
  %v100 = vld [vmem:[%s2 + $0x40] sm:$0xf]
  %v101 = vld [vmem:[%s2 + $0x44] sm:$0xf]
  %v102 = vld [vmem:[%s2 + $0x48] sm:$0xf]
  %v103 = vld [vmem:[%s2 + $0x4c] sm:$0xf]
  %v104 = vld [vmem:[%s2 + $0x50] sm:$0xf]
  %v105 = vld [vmem:[%s2 + $0x54] sm:$0xf]
  %v106 = vld [vmem:[%s2 + $0x58] sm:$0xf]
  %v107 = vld [vmem:[%s2 + $0x5c] sm:$0xf]
  %v108 = vld [vmem:[%s2 + $0x60] sm:$0xf]
  %v109 = vld [vmem:[%s2 + $0x64] sm:$0xf]
  %v110 = vld [vmem:[%s2 + $0x68] sm:$0xf]
  %v111 = vld [vmem:[%s2 + $0x6c] sm:$0xf]
  %v112 = vld [vmem:[%s2 + $0x70] sm:$0xf]
  %v113 = vld [vmem:[%s2 + $0x74] sm:$0xf]
  %v114 = vld [vmem:[%s2 + $0x78] sm:$0xf]
  %v115 = vld [vmem:[%s2 + $0x7c] sm:$0xf]
  %v116 = vld [vmem:[%s2 + $0x80] sm:$0xf]
  %v117 = vld [vmem:[%s2 + $0x84] sm:$0xf]
  %v118 = vld [vmem:[%s2 + $0x88] sm:$0xf]
  %v119 = vld [vmem:[%s2 + $0x8c] sm:$0xf]
  %v120 = vld [vmem:[%s2 + $0x90] sm:$0xf]
  %v121 = vld [vmem:[%s2 + $0x94] sm:$0xf]
  %v122 = vld [vmem:[%s2 + $0x98] sm:$0xf]
  %v123 = vld [vmem:[%s2 + $0x9c] sm:$0xf]
  %v124 = vld [vmem:[%s2 + $0xa0] sm:$0xf]
  %v125 = vld [vmem:[%s2 + $0xa4] sm:$0xf]
  %v126 = vld [vmem:[%s2 + $0xa8] sm:$0xf]
  %v127 = vld [vmem:[%s2 + $0xac] sm:$0xf]
  %v128 = vld [vmem:[%s2 + $0xb0] sm:$0xf]
  %v129 = vld [vmem:[%s2 + $0xb4] sm:$0xf]
  %v130 = vld [vmem:[%s2 + $0xb8] sm:$0xf]
  %v131 = vld [vmem:[%s2 + $0xbc] sm:$0xf]
  %v132 = vld [vmem:[%s2 + $0xc0] sm:$0xf]
  %v133 = vld [vmem:[%s2 + $0xc4] sm:$0xf]
  %v134 = vld [vmem:[%s2 + $0xc8] sm:$0xf]
  %v135 = vld [vmem:[%s2 + $0xcc] sm:$0xf]
  %v136 = vld [vmem:[%s2 + $0xd0] sm:$0xf]
  %v137 = vld [vmem:[%s2 + $0xd4] sm:$0xf]
  %v138 = vld [vmem:[%s2 + $0xd8] sm:$0xf]
  %v139 = vld [vmem:[%s2 + $0xdc] sm:$0xf]
  %v140 = vld [vmem:[%s2 + $0xe0] sm:$0xf]
  %v141 = vld [vmem:[%s2 + $0xe4] sm:$0xf]
  %v142 = vld [vmem:[%s2 + $0xe8] sm:$0xf]
  %v143 = vld [vmem:[%s2 + $0xec] sm:$0xf]
  %v144 = vld [vmem:[%s2 + $0xf0] sm:$0xf]
  %v145 = vld [vmem:[%s2 + $0xf4] sm:$0xf]
  %v146 = vld [vmem:[%s2 + $0xf8] sm:$0xf]
  %v147 = vld [vmem:[%s2 + $0xfc] sm:$0xf]
  %v148 = vld [vmem:[%s2 + $0x100] sm:$0xf]
  %v149 = vld [vmem:[%s2 + $0x104] sm:$0xf]
  %v150 = vld [vmem:[%s2 + $0x108] sm:$0xf]
  %v151 = vld [vmem:[%s2 + $0x10c] sm:$0xf]
  %v152 = vld [vmem:[%s2 + $0x110] sm:$0xf]
  %v153 = vld [vmem:[%s2 + $0x114] sm:$0xf]
  %v154 = vld [vmem:[%s2 + $0x118] sm:$0xf]
  %v155 = vld [vmem:[%s2 + $0x11c] sm:$0xf]
  %v156 = vld [vmem:[%s3] sm:$0x1]
  %v157 = vrot.slane %v80, 4
  %v158 = vrot.slane %v81, 4
  %v159 = vrot.slane %v82, 4
  %v160 = vrot.slane %v83, 4
  %v161 = vlaneseq
  %v162 = vshrl.u32 %v161, 7
  %vm163 = vcmp.lt.s32.totalorder %v162, 4
  %v164 = vsel %vm163, %v159, %v160
  %v165 = vsel %vm163, %v158, %v159
  %v166 = vsel %vm163, %v157, %v158
  %v167 = vsel %vm163, %v160, %v157
  %v168 = vmul.f32 %v167, %v36
  %v169 = vmul.f32 %v166, %v37
  %v170 = vmul.f32 %v165, %v38
  %v171 = vmul.f32 %v164, %v39
  %v172 = vrot.slane %v80, 5
  %v173 = vrot.slane %v81, 5
  %v174 = vrot.slane %v82, 5
  %v175 = vrot.slane %v83, 5
  %vm176 = vcmp.lt.s32.totalorder %v162, 3
  %v177 = vsel %vm176, %v174, %v175
  %v178 = vsel %vm176, %v173, %v174
  %v179 = vsel %vm176, %v172, %v173
  %v180 = vsel %vm176, %v175, %v172
  %v181 = vmul.f32 %v180, %v41
  %v182 = vmul.f32 %v179, %v42
  %v183 = vmul.f32 %v178, %v43
  %v184 = vmul.f32 %v177, %v44
  %v185 = vrot.slane %v80, 6
  %v186 = vrot.slane %v81, 6
  %v187 = vrot.slane %v82, 6
  %v188 = vrot.slane %v83, 6
  %vm189 = vcmp.lt.s32.totalorder %v162, 2
  %v190 = vsel %vm189, %v187, %v188
  %v191 = vsel %vm189, %v186, %v187
  %v192 = vsel %vm189, %v185, %v186
  %v193 = vsel %vm189, %v188, %v185
  %v194 = vmul.f32 %v193, %v46
  %v195 = vmul.f32 %v192, %v47
  %v196 = vmul.f32 %v191, %v48
  %v197 = vmul.f32 %v190, %v49
  %v198 = vrot.slane %v80, 7
  %v199 = vrot.slane %v81, 7
  %v200 = vrot.slane %v82, 7
  %v201 = vrot.slane %v83, 7
  %vm202 = vcmp.lt.s32.totalorder %v162, 1
  %v203 = vsel %vm202, %v200, %v201
  %v204 = vsel %vm202, %v199, %v200
  %v205 = vsel %vm202, %v198, %v199
  %v206 = vsel %vm202, %v201, %v198
  %v207 = vmul.f32 %v206, %v51
  %v208 = vmul.f32 %v205, %v52
  %v209 = vmul.f32 %v204, %v53
  %v210 = vmul.f32 %v203, %v54
  %v211 = vmul.f32 %v80, %v56
  %v212 = vmul.f32 %v81, %v57
  %v213 = vmul.f32 %v82, %v58
  %v214 = vmul.f32 %v83, %v59
  %v215 = vrot.slane %v80, 1
  %v216 = vrot.slane %v81, 1
  %v217 = vrot.slane %v82, 1
  %v218 = vrot.slane %v83, 1
  %vm219 = vcmp.lt.s32.totalorder %v162, 7
  %v220 = vsel %vm219, %v217, %v218
  %v221 = vsel %vm219, %v216, %v217
  %v222 = vsel %vm219, %v215, %v216
  %v223 = vsel %vm219, %v218, %v215
  %v224 = vmul.f32 %v222, %v61
  %v225 = vmul.f32 %v221, %v62
  %v226 = vmul.f32 %v220, %v63
  %v227 = vmul.f32 %v223, %v64
  %v228 = vrot.slane %v80, 2
  %v229 = vrot.slane %v81, 2
  %v230 = vrot.slane %v82, 2
  %v231 = vrot.slane %v83, 2
  %vm232 = vcmp.lt.s32.totalorder %v162, 6
  %v233 = vsel %vm232, %v230, %v231
  %v234 = vsel %vm232, %v229, %v230
  %v235 = vsel %vm232, %v228, %v229
  %v236 = vsel %vm232, %v231, %v228
  %v237 = vmul.f32 %v235, %v66
  %v238 = vmul.f32 %v234, %v67
  %v239 = vmul.f32 %v233, %v68
  %v240 = vmul.f32 %v236, %v69
  %v241 = vrot.slane %v80, 3
  %v242 = vrot.slane %v81, 3
  %v243 = vrot.slane %v82, 3
  %v244 = vrot.slane %v83, 3
  %vm245 = vcmp.lt.s32.totalorder %v162, 5
  %v246 = vsel %vm245, %v243, %v244
  %v247 = vsel %vm245, %v242, %v243
  %v248 = vsel %vm245, %v241, %v242
  %v249 = vsel %vm245, %v244, %v241
  %v250 = vmul.f32 %v248, %v71
  %v251 = vmul.f32 %v247, %v72
  %v252 = vmul.f32 %v246, %v73
  %v253 = vmul.f32 %v249, %v74
  %v254 = vmul.f32 %v166, %v76
  %v255 = vmul.f32 %v165, %v77
  %v256 = vmul.f32 %v164, %v78
  %v257 = vmul.f32 %v167, %v79
  %262 = vrot.lane.b32.xlu0 %v181, 64
  %v263 = vpop.permute.xlu0 %262
  %264 = vrot.lane.b32.xlu0 %v182, 64
  %v265 = vpop.permute.xlu0 %264
  %266 = vrot.lane.b32.xlu0 %v183, 64
  %v267 = vpop.permute.xlu0 %266
  %268 = vrot.lane.b32.xlu0 %v184, 64
  %v269 = vpop.permute.xlu0 %268
  %278 = vrot.lane.b32.xlu0 %v207, 64
  %v279 = vpop.permute.xlu0 %278
  %280 = vrot.lane.b32.xlu0 %v208, 64
  %v281 = vpop.permute.xlu0 %280
  %282 = vrot.lane.b32.xlu0 %v209, 64
  %v283 = vpop.permute.xlu0 %282
  %284 = vrot.lane.b32.xlu0 %v210, 64
  %v285 = vpop.permute.xlu0 %284
  %294 = vrot.lane.b32.xlu0 %v224, 64
  %v295 = vpop.permute.xlu0 %294
  %296 = vrot.lane.b32.xlu0 %v225, 64
  %v297 = vpop.permute.xlu0 %296
  %298 = vrot.lane.b32.xlu0 %v226, 64
  %v299 = vpop.permute.xlu0 %298
  %300 = vrot.lane.b32.xlu0 %v227, 64
  %v301 = vpop.permute.xlu0 %300
  %310 = vrot.lane.b32.xlu0 %v250, 64
  %v311 = vpop.permute.xlu0 %310
  %312 = vrot.lane.b32.xlu0 %v251, 64
  %v313 = vpop.permute.xlu0 %312
  %314 = vrot.lane.b32.xlu0 %v252, 64
  %v315 = vpop.permute.xlu0 %314
  %316 = vrot.lane.b32.xlu0 %v253, 64
  %v317 = vpop.permute.xlu0 %316
  %vm322 = vcmask 523264
  %v323 = vsel %vm322, %v168, %v263
  %v324 = vsel %vm322, %v169, %v265
  %v325 = vsel %vm322, %v170, %v267
  %v326 = vsel %vm322, %v171, %v269
  %v327 = vsel %vm322, %v194, %v279
  %v328 = vsel %vm322, %v195, %v281
  %v329 = vsel %vm322, %v196, %v283
  %v330 = vsel %vm322, %v197, %v285
  %v331 = vsel %vm322, %v211, %v295
  %v332 = vsel %vm322, %v212, %v297
  %v333 = vsel %vm322, %v213, %v299
  %v334 = vsel %vm322, %v214, %v301
  %v335 = vsel %vm322, %v237, %v311
  %v336 = vsel %vm322, %v238, %v313
  %v337 = vsel %vm322, %v239, %v315
  %v338 = vsel %vm322, %v240, %v317
  %v339 = vpack.c.bf16 %v324, %v323
  %v340 = vpack.c.bf16 %v328, %v327
  %v341 = vpack.c.bf16 %v332, %v331
  %v342 = vpack.c.bf16 %v336, %v335
  %v343 = vpack.c.bf16 %v255, %v254
  %v344 = vpack.c.bf16 %v326, %v325
  %v345 = vpack.c.bf16 %v330, %v329
  %v346 = vpack.c.bf16 %v334, %v333
  %v347 = vpack.c.bf16 %v338, %v337
  %v348 = vpack.c.bf16 %v257, %v256
  %v350 = vlaneseq
  %v351 = vshrl.u32 %v350, 7
  %v352 = vsub.s32 0, %v351
  %v353 = vrot.slane %v156, %v352
  %v427 = vunpack.c.l.b16 %v84
  %v428 = vunpack.c.l.b16 %v85
  %v429 = vunpack.c.l.b16 %v86
  %v430 = vunpack.c.l.b16 %v87
  %v431 = vunpack.c.l.b16 %v88
  %v432 = vunpack.c.l.b16 %v89
  %v433 = vunpack.c.l.b16 %v90
  %v434 = vunpack.c.l.b16 %v91
  %v435 = vunpack.c.l.b16 %v92
  %v436 = vunpack.c.l.b16 %v93
  %v437 = vunpack.c.l.b16 %v94
  %v438 = vunpack.c.l.b16 %v95
  %v439 = vunpack.c.l.b16 %v96
  %v440 = vunpack.c.l.b16 %v97
  %v441 = vunpack.c.l.b16 %v98
  %v442 = vunpack.c.l.b16 %v99
  %v443 = vunpack.c.l.b16 %v100
  %v444 = vunpack.c.l.b16 %v101
  %v445 = vunpack.c.l.b16 %v102
  %v446 = vunpack.c.l.b16 %v103
  %v447 = vunpack.c.l.b16 %v104
  %v448 = vunpack.c.l.b16 %v105
  %v449 = vunpack.c.l.b16 %v106
  %v450 = vunpack.c.l.b16 %v107
  %v451 = vunpack.c.l.b16 %v108
  %v452 = vunpack.c.l.b16 %v109
  %v453 = vunpack.c.l.b16 %v110
  %v454 = vunpack.c.l.b16 %v111
  %v455 = vunpack.c.l.b16 %v112
  %v456 = vunpack.c.l.b16 %v113
  %v457 = vunpack.c.l.b16 %v114
  %v458 = vunpack.c.l.b16 %v115
  %v459 = vunpack.c.l.b16 %v116
  %v460 = vunpack.c.l.b16 %v117
  %v461 = vunpack.c.l.b16 %v118
  %v462 = vunpack.c.l.b16 %v119
  %v463 = vunpack.c.l.b16 %v120
  %v464 = vunpack.c.l.b16 %v121
  %v465 = vunpack.c.l.b16 %v122
  %v466 = vunpack.c.l.b16 %v123
  %v467 = vunpack.c.l.b16 %v124
  %v468 = vunpack.c.l.b16 %v125
  %v469 = vunpack.c.l.b16 %v126
  %v470 = vunpack.c.l.b16 %v127
  %v471 = vunpack.c.l.b16 %v128
  %v472 = vunpack.c.l.b16 %v129
  %v473 = vunpack.c.l.b16 %v130
  %v474 = vunpack.c.l.b16 %v131
  %v475 = vunpack.c.l.b16 %v132
  %v476 = vunpack.c.l.b16 %v133
  %v477 = vunpack.c.l.b16 %v134
  %v478 = vunpack.c.l.b16 %v135
  %v479 = vunpack.c.l.b16 %v136
  %v480 = vunpack.c.l.b16 %v137
  %v481 = vunpack.c.l.b16 %v138
  %v482 = vunpack.c.l.b16 %v139
  %v483 = vunpack.c.l.b16 %v140
  %v484 = vunpack.c.l.b16 %v141
  %v485 = vunpack.c.l.b16 %v142
  %v486 = vunpack.c.l.b16 %v143
  %v487 = vunpack.c.l.b16 %v144
  %v488 = vunpack.c.l.b16 %v145
  %v489 = vunpack.c.l.b16 %v146
  %v490 = vunpack.c.l.b16 %v147
  %v491 = vunpack.c.l.b16 %v148
  %v492 = vunpack.c.l.b16 %v149
  %v493 = vunpack.c.l.b16 %v150
  %v494 = vunpack.c.l.b16 %v151
  %v495 = vunpack.c.l.b16 %v152
  %v496 = vunpack.c.l.b16 %v153
  %v497 = vunpack.c.l.b16 %v154
  %v498 = vunpack.c.l.b16 %v155
  %v499 = vpack.c.b16 %v428, %v427
  %v500 = vpack.c.b16 %v430, %v429
  %v501 = vpack.c.b16 %v432, %v431
  %v502 = vpack.c.b16 %v434, %v433
  %v503 = vpack.c.b16 %v436, %v435
  %v504 = vpack.c.b16 %v438, %v437
  %v505 = vpack.c.b16 %v440, %v439
  %v506 = vpack.c.b16 %v442, %v441
  %v507 = vpack.c.b16 %v444, %v443
  %v508 = vpack.c.b16 %v446, %v445
  %v509 = vpack.c.b16 %v448, %v447
  %v510 = vpack.c.b16 %v450, %v449
  %v511 = vpack.c.b16 %v452, %v451
  %v512 = vpack.c.b16 %v454, %v453
  %v513 = vpack.c.b16 %v456, %v455
  %v514 = vpack.c.b16 %v458, %v457
  %v515 = vpack.c.b16 %v460, %v459
  %v516 = vpack.c.b16 %v462, %v461
  %v517 = vpack.c.b16 %v464, %v463
  %v518 = vpack.c.b16 %v466, %v465
  %v519 = vpack.c.b16 %v468, %v467
  %v520 = vpack.c.b16 %v470, %v469
  %v521 = vpack.c.b16 %v472, %v471
  %v522 = vpack.c.b16 %v474, %v473
  %v523 = vpack.c.b16 %v476, %v475
  %v524 = vpack.c.b16 %v478, %v477
  %v525 = vpack.c.b16 %v480, %v479
  %v526 = vpack.c.b16 %v482, %v481
  %v527 = vpack.c.b16 %v484, %v483
  %v528 = vpack.c.b16 %v486, %v485
  %v529 = vpack.c.b16 %v488, %v487
  %v530 = vpack.c.b16 %v490, %v489
  %v531 = vpack.c.b16 %v492, %v491
  %v532 = vpack.c.b16 %v494, %v493
  %v533 = vpack.c.b16 %v496, %v495
  %v534 = vpack.c.b16 %v498, %v497
  %v572 = vsel %vm322, %v343, 0
  %v575 = vsel %vm322, %v348, 0
  %577 = vmatprep.subr.bf16.mxu0 0
  %578 = vmatpush1.bf16.msra.mxu0 %v506
  %579 = vmatprep.subr.bf16.mxu0 0
  %580 = vmatpush1.bf16.msra.mxu0 %v505
  %581 = vmatprep.subr.bf16.mxu0 0
  %582 = vmatpush1.bf16.msra.mxu0 %v504
  %583 = vmatprep.subr.bf16.mxu0 0
  %584 = vmatpush1.bf16.msra.mxu0 %v503
  %585 = vmatprep.subr.bf16.mxu0 0
  %586 = vmatpush1.bf16.msra.mxu0 %v502
  %587 = vmatprep.subr.bf16.mxu0 0
  %588 = vmatpush1.bf16.msra.mxu0 %v501
  %589 = vmatprep.subr.bf16.mxu0 0
  %590 = vmatpush1.bf16.msra.mxu0 %v500
  %591 = vmatprep.subr.bf16.mxu0 0
  %592 = vmatpush1.bf16.msra.mxu0 %v499
  %593 = vmatprep.subr.bf16.mxu0 0
  %594 = vmatpush2.bf16.msra.mxu0 %v514
  %595 = vmatprep.subr.bf16.mxu0 0
  %596 = vmatpush2.bf16.msra.mxu0 %v513
  %597 = vmatprep.subr.bf16.mxu0 0
  %598 = vmatpush2.bf16.msra.mxu0 %v512
  %599 = vmatprep.subr.bf16.mxu0 0
  %600 = vmatpush2.bf16.msra.mxu0 %v511
  %601 = vmatprep.subr.bf16.mxu0 0
  %602 = vmatpush2.bf16.msra.mxu0 %v510
  %603 = vmatprep.subr.bf16.mxu0 0
  %604 = vmatpush2.bf16.msra.mxu0 %v509
  %605 = vmatprep.subr.bf16.mxu0 0
  %606 = vmatpush2.bf16.msra.mxu0 %v508
  %607 = vmatprep.subr.bf16.mxu0 0
  %608 = vmatpush2.bf16.msra.mxu0 %v507
  %609 = vmatprep.mubr.bf16.mxu0 %v340
  %610 = vmatmul.mubr.bf16.gmra.mxu0 %v339
  %v611 = vpop.f32.mrf.mxu0
  %v612 = vadd.f32 %v353, %v611
  %v613 = vpop.f32.mrf.mxu0
  %v614 = vpop.f32.mrf.mxu0
  %v615 = vadd.f32 %v353, %v614
  %v616 = vpop.f32.mrf.mxu0
  %617 = vmatprep.mubr.bf16.mxu0 %v345
  %618 = vmatmul.mubr.bf16.gmra.mxu0 %v344
  %v619 = vpop.f32.mrf.mxu0
  %v620 = vadd.f32 %v353, %v619
  %v621 = vpop.f32.mrf.mxu0
  %v622 = vpop.f32.mrf.mxu0
  %v623 = vadd.f32 %v353, %v622
  %v624 = vpop.f32.mrf.mxu0
  %625 = vdwg.mxu0
  %626 = vmatprep.subr.bf16.mxu0 0
  %627 = vmatpush1.bf16.msra.mxu0 %v522
  %628 = vmatprep.subr.bf16.mxu0 0
  %629 = vmatpush1.bf16.msra.mxu0 %v521
  %630 = vmatprep.subr.bf16.mxu0 0
  %631 = vmatpush1.bf16.msra.mxu0 %v520
  %632 = vmatprep.subr.bf16.mxu0 0
  %633 = vmatpush1.bf16.msra.mxu0 %v519
  %634 = vmatprep.subr.bf16.mxu0 0
  %635 = vmatpush1.bf16.msra.mxu0 %v518
  %636 = vmatprep.subr.bf16.mxu0 0
  %637 = vmatpush1.bf16.msra.mxu0 %v517
  %638 = vmatprep.subr.bf16.mxu0 0
  %639 = vmatpush1.bf16.msra.mxu0 %v516
  %640 = vmatprep.subr.bf16.mxu0 0
  %641 = vmatpush1.bf16.msra.mxu0 %v515
  %642 = vmatprep.subr.bf16.mxu0 0
  %643 = vmatpush2.bf16.msra.mxu0 %v530
  %644 = vmatprep.subr.bf16.mxu0 0
  %645 = vmatpush2.bf16.msra.mxu0 %v529
  %646 = vmatprep.subr.bf16.mxu0 0
  %647 = vmatpush2.bf16.msra.mxu0 %v528
  %648 = vmatprep.subr.bf16.mxu0 0
  %649 = vmatpush2.bf16.msra.mxu0 %v527
  %650 = vmatprep.subr.bf16.mxu0 0
  %651 = vmatpush2.bf16.msra.mxu0 %v526
  %652 = vmatprep.subr.bf16.mxu0 0
  %653 = vmatpush2.bf16.msra.mxu0 %v525
  %654 = vmatprep.subr.bf16.mxu0 0
  %655 = vmatpush2.bf16.msra.mxu0 %v524
  %656 = vmatprep.subr.bf16.mxu0 0
  %657 = vmatpush2.bf16.msra.mxu0 %v523
  %658 = vmatprep.mubr.bf16.mxu0 %v342
  %659 = vmatmul.mubr.bf16.gmra.mxu0 %v341
  %v660 = vpop.f32.mrf.mxu0
  %v661 = vadd.f32 %v612, %v660
  %v662 = vpop.f32.mrf.mxu0
  %v663 = vpop.f32.mrf.mxu0
  %v664 = vadd.f32 %v615, %v663
  %v665 = vpop.f32.mrf.mxu0
  %666 = vmatprep.mubr.bf16.mxu0 %v347
  %667 = vmatmul.mubr.bf16.gmra.mxu0 %v346
  %v668 = vpop.f32.mrf.mxu0
  %v669 = vadd.f32 %v620, %v668
  %v670 = vpop.f32.mrf.mxu0
  %v671 = vpop.f32.mrf.mxu0
  %v672 = vadd.f32 %v623, %v671
  %v673 = vpop.f32.mrf.mxu0
  %674 = vdwg.mxu0
  %675 = vmatprep.subr.bf16.mxu0 0
  %676 = vmatpush1.bf16.msra.mxu0 0
  %677 = vmatprep.subr.bf16.mxu0 0
  %678 = vmatpush1.bf16.msra.mxu0 0
  %679 = vmatprep.subr.bf16.mxu0 0
  %680 = vmatpush1.bf16.msra.mxu0 0
  %681 = vmatprep.subr.bf16.mxu0 0
  %682 = vmatpush1.bf16.msra.mxu0 0
  %683 = vmatprep.subr.bf16.mxu0 0
  %684 = vmatpush1.bf16.msra.mxu0 %v534
  %685 = vmatprep.subr.bf16.mxu0 0
  %686 = vmatpush1.bf16.msra.mxu0 %v533
  %687 = vmatprep.subr.bf16.mxu0 0
  %688 = vmatpush1.bf16.msra.mxu0 %v532
  %689 = vmatprep.subr.bf16.mxu0 0
  %690 = vmatpush1.bf16.msra.mxu0 %v531
  %691 = vmatprep.subr.bf16.mxu0 0
  %692 = vmatpush2.bf16.msra.mxu0 0
  %693 = vmatprep.subr.bf16.mxu0 0
  %694 = vmatpush2.bf16.msra.mxu0 0
  %695 = vmatprep.subr.bf16.mxu0 0
  %696 = vmatpush2.bf16.msra.mxu0 0
  %697 = vmatprep.subr.bf16.mxu0 0
  %698 = vmatpush2.bf16.msra.mxu0 0
  %699 = vmatprep.subr.bf16.mxu0 0
  %700 = vmatpush2.bf16.msra.mxu0 0
  %701 = vmatprep.subr.bf16.mxu0 0
  %702 = vmatpush2.bf16.msra.mxu0 0
  %703 = vmatprep.subr.bf16.mxu0 0
  %704 = vmatpush2.bf16.msra.mxu0 0
  %705 = vmatprep.subr.bf16.mxu0 0
  %706 = vmatpush2.bf16.msra.mxu0 0
  %707 = vmatprep.mubr.bf16.mxu0 0
  %708 = vmatmul.mubr.bf16.gmra.mxu0 %v572
  %v709 = vpop.f32.mrf.mxu0
  %v710 = vadd.f32 %v661, %v709
  %v711 = vpop.f32.mrf.mxu0
  %v712 = vpop.f32.mrf.mxu0
  %v713 = vadd.f32 %v664, %v712
  %v714 = vpop.f32.mrf.mxu0
  %715 = vmatprep.mubr.bf16.mxu0 0
  %716 = vmatmul.mubr.bf16.gmra.mxu0 %v575
  %v717 = vpop.f32.mrf.mxu0
  %v718 = vadd.f32 %v669, %v717
  %v719 = vpop.f32.mrf.mxu0
  %v720 = vpop.f32.mrf.mxu0
  %v721 = vadd.f32 %v672, %v720
  %v722 = vpop.f32.mrf.mxu0
  %723 = vdwg.mxu0
  %v724 = vmax.f32 %v710, 0.0
  %v725 = vmax.f32 %v713, 0.0
  %v726 = vmax.f32 %v718, 0.0
  %v727 = vmax.f32 %v721, 0.0
  %v728 = vld [vmem:[%s4] sm:$0xf]
  %v729 = vld [vmem:[%s4 + $0x4] sm:$0xf]
  %v730 = vld [vmem:[%s4 + $0x8] sm:$0xf]
  %v731 = vld [vmem:[%s4 + $0xc] sm:$0xf]
  %v732 = vld [vmem:[%s4 + $0x10] sm:$0xf]
  %v733 = vld [vmem:[%s4 + $0x14] sm:$0xf]
  %v734 = vld [vmem:[%s4 + $0x18] sm:$0xf]
  %v735 = vld [vmem:[%s4 + $0x1c] sm:$0xf]
  %v736 = vld [vmem:[%s4 + $0x20] sm:$0xf]
  %v737 = vld [vmem:[%s4 + $0x24] sm:$0xf]
  %v738 = vld [vmem:[%s4 + $0x28] sm:$0xf]
  %v739 = vld [vmem:[%s4 + $0x2c] sm:$0xf]
  %v740 = vld [vmem:[%s4 + $0x30] sm:$0xf]
  %v741 = vld [vmem:[%s4 + $0x34] sm:$0xf]
  %v742 = vld [vmem:[%s4 + $0x38] sm:$0xf]
  %v743 = vld [vmem:[%s4 + $0x3c] sm:$0xf]
  %v744 = vld [vmem:[%s4 + $0x40] sm:$0xf]
  %v745 = vld [vmem:[%s4 + $0x44] sm:$0xf]
  %v746 = vld [vmem:[%s4 + $0x48] sm:$0xf]
  %v747 = vld [vmem:[%s4 + $0x4c] sm:$0xf]
  %v748 = vld [vmem:[%s4 + $0x50] sm:$0xf]
  %v749 = vld [vmem:[%s4 + $0x54] sm:$0xf]
  %v750 = vld [vmem:[%s4 + $0x58] sm:$0xf]
  %v751 = vld [vmem:[%s4 + $0x5c] sm:$0xf]
  %v752 = vld [vmem:[%s4 + $0x60] sm:$0xf]
  %v753 = vld [vmem:[%s4 + $0x64] sm:$0xf]
  %v754 = vld [vmem:[%s4 + $0x68] sm:$0xf]
  %v755 = vld [vmem:[%s4 + $0x6c] sm:$0xf]
  %v756 = vld [vmem:[%s4 + $0x70] sm:$0xf]
  %v757 = vld [vmem:[%s4 + $0x74] sm:$0xf]
  %v758 = vld [vmem:[%s4 + $0x78] sm:$0xf]
  %v759 = vld [vmem:[%s4 + $0x7c] sm:$0xf]
  %v760 = vld [vmem:[%s4 + $0x80] sm:$0xf]
  %v761 = vld [vmem:[%s4 + $0x84] sm:$0xf]
  %v762 = vld [vmem:[%s4 + $0x88] sm:$0xf]
  %v763 = vld [vmem:[%s4 + $0x8c] sm:$0xf]
  %v764 = vld [vmem:[%s4 + $0x90] sm:$0xf]
  %v765 = vld [vmem:[%s4 + $0x94] sm:$0xf]
  %v766 = vld [vmem:[%s4 + $0x98] sm:$0xf]
  %v767 = vld [vmem:[%s4 + $0x9c] sm:$0xf]
  %v768 = vld [vmem:[%s4 + $0xa0] sm:$0xf]
  %v769 = vld [vmem:[%s4 + $0xa4] sm:$0xf]
  %v770 = vld [vmem:[%s4 + $0xa8] sm:$0xf]
  %v771 = vld [vmem:[%s4 + $0xac] sm:$0xf]
  %v772 = vld [vmem:[%s4 + $0xb0] sm:$0xf]
  %v773 = vld [vmem:[%s4 + $0xb4] sm:$0xf]
  %v774 = vld [vmem:[%s4 + $0xb8] sm:$0xf]
  %v775 = vld [vmem:[%s4 + $0xbc] sm:$0xf]
  %v776 = vld [vmem:[%s4 + $0xc0] sm:$0xf]
  %v777 = vld [vmem:[%s4 + $0xc4] sm:$0xf]
  %v778 = vld [vmem:[%s4 + $0xc8] sm:$0xf]
  %v779 = vld [vmem:[%s4 + $0xcc] sm:$0xf]
  %v780 = vld [vmem:[%s4 + $0xd0] sm:$0xf]
  %v781 = vld [vmem:[%s4 + $0xd4] sm:$0xf]
  %v782 = vld [vmem:[%s4 + $0xd8] sm:$0xf]
  %v783 = vld [vmem:[%s4 + $0xdc] sm:$0xf]
  %v784 = vld [vmem:[%s4 + $0xe0] sm:$0xf]
  %v785 = vld [vmem:[%s4 + $0xe4] sm:$0xf]
  %v786 = vld [vmem:[%s4 + $0xe8] sm:$0xf]
  %v787 = vld [vmem:[%s4 + $0xec] sm:$0xf]
  %v788 = vld [vmem:[%s4 + $0xf0] sm:$0xf]
  %v789 = vld [vmem:[%s4 + $0xf4] sm:$0xf]
  %v790 = vld [vmem:[%s4 + $0xf8] sm:$0xf]
  %v791 = vld [vmem:[%s4 + $0xfc] sm:$0xf]
  %v792 = vld [vmem:[%s4 + $0x100] sm:$0xf]
  %v793 = vld [vmem:[%s4 + $0x104] sm:$0xf]
  %v794 = vld [vmem:[%s4 + $0x108] sm:$0xf]
  %v795 = vld [vmem:[%s4 + $0x10c] sm:$0xf]
  %v796 = vld [vmem:[%s4 + $0x110] sm:$0xf]
  %v797 = vld [vmem:[%s4 + $0x114] sm:$0xf]
  %v798 = vld [vmem:[%s4 + $0x118] sm:$0xf]
  %v799 = vld [vmem:[%s4 + $0x11c] sm:$0xf]
  %v800 = vld [vmem:[%s5] sm:$0x1]
  %v801 = vrot.slane %v724, 4
  %v802 = vrot.slane %v725, 4
  %v803 = vrot.slane %v726, 4
  %v804 = vrot.slane %v727, 4
  %v805 = vsel %vm163, %v803, %v804
  %v806 = vsel %vm163, %v802, %v803
  %v807 = vsel %vm163, %v801, %v802
  %v808 = vsel %vm163, %v804, %v801
  %v809 = vmul.f32 %v808, %v36
  %v810 = vmul.f32 %v807, %v37
  %v811 = vmul.f32 %v806, %v38
  %v812 = vmul.f32 %v805, %v39
  %v813 = vrot.slane %v724, 5
  %v814 = vrot.slane %v725, 5
  %v815 = vrot.slane %v726, 5
  %v816 = vrot.slane %v727, 5
  %v817 = vsel %vm176, %v815, %v816
  %v818 = vsel %vm176, %v814, %v815
  %v819 = vsel %vm176, %v813, %v814
  %v820 = vsel %vm176, %v816, %v813
  %v821 = vmul.f32 %v820, %v41
  %v822 = vmul.f32 %v819, %v42
  %v823 = vmul.f32 %v818, %v43
  %v824 = vmul.f32 %v817, %v44
  %v825 = vrot.slane %v724, 6
  %v826 = vrot.slane %v725, 6
  %v827 = vrot.slane %v726, 6
  %v828 = vrot.slane %v727, 6
  %v829 = vsel %vm189, %v827, %v828
  %v830 = vsel %vm189, %v826, %v827
  %v831 = vsel %vm189, %v825, %v826
  %v832 = vsel %vm189, %v828, %v825
  %v833 = vmul.f32 %v832, %v46
  %v834 = vmul.f32 %v831, %v47
  %v835 = vmul.f32 %v830, %v48
  %v836 = vmul.f32 %v829, %v49
  %v837 = vrot.slane %v724, 7
  %v838 = vrot.slane %v725, 7
  %v839 = vrot.slane %v726, 7
  %v840 = vrot.slane %v727, 7
  %v841 = vsel %vm202, %v839, %v840
  %v842 = vsel %vm202, %v838, %v839
  %v843 = vsel %vm202, %v837, %v838
  %v844 = vsel %vm202, %v840, %v837
  %v845 = vmul.f32 %v844, %v51
  %v846 = vmul.f32 %v843, %v52
  %v847 = vmul.f32 %v842, %v53
  %v848 = vmul.f32 %v841, %v54
  %v849 = vmul.f32 %v724, %v56
  %v850 = vmul.f32 %v725, %v57
  %v851 = vmul.f32 %v726, %v58
  %v852 = vmul.f32 %v727, %v59
  %v853 = vrot.slane %v724, 1
  %v854 = vrot.slane %v725, 1
  %v855 = vrot.slane %v726, 1
  %v856 = vrot.slane %v727, 1
  %v857 = vsel %vm219, %v855, %v856
  %v858 = vsel %vm219, %v854, %v855
  %v859 = vsel %vm219, %v853, %v854
  %v860 = vsel %vm219, %v856, %v853
  %v861 = vmul.f32 %v859, %v61
  %v862 = vmul.f32 %v858, %v62
  %v863 = vmul.f32 %v857, %v63
  %v864 = vmul.f32 %v860, %v64
  %v865 = vrot.slane %v724, 2
  %v866 = vrot.slane %v725, 2
  %v867 = vrot.slane %v726, 2
  %v868 = vrot.slane %v727, 2
  %v869 = vsel %vm232, %v867, %v868
  %v870 = vsel %vm232, %v866, %v867
  %v871 = vsel %vm232, %v865, %v866
  %v872 = vsel %vm232, %v868, %v865
  %v873 = vmul.f32 %v871, %v66
  %v874 = vmul.f32 %v870, %v67
  %v875 = vmul.f32 %v869, %v68
  %v876 = vmul.f32 %v872, %v69
  %v877 = vrot.slane %v724, 3
  %v878 = vrot.slane %v725, 3
  %v879 = vrot.slane %v726, 3
  %v880 = vrot.slane %v727, 3
  %v881 = vsel %vm245, %v879, %v880
  %v882 = vsel %vm245, %v878, %v879
  %v883 = vsel %vm245, %v877, %v878
  %v884 = vsel %vm245, %v880, %v877
  %v885 = vmul.f32 %v883, %v71
  %v886 = vmul.f32 %v882, %v72
  %v887 = vmul.f32 %v881, %v73
  %v888 = vmul.f32 %v884, %v74
  %v889 = vmul.f32 %v807, %v76
  %v890 = vmul.f32 %v806, %v77
  %v891 = vmul.f32 %v805, %v78
  %v892 = vmul.f32 %v808, %v79
  %897 = vrot.lane.b32.xlu0 %v821, 64
  %v898 = vpop.permute.xlu0 %897
  %899 = vrot.lane.b32.xlu0 %v822, 64
  %v900 = vpop.permute.xlu0 %899
  %901 = vrot.lane.b32.xlu0 %v823, 64
  %v902 = vpop.permute.xlu0 %901
  %903 = vrot.lane.b32.xlu0 %v824, 64
  %v904 = vpop.permute.xlu0 %903
  %913 = vrot.lane.b32.xlu0 %v845, 64
  %v914 = vpop.permute.xlu0 %913
  %915 = vrot.lane.b32.xlu0 %v846, 64
  %v916 = vpop.permute.xlu0 %915
  %917 = vrot.lane.b32.xlu0 %v847, 64
  %v918 = vpop.permute.xlu0 %917
  %919 = vrot.lane.b32.xlu0 %v848, 64
  %v920 = vpop.permute.xlu0 %919
  %929 = vrot.lane.b32.xlu0 %v861, 64
  %v930 = vpop.permute.xlu0 %929
  %931 = vrot.lane.b32.xlu0 %v862, 64
  %v932 = vpop.permute.xlu0 %931
  %933 = vrot.lane.b32.xlu0 %v863, 64
  %v934 = vpop.permute.xlu0 %933
  %935 = vrot.lane.b32.xlu0 %v864, 64
  %v936 = vpop.permute.xlu0 %935
  %945 = vrot.lane.b32.xlu0 %v885, 64
  %v946 = vpop.permute.xlu0 %945
  %947 = vrot.lane.b32.xlu0 %v886, 64
  %v948 = vpop.permute.xlu0 %947
  %949 = vrot.lane.b32.xlu0 %v887, 64
  %v950 = vpop.permute.xlu0 %949
  %951 = vrot.lane.b32.xlu0 %v888, 64
  %v952 = vpop.permute.xlu0 %951
  %v957 = vsel %vm322, %v809, %v898
  %v958 = vsel %vm322, %v810, %v900
  %v959 = vsel %vm322, %v811, %v902
  %v960 = vsel %vm322, %v812, %v904
  %v961 = vsel %vm322, %v833, %v914
  %v962 = vsel %vm322, %v834, %v916
  %v963 = vsel %vm322, %v835, %v918
  %v964 = vsel %vm322, %v836, %v920
  %v965 = vsel %vm322, %v849, %v930
  %v966 = vsel %vm322, %v850, %v932
  %v967 = vsel %vm322, %v851, %v934
  %v968 = vsel %vm322, %v852, %v936
  %v969 = vsel %vm322, %v873, %v946
  %v970 = vsel %vm322, %v874, %v948
  %v971 = vsel %vm322, %v875, %v950
  %v972 = vsel %vm322, %v876, %v952
  %v973 = vpack.c.bf16 %v958, %v957
  %v974 = vpack.c.bf16 %v962, %v961
  %v975 = vpack.c.bf16 %v966, %v965
  %v976 = vpack.c.bf16 %v970, %v969
  %v977 = vpack.c.bf16 %v890, %v889
  %v978 = vpack.c.bf16 %v960, %v959
  %v979 = vpack.c.bf16 %v964, %v963
  %v980 = vpack.c.bf16 %v968, %v967
  %v981 = vpack.c.bf16 %v972, %v971
  %v982 = vpack.c.bf16 %v892, %v891
  %v984 = vlaneseq
  %v985 = vshrl.u32 %v984, 7
  %v986 = vsub.s32 0, %v985
  %v987 = vrot.slane %v800, %v986
  %v1061 = vunpack.c.l.b16 %v728
  %v1062 = vunpack.c.l.b16 %v729
  %v1063 = vunpack.c.l.b16 %v730
  %v1064 = vunpack.c.l.b16 %v731
  %v1065 = vunpack.c.l.b16 %v732
  %v1066 = vunpack.c.l.b16 %v733
  %v1067 = vunpack.c.l.b16 %v734
  %v1068 = vunpack.c.l.b16 %v735
  %v1069 = vunpack.c.l.b16 %v736
  %v1070 = vunpack.c.l.b16 %v737
  %v1071 = vunpack.c.l.b16 %v738
  %v1072 = vunpack.c.l.b16 %v739
  %v1073 = vunpack.c.l.b16 %v740
  %v1074 = vunpack.c.l.b16 %v741
  %v1075 = vunpack.c.l.b16 %v742
  %v1076 = vunpack.c.l.b16 %v743
  %v1077 = vunpack.c.l.b16 %v744
  %v1078 = vunpack.c.l.b16 %v745
  %v1079 = vunpack.c.l.b16 %v746
  %v1080 = vunpack.c.l.b16 %v747
  %v1081 = vunpack.c.l.b16 %v748
  %v1082 = vunpack.c.l.b16 %v749
  %v1083 = vunpack.c.l.b16 %v750
  %v1084 = vunpack.c.l.b16 %v751
  %v1085 = vunpack.c.l.b16 %v752
  %v1086 = vunpack.c.l.b16 %v753
  %v1087 = vunpack.c.l.b16 %v754
  %v1088 = vunpack.c.l.b16 %v755
  %v1089 = vunpack.c.l.b16 %v756
  %v1090 = vunpack.c.l.b16 %v757
  %v1091 = vunpack.c.l.b16 %v758
  %v1092 = vunpack.c.l.b16 %v759
  %v1093 = vunpack.c.l.b16 %v760
  %v1094 = vunpack.c.l.b16 %v761
  %v1095 = vunpack.c.l.b16 %v762
  %v1096 = vunpack.c.l.b16 %v763
  %v1097 = vunpack.c.l.b16 %v764
  %v1098 = vunpack.c.l.b16 %v765
  %v1099 = vunpack.c.l.b16 %v766
  %v1100 = vunpack.c.l.b16 %v767
  %v1101 = vunpack.c.l.b16 %v768
  %v1102 = vunpack.c.l.b16 %v769
  %v1103 = vunpack.c.l.b16 %v770
  %v1104 = vunpack.c.l.b16 %v771
  %v1105 = vunpack.c.l.b16 %v772
  %v1106 = vunpack.c.l.b16 %v773
  %v1107 = vunpack.c.l.b16 %v774
  %v1108 = vunpack.c.l.b16 %v775
  %v1109 = vunpack.c.l.b16 %v776
  %v1110 = vunpack.c.l.b16 %v777
  %v1111 = vunpack.c.l.b16 %v778
  %v1112 = vunpack.c.l.b16 %v779
  %v1113 = vunpack.c.l.b16 %v780
  %v1114 = vunpack.c.l.b16 %v781
  %v1115 = vunpack.c.l.b16 %v782
  %v1116 = vunpack.c.l.b16 %v783
  %v1117 = vunpack.c.l.b16 %v784
  %v1118 = vunpack.c.l.b16 %v785
  %v1119 = vunpack.c.l.b16 %v786
  %v1120 = vunpack.c.l.b16 %v787
  %v1121 = vunpack.c.l.b16 %v788
  %v1122 = vunpack.c.l.b16 %v789
  %v1123 = vunpack.c.l.b16 %v790
  %v1124 = vunpack.c.l.b16 %v791
  %v1125 = vunpack.c.l.b16 %v792
  %v1126 = vunpack.c.l.b16 %v793
  %v1127 = vunpack.c.l.b16 %v794
  %v1128 = vunpack.c.l.b16 %v795
  %v1129 = vunpack.c.l.b16 %v796
  %v1130 = vunpack.c.l.b16 %v797
  %v1131 = vunpack.c.l.b16 %v798
  %v1132 = vunpack.c.l.b16 %v799
  %v1133 = vpack.c.b16 %v1062, %v1061
  %v1134 = vpack.c.b16 %v1064, %v1063
  %v1135 = vpack.c.b16 %v1066, %v1065
  %v1136 = vpack.c.b16 %v1068, %v1067
  %v1137 = vpack.c.b16 %v1070, %v1069
  %v1138 = vpack.c.b16 %v1072, %v1071
  %v1139 = vpack.c.b16 %v1074, %v1073
  %v1140 = vpack.c.b16 %v1076, %v1075
  %v1141 = vpack.c.b16 %v1078, %v1077
  %v1142 = vpack.c.b16 %v1080, %v1079
  %v1143 = vpack.c.b16 %v1082, %v1081
  %v1144 = vpack.c.b16 %v1084, %v1083
  %v1145 = vpack.c.b16 %v1086, %v1085
  %v1146 = vpack.c.b16 %v1088, %v1087
  %v1147 = vpack.c.b16 %v1090, %v1089
  %v1148 = vpack.c.b16 %v1092, %v1091
  %v1149 = vpack.c.b16 %v1094, %v1093
  %v1150 = vpack.c.b16 %v1096, %v1095
  %v1151 = vpack.c.b16 %v1098, %v1097
  %v1152 = vpack.c.b16 %v1100, %v1099
  %v1153 = vpack.c.b16 %v1102, %v1101
  %v1154 = vpack.c.b16 %v1104, %v1103
  %v1155 = vpack.c.b16 %v1106, %v1105
  %v1156 = vpack.c.b16 %v1108, %v1107
  %v1157 = vpack.c.b16 %v1110, %v1109
  %v1158 = vpack.c.b16 %v1112, %v1111
  %v1159 = vpack.c.b16 %v1114, %v1113
  %v1160 = vpack.c.b16 %v1116, %v1115
  %v1161 = vpack.c.b16 %v1118, %v1117
  %v1162 = vpack.c.b16 %v1120, %v1119
  %v1163 = vpack.c.b16 %v1122, %v1121
  %v1164 = vpack.c.b16 %v1124, %v1123
  %v1165 = vpack.c.b16 %v1126, %v1125
  %v1166 = vpack.c.b16 %v1128, %v1127
  %v1167 = vpack.c.b16 %v1130, %v1129
  %v1168 = vpack.c.b16 %v1132, %v1131
  %v1206 = vsel %vm322, %v977, 0
  %v1209 = vsel %vm322, %v982, 0
  %1211 = vmatprep.subr.bf16.mxu0 0
  %1212 = vmatpush1.bf16.msra.mxu0 %v1140
  %1213 = vmatprep.subr.bf16.mxu0 0
  %1214 = vmatpush1.bf16.msra.mxu0 %v1139
  %1215 = vmatprep.subr.bf16.mxu0 0
  %1216 = vmatpush1.bf16.msra.mxu0 %v1138
  %1217 = vmatprep.subr.bf16.mxu0 0
  %1218 = vmatpush1.bf16.msra.mxu0 %v1137
  %1219 = vmatprep.subr.bf16.mxu0 0
  %1220 = vmatpush1.bf16.msra.mxu0 %v1136
  %1221 = vmatprep.subr.bf16.mxu0 0
  %1222 = vmatpush1.bf16.msra.mxu0 %v1135
  %1223 = vmatprep.subr.bf16.mxu0 0
  %1224 = vmatpush1.bf16.msra.mxu0 %v1134
  %1225 = vmatprep.subr.bf16.mxu0 0
  %1226 = vmatpush1.bf16.msra.mxu0 %v1133
  %1227 = vmatprep.subr.bf16.mxu0 0
  %1228 = vmatpush2.bf16.msra.mxu0 %v1148
  %1229 = vmatprep.subr.bf16.mxu0 0
  %1230 = vmatpush2.bf16.msra.mxu0 %v1147
  %1231 = vmatprep.subr.bf16.mxu0 0
  %1232 = vmatpush2.bf16.msra.mxu0 %v1146
  %1233 = vmatprep.subr.bf16.mxu0 0
  %1234 = vmatpush2.bf16.msra.mxu0 %v1145
  %1235 = vmatprep.subr.bf16.mxu0 0
  %1236 = vmatpush2.bf16.msra.mxu0 %v1144
  %1237 = vmatprep.subr.bf16.mxu0 0
  %1238 = vmatpush2.bf16.msra.mxu0 %v1143
  %1239 = vmatprep.subr.bf16.mxu0 0
  %1240 = vmatpush2.bf16.msra.mxu0 %v1142
  %1241 = vmatprep.subr.bf16.mxu0 0
  %1242 = vmatpush2.bf16.msra.mxu0 %v1141
  %1243 = vmatprep.mubr.bf16.mxu0 %v974
  %1244 = vmatmul.mubr.bf16.gmra.mxu0 %v973
  %v1245 = vpop.f32.mrf.mxu0
  %v1246 = vadd.f32 %v987, %v1245
  %v1247 = vpop.f32.mrf.mxu0
  %v1248 = vpop.f32.mrf.mxu0
  %v1249 = vadd.f32 %v987, %v1248
  %v1250 = vpop.f32.mrf.mxu0
  %1251 = vmatprep.mubr.bf16.mxu0 %v979
  %1252 = vmatmul.mubr.bf16.gmra.mxu0 %v978
  %v1253 = vpop.f32.mrf.mxu0
  %v1254 = vadd.f32 %v987, %v1253
  %v1255 = vpop.f32.mrf.mxu0
  %v1256 = vpop.f32.mrf.mxu0
  %v1257 = vadd.f32 %v987, %v1256
  %v1258 = vpop.f32.mrf.mxu0
  %1259 = vdwg.mxu0
  %1260 = vmatprep.subr.bf16.mxu0 0
  %1261 = vmatpush1.bf16.msra.mxu0 %v1156
  %1262 = vmatprep.subr.bf16.mxu0 0
  %1263 = vmatpush1.bf16.msra.mxu0 %v1155
  %1264 = vmatprep.subr.bf16.mxu0 0
  %1265 = vmatpush1.bf16.msra.mxu0 %v1154
  %1266 = vmatprep.subr.bf16.mxu0 0
  %1267 = vmatpush1.bf16.msra.mxu0 %v1153
  %1268 = vmatprep.subr.bf16.mxu0 0
  %1269 = vmatpush1.bf16.msra.mxu0 %v1152
  %1270 = vmatprep.subr.bf16.mxu0 0
  %1271 = vmatpush1.bf16.msra.mxu0 %v1151
  %1272 = vmatprep.subr.bf16.mxu0 0
  %1273 = vmatpush1.bf16.msra.mxu0 %v1150
  %1274 = vmatprep.subr.bf16.mxu0 0
  %1275 = vmatpush1.bf16.msra.mxu0 %v1149
  %1276 = vmatprep.subr.bf16.mxu0 0
  %1277 = vmatpush2.bf16.msra.mxu0 %v1164
  %1278 = vmatprep.subr.bf16.mxu0 0
  %1279 = vmatpush2.bf16.msra.mxu0 %v1163
  %1280 = vmatprep.subr.bf16.mxu0 0
  %1281 = vmatpush2.bf16.msra.mxu0 %v1162
  %1282 = vmatprep.subr.bf16.mxu0 0
  %1283 = vmatpush2.bf16.msra.mxu0 %v1161
  %1284 = vmatprep.subr.bf16.mxu0 0
  %1285 = vmatpush2.bf16.msra.mxu0 %v1160
  %1286 = vmatprep.subr.bf16.mxu0 0
  %1287 = vmatpush2.bf16.msra.mxu0 %v1159
  %1288 = vmatprep.subr.bf16.mxu0 0
  %1289 = vmatpush2.bf16.msra.mxu0 %v1158
  %1290 = vmatprep.subr.bf16.mxu0 0
  %1291 = vmatpush2.bf16.msra.mxu0 %v1157
  %1292 = vmatprep.mubr.bf16.mxu0 %v976
  %1293 = vmatmul.mubr.bf16.gmra.mxu0 %v975
  %v1294 = vpop.f32.mrf.mxu0
  %v1295 = vadd.f32 %v1246, %v1294
  %v1296 = vpop.f32.mrf.mxu0
  %v1297 = vpop.f32.mrf.mxu0
  %v1298 = vadd.f32 %v1249, %v1297
  %v1299 = vpop.f32.mrf.mxu0
  %1300 = vmatprep.mubr.bf16.mxu0 %v981
  %1301 = vmatmul.mubr.bf16.gmra.mxu0 %v980
  %v1302 = vpop.f32.mrf.mxu0
  %v1303 = vadd.f32 %v1254, %v1302
  %v1304 = vpop.f32.mrf.mxu0
  %v1305 = vpop.f32.mrf.mxu0
  %v1306 = vadd.f32 %v1257, %v1305
  %v1307 = vpop.f32.mrf.mxu0
  %1308 = vdwg.mxu0
  %1309 = vmatprep.subr.bf16.mxu0 0
  %1310 = vmatpush1.bf16.msra.mxu0 0
  %1311 = vmatprep.subr.bf16.mxu0 0
  %1312 = vmatpush1.bf16.msra.mxu0 0
  %1313 = vmatprep.subr.bf16.mxu0 0
  %1314 = vmatpush1.bf16.msra.mxu0 0
  %1315 = vmatprep.subr.bf16.mxu0 0
  %1316 = vmatpush1.bf16.msra.mxu0 0
  %1317 = vmatprep.subr.bf16.mxu0 0
  %1318 = vmatpush1.bf16.msra.mxu0 %v1168
  %1319 = vmatprep.subr.bf16.mxu0 0
  %1320 = vmatpush1.bf16.msra.mxu0 %v1167
  %1321 = vmatprep.subr.bf16.mxu0 0
  %1322 = vmatpush1.bf16.msra.mxu0 %v1166
  %1323 = vmatprep.subr.bf16.mxu0 0
  %1324 = vmatpush1.bf16.msra.mxu0 %v1165
  %1325 = vmatprep.subr.bf16.mxu0 0
  %1326 = vmatpush2.bf16.msra.mxu0 0
  %1327 = vmatprep.subr.bf16.mxu0 0
  %1328 = vmatpush2.bf16.msra.mxu0 0
  %1329 = vmatprep.subr.bf16.mxu0 0
  %1330 = vmatpush2.bf16.msra.mxu0 0
  %1331 = vmatprep.subr.bf16.mxu0 0
  %1332 = vmatpush2.bf16.msra.mxu0 0
  %1333 = vmatprep.subr.bf16.mxu0 0
  %1334 = vmatpush2.bf16.msra.mxu0 0
  %1335 = vmatprep.subr.bf16.mxu0 0
  %1336 = vmatpush2.bf16.msra.mxu0 0
  %1337 = vmatprep.subr.bf16.mxu0 0
  %1338 = vmatpush2.bf16.msra.mxu0 0
  %1339 = vmatprep.subr.bf16.mxu0 0
  %1340 = vmatpush2.bf16.msra.mxu0 0
  %1341 = vmatprep.mubr.bf16.mxu0 0
  %1342 = vmatmul.mubr.bf16.gmra.mxu0 %v1206
  %v1343 = vpop.f32.mrf.mxu0
  %v1344 = vadd.f32 %v1295, %v1343
  %v1345 = vpop.f32.mrf.mxu0
  %v1346 = vpop.f32.mrf.mxu0
  %v1347 = vadd.f32 %v1298, %v1346
  %v1348 = vpop.f32.mrf.mxu0
  %1349 = vmatprep.mubr.bf16.mxu0 0
  %1350 = vmatmul.mubr.bf16.gmra.mxu0 %v1209
  %v1351 = vpop.f32.mrf.mxu0
  %v1352 = vadd.f32 %v1303, %v1351
  %v1353 = vpop.f32.mrf.mxu0
  %v1354 = vpop.f32.mrf.mxu0
  %v1355 = vadd.f32 %v1306, %v1354
  %v1356 = vpop.f32.mrf.mxu0
  %1357 = vdwg.mxu0
  %v1358 = vmax.f32 %v1344, 0.0
  %v1359 = vmax.f32 %v1347, 0.0
  %v1360 = vmax.f32 %v1352, 0.0
  %v1361 = vmax.f32 %v1355, 0.0
  %s1362 = scalar_lea.vmem %s4, 288
  %v1363 = vld [vmem:[%s1362] sm:$0xf]
  %v1364 = vld [vmem:[%s1362 + $0x4] sm:$0xf]
  %v1365 = vld [vmem:[%s1362 + $0x8] sm:$0xf]
  %v1366 = vld [vmem:[%s1362 + $0xc] sm:$0xf]
  %v1367 = vld [vmem:[%s1362 + $0x10] sm:$0xf]
  %v1368 = vld [vmem:[%s1362 + $0x14] sm:$0xf]
  %v1369 = vld [vmem:[%s1362 + $0x18] sm:$0xf]
  %v1370 = vld [vmem:[%s1362 + $0x1c] sm:$0xf]
  %v1371 = vld [vmem:[%s1362 + $0x20] sm:$0xf]
  %v1372 = vld [vmem:[%s1362 + $0x24] sm:$0xf]
  %v1373 = vld [vmem:[%s1362 + $0x28] sm:$0xf]
  %v1374 = vld [vmem:[%s1362 + $0x2c] sm:$0xf]
  %v1375 = vld [vmem:[%s1362 + $0x30] sm:$0xf]
  %v1376 = vld [vmem:[%s1362 + $0x34] sm:$0xf]
  %v1377 = vld [vmem:[%s1362 + $0x38] sm:$0xf]
  %v1378 = vld [vmem:[%s1362 + $0x3c] sm:$0xf]
  %v1379 = vld [vmem:[%s1362 + $0x40] sm:$0xf]
  %v1380 = vld [vmem:[%s1362 + $0x44] sm:$0xf]
  %v1381 = vld [vmem:[%s1362 + $0x48] sm:$0xf]
  %v1382 = vld [vmem:[%s1362 + $0x4c] sm:$0xf]
  %v1383 = vld [vmem:[%s1362 + $0x50] sm:$0xf]
  %v1384 = vld [vmem:[%s1362 + $0x54] sm:$0xf]
  %v1385 = vld [vmem:[%s1362 + $0x58] sm:$0xf]
  %v1386 = vld [vmem:[%s1362 + $0x5c] sm:$0xf]
  %v1387 = vld [vmem:[%s1362 + $0x60] sm:$0xf]
  %v1388 = vld [vmem:[%s1362 + $0x64] sm:$0xf]
  %v1389 = vld [vmem:[%s1362 + $0x68] sm:$0xf]
  %v1390 = vld [vmem:[%s1362 + $0x6c] sm:$0xf]
  %v1391 = vld [vmem:[%s1362 + $0x70] sm:$0xf]
  %v1392 = vld [vmem:[%s1362 + $0x74] sm:$0xf]
  %v1393 = vld [vmem:[%s1362 + $0x78] sm:$0xf]
  %v1394 = vld [vmem:[%s1362 + $0x7c] sm:$0xf]
  %v1395 = vld [vmem:[%s1362 + $0x80] sm:$0xf]
  %v1396 = vld [vmem:[%s1362 + $0x84] sm:$0xf]
  %v1397 = vld [vmem:[%s1362 + $0x88] sm:$0xf]
  %v1398 = vld [vmem:[%s1362 + $0x8c] sm:$0xf]
  %v1399 = vld [vmem:[%s1362 + $0x90] sm:$0xf]
  %v1400 = vld [vmem:[%s1362 + $0x94] sm:$0xf]
  %v1401 = vld [vmem:[%s1362 + $0x98] sm:$0xf]
  %v1402 = vld [vmem:[%s1362 + $0x9c] sm:$0xf]
  %v1403 = vld [vmem:[%s1362 + $0xa0] sm:$0xf]
  %v1404 = vld [vmem:[%s1362 + $0xa4] sm:$0xf]
  %v1405 = vld [vmem:[%s1362 + $0xa8] sm:$0xf]
  %v1406 = vld [vmem:[%s1362 + $0xac] sm:$0xf]
  %v1407 = vld [vmem:[%s1362 + $0xb0] sm:$0xf]
  %v1408 = vld [vmem:[%s1362 + $0xb4] sm:$0xf]
  %v1409 = vld [vmem:[%s1362 + $0xb8] sm:$0xf]
  %v1410 = vld [vmem:[%s1362 + $0xbc] sm:$0xf]
  %v1411 = vld [vmem:[%s1362 + $0xc0] sm:$0xf]
  %v1412 = vld [vmem:[%s1362 + $0xc4] sm:$0xf]
  %v1413 = vld [vmem:[%s1362 + $0xc8] sm:$0xf]
  %v1414 = vld [vmem:[%s1362 + $0xcc] sm:$0xf]
  %v1415 = vld [vmem:[%s1362 + $0xd0] sm:$0xf]
  %v1416 = vld [vmem:[%s1362 + $0xd4] sm:$0xf]
  %v1417 = vld [vmem:[%s1362 + $0xd8] sm:$0xf]
  %v1418 = vld [vmem:[%s1362 + $0xdc] sm:$0xf]
  %v1419 = vld [vmem:[%s1362 + $0xe0] sm:$0xf]
  %v1420 = vld [vmem:[%s1362 + $0xe4] sm:$0xf]
  %v1421 = vld [vmem:[%s1362 + $0xe8] sm:$0xf]
  %v1422 = vld [vmem:[%s1362 + $0xec] sm:$0xf]
  %v1423 = vld [vmem:[%s1362 + $0xf0] sm:$0xf]
  %v1424 = vld [vmem:[%s1362 + $0xf4] sm:$0xf]
  %v1425 = vld [vmem:[%s1362 + $0xf8] sm:$0xf]
  %v1426 = vld [vmem:[%s1362 + $0xfc] sm:$0xf]
  %v1427 = vld [vmem:[%s1362 + $0x100] sm:$0xf]
  %v1428 = vld [vmem:[%s1362 + $0x104] sm:$0xf]
  %v1429 = vld [vmem:[%s1362 + $0x108] sm:$0xf]
  %v1430 = vld [vmem:[%s1362 + $0x10c] sm:$0xf]
  %v1431 = vld [vmem:[%s1362 + $0x110] sm:$0xf]
  %v1432 = vld [vmem:[%s1362 + $0x114] sm:$0xf]
  %v1433 = vld [vmem:[%s1362 + $0x118] sm:$0xf]
  %v1434 = vld [vmem:[%s1362 + $0x11c] sm:$0xf]
  %s1435 = scalar_lea.vmem %s5, 1
  %v1436 = vld [vmem:[%s1435] sm:$0x1]
  %v1437 = vrot.slane %v1358, 4
  %v1438 = vrot.slane %v1359, 4
  %v1439 = vrot.slane %v1360, 4
  %v1440 = vrot.slane %v1361, 4
  %v1441 = vsel %vm163, %v1439, %v1440
  %v1442 = vsel %vm163, %v1438, %v1439
  %v1443 = vsel %vm163, %v1437, %v1438
  %v1444 = vsel %vm163, %v1440, %v1437
  %v1445 = vmul.f32 %v1444, %v36
  %v1446 = vmul.f32 %v1443, %v37
  %v1447 = vmul.f32 %v1442, %v38
  %v1448 = vmul.f32 %v1441, %v39
  %v1449 = vrot.slane %v1358, 5
  %v1450 = vrot.slane %v1359, 5
  %v1451 = vrot.slane %v1360, 5
  %v1452 = vrot.slane %v1361, 5
  %v1453 = vsel %vm176, %v1451, %v1452
  %v1454 = vsel %vm176, %v1450, %v1451
  %v1455 = vsel %vm176, %v1449, %v1450
  %v1456 = vsel %vm176, %v1452, %v1449
  %v1457 = vmul.f32 %v1456, %v41
  %v1458 = vmul.f32 %v1455, %v42
  %v1459 = vmul.f32 %v1454, %v43
  %v1460 = vmul.f32 %v1453, %v44
  %v1461 = vrot.slane %v1358, 6
  %v1462 = vrot.slane %v1359, 6
  %v1463 = vrot.slane %v1360, 6
  %v1464 = vrot.slane %v1361, 6
  %v1465 = vsel %vm189, %v1463, %v1464
  %v1466 = vsel %vm189, %v1462, %v1463
  %v1467 = vsel %vm189, %v1461, %v1462
  %v1468 = vsel %vm189, %v1464, %v1461
  %v1469 = vmul.f32 %v1468, %v46
  %v1470 = vmul.f32 %v1467, %v47
  %v1471 = vmul.f32 %v1466, %v48
  %v1472 = vmul.f32 %v1465, %v49
  %v1473 = vrot.slane %v1358, 7
  %v1474 = vrot.slane %v1359, 7
  %v1475 = vrot.slane %v1360, 7
  %v1476 = vrot.slane %v1361, 7
  %v1477 = vsel %vm202, %v1475, %v1476
  %v1478 = vsel %vm202, %v1474, %v1475
  %v1479 = vsel %vm202, %v1473, %v1474
  %v1480 = vsel %vm202, %v1476, %v1473
  %v1481 = vmul.f32 %v1480, %v51
  %v1482 = vmul.f32 %v1479, %v52
  %v1483 = vmul.f32 %v1478, %v53
  %v1484 = vmul.f32 %v1477, %v54
  %v1485 = vmul.f32 %v1358, %v56
  %v1486 = vmul.f32 %v1359, %v57
  %v1487 = vmul.f32 %v1360, %v58
  %v1488 = vmul.f32 %v1361, %v59
  %v1489 = vrot.slane %v1358, 1
  %v1490 = vrot.slane %v1359, 1
  %v1491 = vrot.slane %v1360, 1
  %v1492 = vrot.slane %v1361, 1
  %v1493 = vsel %vm219, %v1491, %v1492
  %v1494 = vsel %vm219, %v1490, %v1491
  %v1495 = vsel %vm219, %v1489, %v1490
  %v1496 = vsel %vm219, %v1492, %v1489
  %v1497 = vmul.f32 %v1495, %v61
  %v1498 = vmul.f32 %v1494, %v62
  %v1499 = vmul.f32 %v1493, %v63
  %v1500 = vmul.f32 %v1496, %v64
  %v1501 = vrot.slane %v1358, 2
  %v1502 = vrot.slane %v1359, 2
  %v1503 = vrot.slane %v1360, 2
  %v1504 = vrot.slane %v1361, 2
  %v1505 = vsel %vm232, %v1503, %v1504
  %v1506 = vsel %vm232, %v1502, %v1503
  %v1507 = vsel %vm232, %v1501, %v1502
  %v1508 = vsel %vm232, %v1504, %v1501
  %v1509 = vmul.f32 %v1507, %v66
  %v1510 = vmul.f32 %v1506, %v67
  %v1511 = vmul.f32 %v1505, %v68
  %v1512 = vmul.f32 %v1508, %v69
  %v1513 = vrot.slane %v1358, 3
  %v1514 = vrot.slane %v1359, 3
  %v1515 = vrot.slane %v1360, 3
  %v1516 = vrot.slane %v1361, 3
  %v1517 = vsel %vm245, %v1515, %v1516
  %v1518 = vsel %vm245, %v1514, %v1515
  %v1519 = vsel %vm245, %v1513, %v1514
  %v1520 = vsel %vm245, %v1516, %v1513
  %v1521 = vmul.f32 %v1519, %v71
  %v1522 = vmul.f32 %v1518, %v72
  %v1523 = vmul.f32 %v1517, %v73
  %v1524 = vmul.f32 %v1520, %v74
  %v1525 = vmul.f32 %v1443, %v76
  %v1526 = vmul.f32 %v1442, %v77
  %v1527 = vmul.f32 %v1441, %v78
  %v1528 = vmul.f32 %v1444, %v79
  %1533 = vrot.lane.b32.xlu0 %v1457, 64
  %v1534 = vpop.permute.xlu0 %1533
  %1535 = vrot.lane.b32.xlu0 %v1458, 64
  %v1536 = vpop.permute.xlu0 %1535
  %1537 = vrot.lane.b32.xlu0 %v1459, 64
  %v1538 = vpop.permute.xlu0 %1537
  %1539 = vrot.lane.b32.xlu0 %v1460, 64
  %v1540 = vpop.permute.xlu0 %1539
  %1549 = vrot.lane.b32.xlu0 %v1481, 64
  %v1550 = vpop.permute.xlu0 %1549
  %1551 = vrot.lane.b32.xlu0 %v1482, 64
  %v1552 = vpop.permute.xlu0 %1551
  %1553 = vrot.lane.b32.xlu0 %v1483, 64
  %v1554 = vpop.permute.xlu0 %1553
  %1555 = vrot.lane.b32.xlu0 %v1484, 64
  %v1556 = vpop.permute.xlu0 %1555
  %1565 = vrot.lane.b32.xlu0 %v1497, 64
  %v1566 = vpop.permute.xlu0 %1565
  %1567 = vrot.lane.b32.xlu0 %v1498, 64
  %v1568 = vpop.permute.xlu0 %1567
  %1569 = vrot.lane.b32.xlu0 %v1499, 64
  %v1570 = vpop.permute.xlu0 %1569
  %1571 = vrot.lane.b32.xlu0 %v1500, 64
  %v1572 = vpop.permute.xlu0 %1571
  %1581 = vrot.lane.b32.xlu0 %v1521, 64
  %v1582 = vpop.permute.xlu0 %1581
  %1583 = vrot.lane.b32.xlu0 %v1522, 64
  %v1584 = vpop.permute.xlu0 %1583
  %1585 = vrot.lane.b32.xlu0 %v1523, 64
  %v1586 = vpop.permute.xlu0 %1585
  %1587 = vrot.lane.b32.xlu0 %v1524, 64
  %v1588 = vpop.permute.xlu0 %1587
  %v1593 = vsel %vm322, %v1445, %v1534
  %v1594 = vsel %vm322, %v1446, %v1536
  %v1595 = vsel %vm322, %v1447, %v1538
  %v1596 = vsel %vm322, %v1448, %v1540
  %v1597 = vsel %vm322, %v1469, %v1550
  %v1598 = vsel %vm322, %v1470, %v1552
  %v1599 = vsel %vm322, %v1471, %v1554
  %v1600 = vsel %vm322, %v1472, %v1556
  %v1601 = vsel %vm322, %v1485, %v1566
  %v1602 = vsel %vm322, %v1486, %v1568
  %v1603 = vsel %vm322, %v1487, %v1570
  %v1604 = vsel %vm322, %v1488, %v1572
  %v1605 = vsel %vm322, %v1509, %v1582
  %v1606 = vsel %vm322, %v1510, %v1584
  %v1607 = vsel %vm322, %v1511, %v1586
  %v1608 = vsel %vm322, %v1512, %v1588
  %v1609 = vpack.c.bf16 %v1594, %v1593
  %v1610 = vpack.c.bf16 %v1598, %v1597
  %v1611 = vpack.c.bf16 %v1602, %v1601
  %v1612 = vpack.c.bf16 %v1606, %v1605
  %v1613 = vpack.c.bf16 %v1526, %v1525
  %v1614 = vpack.c.bf16 %v1596, %v1595
  %v1615 = vpack.c.bf16 %v1600, %v1599
  %v1616 = vpack.c.bf16 %v1604, %v1603
  %v1617 = vpack.c.bf16 %v1608, %v1607
  %v1618 = vpack.c.bf16 %v1528, %v1527
  %v1620 = vlaneseq
  %v1621 = vshrl.u32 %v1620, 7
  %v1622 = vsub.s32 0, %v1621
  %v1623 = vrot.slane %v1436, %v1622
  %v1697 = vunpack.c.l.b16 %v1363
  %v1698 = vunpack.c.l.b16 %v1364
  %v1699 = vunpack.c.l.b16 %v1365
  %v1700 = vunpack.c.l.b16 %v1366
  %v1701 = vunpack.c.l.b16 %v1367
  %v1702 = vunpack.c.l.b16 %v1368
  %v1703 = vunpack.c.l.b16 %v1369
  %v1704 = vunpack.c.l.b16 %v1370
  %v1705 = vunpack.c.l.b16 %v1371
  %v1706 = vunpack.c.l.b16 %v1372
  %v1707 = vunpack.c.l.b16 %v1373
  %v1708 = vunpack.c.l.b16 %v1374
  %v1709 = vunpack.c.l.b16 %v1375
  %v1710 = vunpack.c.l.b16 %v1376
  %v1711 = vunpack.c.l.b16 %v1377
  %v1712 = vunpack.c.l.b16 %v1378
  %v1713 = vunpack.c.l.b16 %v1379
  %v1714 = vunpack.c.l.b16 %v1380
  %v1715 = vunpack.c.l.b16 %v1381
  %v1716 = vunpack.c.l.b16 %v1382
  %v1717 = vunpack.c.l.b16 %v1383
  %v1718 = vunpack.c.l.b16 %v1384
  %v1719 = vunpack.c.l.b16 %v1385
  %v1720 = vunpack.c.l.b16 %v1386
  %v1721 = vunpack.c.l.b16 %v1387
  %v1722 = vunpack.c.l.b16 %v1388
  %v1723 = vunpack.c.l.b16 %v1389
  %v1724 = vunpack.c.l.b16 %v1390
  %v1725 = vunpack.c.l.b16 %v1391
  %v1726 = vunpack.c.l.b16 %v1392
  %v1727 = vunpack.c.l.b16 %v1393
  %v1728 = vunpack.c.l.b16 %v1394
  %v1729 = vunpack.c.l.b16 %v1395
  %v1730 = vunpack.c.l.b16 %v1396
  %v1731 = vunpack.c.l.b16 %v1397
  %v1732 = vunpack.c.l.b16 %v1398
  %v1733 = vunpack.c.l.b16 %v1399
  %v1734 = vunpack.c.l.b16 %v1400
  %v1735 = vunpack.c.l.b16 %v1401
  %v1736 = vunpack.c.l.b16 %v1402
  %v1737 = vunpack.c.l.b16 %v1403
  %v1738 = vunpack.c.l.b16 %v1404
  %v1739 = vunpack.c.l.b16 %v1405
  %v1740 = vunpack.c.l.b16 %v1406
  %v1741 = vunpack.c.l.b16 %v1407
  %v1742 = vunpack.c.l.b16 %v1408
  %v1743 = vunpack.c.l.b16 %v1409
  %v1744 = vunpack.c.l.b16 %v1410
  %v1745 = vunpack.c.l.b16 %v1411
  %v1746 = vunpack.c.l.b16 %v1412
  %v1747 = vunpack.c.l.b16 %v1413
  %v1748 = vunpack.c.l.b16 %v1414
  %v1749 = vunpack.c.l.b16 %v1415
  %v1750 = vunpack.c.l.b16 %v1416
  %v1751 = vunpack.c.l.b16 %v1417
  %v1752 = vunpack.c.l.b16 %v1418
  %v1753 = vunpack.c.l.b16 %v1419
  %v1754 = vunpack.c.l.b16 %v1420
  %v1755 = vunpack.c.l.b16 %v1421
  %v1756 = vunpack.c.l.b16 %v1422
  %v1757 = vunpack.c.l.b16 %v1423
  %v1758 = vunpack.c.l.b16 %v1424
  %v1759 = vunpack.c.l.b16 %v1425
  %v1760 = vunpack.c.l.b16 %v1426
  %v1761 = vunpack.c.l.b16 %v1427
  %v1762 = vunpack.c.l.b16 %v1428
  %v1763 = vunpack.c.l.b16 %v1429
  %v1764 = vunpack.c.l.b16 %v1430
  %v1765 = vunpack.c.l.b16 %v1431
  %v1766 = vunpack.c.l.b16 %v1432
  %v1767 = vunpack.c.l.b16 %v1433
  %v1768 = vunpack.c.l.b16 %v1434
  %v1769 = vpack.c.b16 %v1698, %v1697
  %v1770 = vpack.c.b16 %v1700, %v1699
  %v1771 = vpack.c.b16 %v1702, %v1701
  %v1772 = vpack.c.b16 %v1704, %v1703
  %v1773 = vpack.c.b16 %v1706, %v1705
  %v1774 = vpack.c.b16 %v1708, %v1707
  %v1775 = vpack.c.b16 %v1710, %v1709
  %v1776 = vpack.c.b16 %v1712, %v1711
  %v1777 = vpack.c.b16 %v1714, %v1713
  %v1778 = vpack.c.b16 %v1716, %v1715
  %v1779 = vpack.c.b16 %v1718, %v1717
  %v1780 = vpack.c.b16 %v1720, %v1719
  %v1781 = vpack.c.b16 %v1722, %v1721
  %v1782 = vpack.c.b16 %v1724, %v1723
  %v1783 = vpack.c.b16 %v1726, %v1725
  %v1784 = vpack.c.b16 %v1728, %v1727
  %v1785 = vpack.c.b16 %v1730, %v1729
  %v1786 = vpack.c.b16 %v1732, %v1731
  %v1787 = vpack.c.b16 %v1734, %v1733
  %v1788 = vpack.c.b16 %v1736, %v1735
  %v1789 = vpack.c.b16 %v1738, %v1737
  %v1790 = vpack.c.b16 %v1740, %v1739
  %v1791 = vpack.c.b16 %v1742, %v1741
  %v1792 = vpack.c.b16 %v1744, %v1743
  %v1793 = vpack.c.b16 %v1746, %v1745
  %v1794 = vpack.c.b16 %v1748, %v1747
  %v1795 = vpack.c.b16 %v1750, %v1749
  %v1796 = vpack.c.b16 %v1752, %v1751
  %v1797 = vpack.c.b16 %v1754, %v1753
  %v1798 = vpack.c.b16 %v1756, %v1755
  %v1799 = vpack.c.b16 %v1758, %v1757
  %v1800 = vpack.c.b16 %v1760, %v1759
  %v1801 = vpack.c.b16 %v1762, %v1761
  %v1802 = vpack.c.b16 %v1764, %v1763
  %v1803 = vpack.c.b16 %v1766, %v1765
  %v1804 = vpack.c.b16 %v1768, %v1767
  %v1842 = vsel %vm322, %v1613, 0
  %v1845 = vsel %vm322, %v1618, 0
  %1847 = vmatprep.subr.bf16.mxu0 0
  %1848 = vmatpush1.bf16.msra.mxu0 %v1776
  %1849 = vmatprep.subr.bf16.mxu0 0
  %1850 = vmatpush1.bf16.msra.mxu0 %v1775
  %1851 = vmatprep.subr.bf16.mxu0 0
  %1852 = vmatpush1.bf16.msra.mxu0 %v1774
  %1853 = vmatprep.subr.bf16.mxu0 0
  %1854 = vmatpush1.bf16.msra.mxu0 %v1773
  %1855 = vmatprep.subr.bf16.mxu0 0
  %1856 = vmatpush1.bf16.msra.mxu0 %v1772
  %1857 = vmatprep.subr.bf16.mxu0 0
  %1858 = vmatpush1.bf16.msra.mxu0 %v1771
  %1859 = vmatprep.subr.bf16.mxu0 0
  %1860 = vmatpush1.bf16.msra.mxu0 %v1770
  %1861 = vmatprep.subr.bf16.mxu0 0
  %1862 = vmatpush1.bf16.msra.mxu0 %v1769
  %1863 = vmatprep.subr.bf16.mxu0 0
  %1864 = vmatpush2.bf16.msra.mxu0 %v1784
  %1865 = vmatprep.subr.bf16.mxu0 0
  %1866 = vmatpush2.bf16.msra.mxu0 %v1783
  %1867 = vmatprep.subr.bf16.mxu0 0
  %1868 = vmatpush2.bf16.msra.mxu0 %v1782
  %1869 = vmatprep.subr.bf16.mxu0 0
  %1870 = vmatpush2.bf16.msra.mxu0 %v1781
  %1871 = vmatprep.subr.bf16.mxu0 0
  %1872 = vmatpush2.bf16.msra.mxu0 %v1780
  %1873 = vmatprep.subr.bf16.mxu0 0
  %1874 = vmatpush2.bf16.msra.mxu0 %v1779
  %1875 = vmatprep.subr.bf16.mxu0 0
  %1876 = vmatpush2.bf16.msra.mxu0 %v1778
  %1877 = vmatprep.subr.bf16.mxu0 0
  %1878 = vmatpush2.bf16.msra.mxu0 %v1777
  %1879 = vmatprep.mubr.bf16.mxu0 %v1610
  %1880 = vmatmul.mubr.bf16.gmra.mxu0 %v1609
  %v1881 = vpop.f32.mrf.mxu0
  %v1882 = vadd.f32 %v1623, %v1881
  %v1883 = vpop.f32.mrf.mxu0
  %v1884 = vpop.f32.mrf.mxu0
  %v1885 = vadd.f32 %v1623, %v1884
  %v1886 = vpop.f32.mrf.mxu0
  %1887 = vmatprep.mubr.bf16.mxu0 %v1615
  %1888 = vmatmul.mubr.bf16.gmra.mxu0 %v1614
  %v1889 = vpop.f32.mrf.mxu0
  %v1890 = vadd.f32 %v1623, %v1889
  %v1891 = vpop.f32.mrf.mxu0
  %v1892 = vpop.f32.mrf.mxu0
  %v1893 = vadd.f32 %v1623, %v1892
  %v1894 = vpop.f32.mrf.mxu0
  %1895 = vdwg.mxu0
  %1896 = vmatprep.subr.bf16.mxu0 0
  %1897 = vmatpush1.bf16.msra.mxu0 %v1792
  %1898 = vmatprep.subr.bf16.mxu0 0
  %1899 = vmatpush1.bf16.msra.mxu0 %v1791
  %1900 = vmatprep.subr.bf16.mxu0 0
  %1901 = vmatpush1.bf16.msra.mxu0 %v1790
  %1902 = vmatprep.subr.bf16.mxu0 0
  %1903 = vmatpush1.bf16.msra.mxu0 %v1789
  %1904 = vmatprep.subr.bf16.mxu0 0
  %1905 = vmatpush1.bf16.msra.mxu0 %v1788
  %1906 = vmatprep.subr.bf16.mxu0 0
  %1907 = vmatpush1.bf16.msra.mxu0 %v1787
  %1908 = vmatprep.subr.bf16.mxu0 0
  %1909 = vmatpush1.bf16.msra.mxu0 %v1786
  %1910 = vmatprep.subr.bf16.mxu0 0
  %1911 = vmatpush1.bf16.msra.mxu0 %v1785
  %1912 = vmatprep.subr.bf16.mxu0 0
  %1913 = vmatpush2.bf16.msra.mxu0 %v1800
  %1914 = vmatprep.subr.bf16.mxu0 0
  %1915 = vmatpush2.bf16.msra.mxu0 %v1799
  %1916 = vmatprep.subr.bf16.mxu0 0
  %1917 = vmatpush2.bf16.msra.mxu0 %v1798
  %1918 = vmatprep.subr.bf16.mxu0 0
  %1919 = vmatpush2.bf16.msra.mxu0 %v1797
  %1920 = vmatprep.subr.bf16.mxu0 0
  %1921 = vmatpush2.bf16.msra.mxu0 %v1796
  %1922 = vmatprep.subr.bf16.mxu0 0
  %1923 = vmatpush2.bf16.msra.mxu0 %v1795
  %1924 = vmatprep.subr.bf16.mxu0 0
  %1925 = vmatpush2.bf16.msra.mxu0 %v1794
  %1926 = vmatprep.subr.bf16.mxu0 0
  %1927 = vmatpush2.bf16.msra.mxu0 %v1793
  %1928 = vmatprep.mubr.bf16.mxu0 %v1612
  %1929 = vmatmul.mubr.bf16.gmra.mxu0 %v1611
  %v1930 = vpop.f32.mrf.mxu0
  %v1931 = vadd.f32 %v1882, %v1930
  %v1932 = vpop.f32.mrf.mxu0
  %v1933 = vpop.f32.mrf.mxu0
  %v1934 = vadd.f32 %v1885, %v1933
  %v1935 = vpop.f32.mrf.mxu0
  %1936 = vmatprep.mubr.bf16.mxu0 %v1617
  %1937 = vmatmul.mubr.bf16.gmra.mxu0 %v1616
  %v1938 = vpop.f32.mrf.mxu0
  %v1939 = vadd.f32 %v1890, %v1938
  %v1940 = vpop.f32.mrf.mxu0
  %v1941 = vpop.f32.mrf.mxu0
  %v1942 = vadd.f32 %v1893, %v1941
  %v1943 = vpop.f32.mrf.mxu0
  %1944 = vdwg.mxu0
  %1945 = vmatprep.subr.bf16.mxu0 0
  %1946 = vmatpush1.bf16.msra.mxu0 0
  %1947 = vmatprep.subr.bf16.mxu0 0
  %1948 = vmatpush1.bf16.msra.mxu0 0
  %1949 = vmatprep.subr.bf16.mxu0 0
  %1950 = vmatpush1.bf16.msra.mxu0 0
  %1951 = vmatprep.subr.bf16.mxu0 0
  %1952 = vmatpush1.bf16.msra.mxu0 0
  %1953 = vmatprep.subr.bf16.mxu0 0
  %1954 = vmatpush1.bf16.msra.mxu0 %v1804
  %1955 = vmatprep.subr.bf16.mxu0 0
  %1956 = vmatpush1.bf16.msra.mxu0 %v1803
  %1957 = vmatprep.subr.bf16.mxu0 0
  %1958 = vmatpush1.bf16.msra.mxu0 %v1802
  %1959 = vmatprep.subr.bf16.mxu0 0
  %1960 = vmatpush1.bf16.msra.mxu0 %v1801
  %1961 = vmatprep.subr.bf16.mxu0 0
  %1962 = vmatpush2.bf16.msra.mxu0 0
  %1963 = vmatprep.subr.bf16.mxu0 0
  %1964 = vmatpush2.bf16.msra.mxu0 0
  %1965 = vmatprep.subr.bf16.mxu0 0
  %1966 = vmatpush2.bf16.msra.mxu0 0
  %1967 = vmatprep.subr.bf16.mxu0 0
  %1968 = vmatpush2.bf16.msra.mxu0 0
  %1969 = vmatprep.subr.bf16.mxu0 0
  %1970 = vmatpush2.bf16.msra.mxu0 0
  %1971 = vmatprep.subr.bf16.mxu0 0
  %1972 = vmatpush2.bf16.msra.mxu0 0
  %1973 = vmatprep.subr.bf16.mxu0 0
  %1974 = vmatpush2.bf16.msra.mxu0 0
  %1975 = vmatprep.subr.bf16.mxu0 0
  %1976 = vmatpush2.bf16.msra.mxu0 0
  %1977 = vmatprep.mubr.bf16.mxu0 0
  %1978 = vmatmul.mubr.bf16.gmra.mxu0 %v1842
  %v1979 = vpop.f32.mrf.mxu0
  %v1980 = vadd.f32 %v1931, %v1979
  %v1981 = vpop.f32.mrf.mxu0
  %v1982 = vpop.f32.mrf.mxu0
  %v1983 = vadd.f32 %v1934, %v1982
  %v1984 = vpop.f32.mrf.mxu0
  %1985 = vmatprep.mubr.bf16.mxu0 0
  %1986 = vmatmul.mubr.bf16.gmra.mxu0 %v1845
  %v1987 = vpop.f32.mrf.mxu0
  %v1988 = vadd.f32 %v1939, %v1987
  %v1989 = vpop.f32.mrf.mxu0
  %v1990 = vpop.f32.mrf.mxu0
  %v1991 = vadd.f32 %v1942, %v1990
  %v1992 = vpop.f32.mrf.mxu0
  %1993 = vdwg.mxu0
  %v1994 = vadd.f32 %v1980, %v724
  %v1995 = vadd.f32 %v1983, %v725
  %v1996 = vadd.f32 %v1988, %v726
  %v1997 = vadd.f32 %v1991, %v727
  %v1998 = vmax.f32 %v1994, 0.0
  %v1999 = vmax.f32 %v1995, 0.0
  %v2000 = vmax.f32 %v1996, 0.0
  %v2001 = vmax.f32 %v1997, 0.0
  %s2002 = scalar_lea.vmem %s4, 576
  %v2003 = vld [vmem:[%s2002] sm:$0xf]
  %v2004 = vld [vmem:[%s2002 + $0x4] sm:$0xf]
  %v2005 = vld [vmem:[%s2002 + $0x8] sm:$0xf]
  %v2006 = vld [vmem:[%s2002 + $0xc] sm:$0xf]
  %v2007 = vld [vmem:[%s2002 + $0x10] sm:$0xf]
  %v2008 = vld [vmem:[%s2002 + $0x14] sm:$0xf]
  %v2009 = vld [vmem:[%s2002 + $0x18] sm:$0xf]
  %v2010 = vld [vmem:[%s2002 + $0x1c] sm:$0xf]
  %v2011 = vld [vmem:[%s2002 + $0x20] sm:$0xf]
  %v2012 = vld [vmem:[%s2002 + $0x24] sm:$0xf]
  %v2013 = vld [vmem:[%s2002 + $0x28] sm:$0xf]
  %v2014 = vld [vmem:[%s2002 + $0x2c] sm:$0xf]
  %v2015 = vld [vmem:[%s2002 + $0x30] sm:$0xf]
  %v2016 = vld [vmem:[%s2002 + $0x34] sm:$0xf]
  %v2017 = vld [vmem:[%s2002 + $0x38] sm:$0xf]
  %v2018 = vld [vmem:[%s2002 + $0x3c] sm:$0xf]
  %v2019 = vld [vmem:[%s2002 + $0x40] sm:$0xf]
  %v2020 = vld [vmem:[%s2002 + $0x44] sm:$0xf]
  %v2021 = vld [vmem:[%s2002 + $0x48] sm:$0xf]
  %v2022 = vld [vmem:[%s2002 + $0x4c] sm:$0xf]
  %v2023 = vld [vmem:[%s2002 + $0x50] sm:$0xf]
  %v2024 = vld [vmem:[%s2002 + $0x54] sm:$0xf]
  %v2025 = vld [vmem:[%s2002 + $0x58] sm:$0xf]
  %v2026 = vld [vmem:[%s2002 + $0x5c] sm:$0xf]
  %v2027 = vld [vmem:[%s2002 + $0x60] sm:$0xf]
  %v2028 = vld [vmem:[%s2002 + $0x64] sm:$0xf]
  %v2029 = vld [vmem:[%s2002 + $0x68] sm:$0xf]
  %v2030 = vld [vmem:[%s2002 + $0x6c] sm:$0xf]
  %v2031 = vld [vmem:[%s2002 + $0x70] sm:$0xf]
  %v2032 = vld [vmem:[%s2002 + $0x74] sm:$0xf]
  %v2033 = vld [vmem:[%s2002 + $0x78] sm:$0xf]
  %v2034 = vld [vmem:[%s2002 + $0x7c] sm:$0xf]
  %v2035 = vld [vmem:[%s2002 + $0x80] sm:$0xf]
  %v2036 = vld [vmem:[%s2002 + $0x84] sm:$0xf]
  %v2037 = vld [vmem:[%s2002 + $0x88] sm:$0xf]
  %v2038 = vld [vmem:[%s2002 + $0x8c] sm:$0xf]
  %v2039 = vld [vmem:[%s2002 + $0x90] sm:$0xf]
  %v2040 = vld [vmem:[%s2002 + $0x94] sm:$0xf]
  %v2041 = vld [vmem:[%s2002 + $0x98] sm:$0xf]
  %v2042 = vld [vmem:[%s2002 + $0x9c] sm:$0xf]
  %v2043 = vld [vmem:[%s2002 + $0xa0] sm:$0xf]
  %v2044 = vld [vmem:[%s2002 + $0xa4] sm:$0xf]
  %v2045 = vld [vmem:[%s2002 + $0xa8] sm:$0xf]
  %v2046 = vld [vmem:[%s2002 + $0xac] sm:$0xf]
  %v2047 = vld [vmem:[%s2002 + $0xb0] sm:$0xf]
  %v2048 = vld [vmem:[%s2002 + $0xb4] sm:$0xf]
  %v2049 = vld [vmem:[%s2002 + $0xb8] sm:$0xf]
  %v2050 = vld [vmem:[%s2002 + $0xbc] sm:$0xf]
  %v2051 = vld [vmem:[%s2002 + $0xc0] sm:$0xf]
  %v2052 = vld [vmem:[%s2002 + $0xc4] sm:$0xf]
  %v2053 = vld [vmem:[%s2002 + $0xc8] sm:$0xf]
  %v2054 = vld [vmem:[%s2002 + $0xcc] sm:$0xf]
  %v2055 = vld [vmem:[%s2002 + $0xd0] sm:$0xf]
  %v2056 = vld [vmem:[%s2002 + $0xd4] sm:$0xf]
  %v2057 = vld [vmem:[%s2002 + $0xd8] sm:$0xf]
  %v2058 = vld [vmem:[%s2002 + $0xdc] sm:$0xf]
  %v2059 = vld [vmem:[%s2002 + $0xe0] sm:$0xf]
  %v2060 = vld [vmem:[%s2002 + $0xe4] sm:$0xf]
  %v2061 = vld [vmem:[%s2002 + $0xe8] sm:$0xf]
  %v2062 = vld [vmem:[%s2002 + $0xec] sm:$0xf]
  %v2063 = vld [vmem:[%s2002 + $0xf0] sm:$0xf]
  %v2064 = vld [vmem:[%s2002 + $0xf4] sm:$0xf]
  %v2065 = vld [vmem:[%s2002 + $0xf8] sm:$0xf]
  %v2066 = vld [vmem:[%s2002 + $0xfc] sm:$0xf]
  %v2067 = vld [vmem:[%s2002 + $0x100] sm:$0xf]
  %v2068 = vld [vmem:[%s2002 + $0x104] sm:$0xf]
  %v2069 = vld [vmem:[%s2002 + $0x108] sm:$0xf]
  %v2070 = vld [vmem:[%s2002 + $0x10c] sm:$0xf]
  %v2071 = vld [vmem:[%s2002 + $0x110] sm:$0xf]
  %v2072 = vld [vmem:[%s2002 + $0x114] sm:$0xf]
  %v2073 = vld [vmem:[%s2002 + $0x118] sm:$0xf]
  %v2074 = vld [vmem:[%s2002 + $0x11c] sm:$0xf]
  %s2075 = scalar_lea.vmem %s5, 2
  %v2076 = vld [vmem:[%s2075] sm:$0x1]
  %v2077 = vrot.slane %v1998, 4
  %v2078 = vrot.slane %v1999, 4
  %v2079 = vrot.slane %v2000, 4
  %v2080 = vrot.slane %v2001, 4
  %v2081 = vsel %vm163, %v2079, %v2080
  %v2082 = vsel %vm163, %v2078, %v2079
  %v2083 = vsel %vm163, %v2077, %v2078
  %v2084 = vsel %vm163, %v2080, %v2077
  %v2085 = vmul.f32 %v2084, %v36
  %v2086 = vmul.f32 %v2083, %v37
  %v2087 = vmul.f32 %v2082, %v38
  %v2088 = vmul.f32 %v2081, %v39
  %v2089 = vrot.slane %v1998, 5
  %v2090 = vrot.slane %v1999, 5
  %v2091 = vrot.slane %v2000, 5
  %v2092 = vrot.slane %v2001, 5
  %v2093 = vsel %vm176, %v2091, %v2092
  %v2094 = vsel %vm176, %v2090, %v2091
  %v2095 = vsel %vm176, %v2089, %v2090
  %v2096 = vsel %vm176, %v2092, %v2089
  %v2097 = vmul.f32 %v2096, %v41
  %v2098 = vmul.f32 %v2095, %v42
  %v2099 = vmul.f32 %v2094, %v43
  %v2100 = vmul.f32 %v2093, %v44
  %v2101 = vrot.slane %v1998, 6
  %v2102 = vrot.slane %v1999, 6
  %v2103 = vrot.slane %v2000, 6
  %v2104 = vrot.slane %v2001, 6
  %v2105 = vsel %vm189, %v2103, %v2104
  %v2106 = vsel %vm189, %v2102, %v2103
  %v2107 = vsel %vm189, %v2101, %v2102
  %v2108 = vsel %vm189, %v2104, %v2101
  %v2109 = vmul.f32 %v2108, %v46
  %v2110 = vmul.f32 %v2107, %v47
  %v2111 = vmul.f32 %v2106, %v48
  %v2112 = vmul.f32 %v2105, %v49
  %v2113 = vrot.slane %v1998, 7
  %v2114 = vrot.slane %v1999, 7
  %v2115 = vrot.slane %v2000, 7
  %v2116 = vrot.slane %v2001, 7
  %v2117 = vsel %vm202, %v2115, %v2116
  %v2118 = vsel %vm202, %v2114, %v2115
  %v2119 = vsel %vm202, %v2113, %v2114
  %v2120 = vsel %vm202, %v2116, %v2113
  %v2121 = vmul.f32 %v2120, %v51
  %v2122 = vmul.f32 %v2119, %v52
  %v2123 = vmul.f32 %v2118, %v53
  %v2124 = vmul.f32 %v2117, %v54
  %v2125 = vmul.f32 %v1998, %v56
  %v2126 = vmul.f32 %v1999, %v57
  %v2127 = vmul.f32 %v2000, %v58
  %v2128 = vmul.f32 %v2001, %v59
  %v2129 = vrot.slane %v1998, 1
  %v2130 = vrot.slane %v1999, 1
  %v2131 = vrot.slane %v2000, 1
  %v2132 = vrot.slane %v2001, 1
  %v2133 = vsel %vm219, %v2131, %v2132
  %v2134 = vsel %vm219, %v2130, %v2131
  %v2135 = vsel %vm219, %v2129, %v2130
  %v2136 = vsel %vm219, %v2132, %v2129
  %v2137 = vmul.f32 %v2135, %v61
  %v2138 = vmul.f32 %v2134, %v62
  %v2139 = vmul.f32 %v2133, %v63
  %v2140 = vmul.f32 %v2136, %v64
  %v2141 = vrot.slane %v1998, 2
  %v2142 = vrot.slane %v1999, 2
  %v2143 = vrot.slane %v2000, 2
  %v2144 = vrot.slane %v2001, 2
  %v2145 = vsel %vm232, %v2143, %v2144
  %v2146 = vsel %vm232, %v2142, %v2143
  %v2147 = vsel %vm232, %v2141, %v2142
  %v2148 = vsel %vm232, %v2144, %v2141
  %v2149 = vmul.f32 %v2147, %v66
  %v2150 = vmul.f32 %v2146, %v67
  %v2151 = vmul.f32 %v2145, %v68
  %v2152 = vmul.f32 %v2148, %v69
  %v2153 = vrot.slane %v1998, 3
  %v2154 = vrot.slane %v1999, 3
  %v2155 = vrot.slane %v2000, 3
  %v2156 = vrot.slane %v2001, 3
  %v2157 = vsel %vm245, %v2155, %v2156
  %v2158 = vsel %vm245, %v2154, %v2155
  %v2159 = vsel %vm245, %v2153, %v2154
  %v2160 = vsel %vm245, %v2156, %v2153
  %v2161 = vmul.f32 %v2159, %v71
  %v2162 = vmul.f32 %v2158, %v72
  %v2163 = vmul.f32 %v2157, %v73
  %v2164 = vmul.f32 %v2160, %v74
  %v2165 = vmul.f32 %v2083, %v76
  %v2166 = vmul.f32 %v2082, %v77
  %v2167 = vmul.f32 %v2081, %v78
  %v2168 = vmul.f32 %v2084, %v79
  %2173 = vrot.lane.b32.xlu0 %v2097, 64
  %v2174 = vpop.permute.xlu0 %2173
  %2175 = vrot.lane.b32.xlu0 %v2098, 64
  %v2176 = vpop.permute.xlu0 %2175
  %2177 = vrot.lane.b32.xlu0 %v2099, 64
  %v2178 = vpop.permute.xlu0 %2177
  %2179 = vrot.lane.b32.xlu0 %v2100, 64
  %v2180 = vpop.permute.xlu0 %2179
  %2189 = vrot.lane.b32.xlu0 %v2121, 64
  %v2190 = vpop.permute.xlu0 %2189
  %2191 = vrot.lane.b32.xlu0 %v2122, 64
  %v2192 = vpop.permute.xlu0 %2191
  %2193 = vrot.lane.b32.xlu0 %v2123, 64
  %v2194 = vpop.permute.xlu0 %2193
  %2195 = vrot.lane.b32.xlu0 %v2124, 64
  %v2196 = vpop.permute.xlu0 %2195
  %2205 = vrot.lane.b32.xlu0 %v2137, 64
  %v2206 = vpop.permute.xlu0 %2205
  %2207 = vrot.lane.b32.xlu0 %v2138, 64
  %v2208 = vpop.permute.xlu0 %2207
  %2209 = vrot.lane.b32.xlu0 %v2139, 64
  %v2210 = vpop.permute.xlu0 %2209
  %2211 = vrot.lane.b32.xlu0 %v2140, 64
  %v2212 = vpop.permute.xlu0 %2211
  %2221 = vrot.lane.b32.xlu0 %v2161, 64
  %v2222 = vpop.permute.xlu0 %2221
  %2223 = vrot.lane.b32.xlu0 %v2162, 64
  %v2224 = vpop.permute.xlu0 %2223
  %2225 = vrot.lane.b32.xlu0 %v2163, 64
  %v2226 = vpop.permute.xlu0 %2225
  %2227 = vrot.lane.b32.xlu0 %v2164, 64
  %v2228 = vpop.permute.xlu0 %2227
  %v2233 = vsel %vm322, %v2085, %v2174
  %v2234 = vsel %vm322, %v2086, %v2176
  %v2235 = vsel %vm322, %v2087, %v2178
  %v2236 = vsel %vm322, %v2088, %v2180
  %v2237 = vsel %vm322, %v2109, %v2190
  %v2238 = vsel %vm322, %v2110, %v2192
  %v2239 = vsel %vm322, %v2111, %v2194
  %v2240 = vsel %vm322, %v2112, %v2196
  %v2241 = vsel %vm322, %v2125, %v2206
  %v2242 = vsel %vm322, %v2126, %v2208
  %v2243 = vsel %vm322, %v2127, %v2210
  %v2244 = vsel %vm322, %v2128, %v2212
  %v2245 = vsel %vm322, %v2149, %v2222
  %v2246 = vsel %vm322, %v2150, %v2224
  %v2247 = vsel %vm322, %v2151, %v2226
  %v2248 = vsel %vm322, %v2152, %v2228
  %v2249 = vpack.c.bf16 %v2234, %v2233
  %v2250 = vpack.c.bf16 %v2238, %v2237
  %v2251 = vpack.c.bf16 %v2242, %v2241
  %v2252 = vpack.c.bf16 %v2246, %v2245
  %v2253 = vpack.c.bf16 %v2166, %v2165
  %v2254 = vpack.c.bf16 %v2236, %v2235
  %v2255 = vpack.c.bf16 %v2240, %v2239
  %v2256 = vpack.c.bf16 %v2244, %v2243
  %v2257 = vpack.c.bf16 %v2248, %v2247
  %v2258 = vpack.c.bf16 %v2168, %v2167
  %v2260 = vlaneseq
  %v2261 = vshrl.u32 %v2260, 7
  %v2262 = vsub.s32 0, %v2261
  %v2263 = vrot.slane %v2076, %v2262
  %v2337 = vunpack.c.l.b16 %v2003
  %v2338 = vunpack.c.l.b16 %v2004
  %v2339 = vunpack.c.l.b16 %v2005
  %v2340 = vunpack.c.l.b16 %v2006
  %v2341 = vunpack.c.l.b16 %v2007
  %v2342 = vunpack.c.l.b16 %v2008
  %v2343 = vunpack.c.l.b16 %v2009
  %v2344 = vunpack.c.l.b16 %v2010
  %v2345 = vunpack.c.l.b16 %v2011
  %v2346 = vunpack.c.l.b16 %v2012
  %v2347 = vunpack.c.l.b16 %v2013
  %v2348 = vunpack.c.l.b16 %v2014
  %v2349 = vunpack.c.l.b16 %v2015
  %v2350 = vunpack.c.l.b16 %v2016
  %v2351 = vunpack.c.l.b16 %v2017
  %v2352 = vunpack.c.l.b16 %v2018
  %v2353 = vunpack.c.l.b16 %v2019
  %v2354 = vunpack.c.l.b16 %v2020
  %v2355 = vunpack.c.l.b16 %v2021
  %v2356 = vunpack.c.l.b16 %v2022
  %v2357 = vunpack.c.l.b16 %v2023
  %v2358 = vunpack.c.l.b16 %v2024
  %v2359 = vunpack.c.l.b16 %v2025
  %v2360 = vunpack.c.l.b16 %v2026
  %v2361 = vunpack.c.l.b16 %v2027
  %v2362 = vunpack.c.l.b16 %v2028
  %v2363 = vunpack.c.l.b16 %v2029
  %v2364 = vunpack.c.l.b16 %v2030
  %v2365 = vunpack.c.l.b16 %v2031
  %v2366 = vunpack.c.l.b16 %v2032
  %v2367 = vunpack.c.l.b16 %v2033
  %v2368 = vunpack.c.l.b16 %v2034
  %v2369 = vunpack.c.l.b16 %v2035
  %v2370 = vunpack.c.l.b16 %v2036
  %v2371 = vunpack.c.l.b16 %v2037
  %v2372 = vunpack.c.l.b16 %v2038
  %v2373 = vunpack.c.l.b16 %v2039
  %v2374 = vunpack.c.l.b16 %v2040
  %v2375 = vunpack.c.l.b16 %v2041
  %v2376 = vunpack.c.l.b16 %v2042
  %v2377 = vunpack.c.l.b16 %v2043
  %v2378 = vunpack.c.l.b16 %v2044
  %v2379 = vunpack.c.l.b16 %v2045
  %v2380 = vunpack.c.l.b16 %v2046
  %v2381 = vunpack.c.l.b16 %v2047
  %v2382 = vunpack.c.l.b16 %v2048
  %v2383 = vunpack.c.l.b16 %v2049
  %v2384 = vunpack.c.l.b16 %v2050
  %v2385 = vunpack.c.l.b16 %v2051
  %v2386 = vunpack.c.l.b16 %v2052
  %v2387 = vunpack.c.l.b16 %v2053
  %v2388 = vunpack.c.l.b16 %v2054
  %v2389 = vunpack.c.l.b16 %v2055
  %v2390 = vunpack.c.l.b16 %v2056
  %v2391 = vunpack.c.l.b16 %v2057
  %v2392 = vunpack.c.l.b16 %v2058
  %v2393 = vunpack.c.l.b16 %v2059
  %v2394 = vunpack.c.l.b16 %v2060
  %v2395 = vunpack.c.l.b16 %v2061
  %v2396 = vunpack.c.l.b16 %v2062
  %v2397 = vunpack.c.l.b16 %v2063
  %v2398 = vunpack.c.l.b16 %v2064
  %v2399 = vunpack.c.l.b16 %v2065
  %v2400 = vunpack.c.l.b16 %v2066
  %v2401 = vunpack.c.l.b16 %v2067
  %v2402 = vunpack.c.l.b16 %v2068
  %v2403 = vunpack.c.l.b16 %v2069
  %v2404 = vunpack.c.l.b16 %v2070
  %v2405 = vunpack.c.l.b16 %v2071
  %v2406 = vunpack.c.l.b16 %v2072
  %v2407 = vunpack.c.l.b16 %v2073
  %v2408 = vunpack.c.l.b16 %v2074
  %v2409 = vpack.c.b16 %v2338, %v2337
  %v2410 = vpack.c.b16 %v2340, %v2339
  %v2411 = vpack.c.b16 %v2342, %v2341
  %v2412 = vpack.c.b16 %v2344, %v2343
  %v2413 = vpack.c.b16 %v2346, %v2345
  %v2414 = vpack.c.b16 %v2348, %v2347
  %v2415 = vpack.c.b16 %v2350, %v2349
  %v2416 = vpack.c.b16 %v2352, %v2351
  %v2417 = vpack.c.b16 %v2354, %v2353
  %v2418 = vpack.c.b16 %v2356, %v2355
  %v2419 = vpack.c.b16 %v2358, %v2357
  %v2420 = vpack.c.b16 %v2360, %v2359
  %v2421 = vpack.c.b16 %v2362, %v2361
  %v2422 = vpack.c.b16 %v2364, %v2363
  %v2423 = vpack.c.b16 %v2366, %v2365
  %v2424 = vpack.c.b16 %v2368, %v2367
  %v2425 = vpack.c.b16 %v2370, %v2369
  %v2426 = vpack.c.b16 %v2372, %v2371
  %v2427 = vpack.c.b16 %v2374, %v2373
  %v2428 = vpack.c.b16 %v2376, %v2375
  %v2429 = vpack.c.b16 %v2378, %v2377
  %v2430 = vpack.c.b16 %v2380, %v2379
  %v2431 = vpack.c.b16 %v2382, %v2381
  %v2432 = vpack.c.b16 %v2384, %v2383
  %v2433 = vpack.c.b16 %v2386, %v2385
  %v2434 = vpack.c.b16 %v2388, %v2387
  %v2435 = vpack.c.b16 %v2390, %v2389
  %v2436 = vpack.c.b16 %v2392, %v2391
  %v2437 = vpack.c.b16 %v2394, %v2393
  %v2438 = vpack.c.b16 %v2396, %v2395
  %v2439 = vpack.c.b16 %v2398, %v2397
  %v2440 = vpack.c.b16 %v2400, %v2399
  %v2441 = vpack.c.b16 %v2402, %v2401
  %v2442 = vpack.c.b16 %v2404, %v2403
  %v2443 = vpack.c.b16 %v2406, %v2405
  %v2444 = vpack.c.b16 %v2408, %v2407
  %v2482 = vsel %vm322, %v2253, 0
  %v2485 = vsel %vm322, %v2258, 0
  %2487 = vmatprep.subr.bf16.mxu0 0
  %2488 = vmatpush1.bf16.msra.mxu0 %v2416
  %2489 = vmatprep.subr.bf16.mxu0 0
  %2490 = vmatpush1.bf16.msra.mxu0 %v2415
  %2491 = vmatprep.subr.bf16.mxu0 0
  %2492 = vmatpush1.bf16.msra.mxu0 %v2414
  %2493 = vmatprep.subr.bf16.mxu0 0
  %2494 = vmatpush1.bf16.msra.mxu0 %v2413
  %2495 = vmatprep.subr.bf16.mxu0 0
  %2496 = vmatpush1.bf16.msra.mxu0 %v2412
  %2497 = vmatprep.subr.bf16.mxu0 0
  %2498 = vmatpush1.bf16.msra.mxu0 %v2411
  %2499 = vmatprep.subr.bf16.mxu0 0
  %2500 = vmatpush1.bf16.msra.mxu0 %v2410
  %2501 = vmatprep.subr.bf16.mxu0 0
  %2502 = vmatpush1.bf16.msra.mxu0 %v2409
  %2503 = vmatprep.subr.bf16.mxu0 0
  %2504 = vmatpush2.bf16.msra.mxu0 %v2424
  %2505 = vmatprep.subr.bf16.mxu0 0
  %2506 = vmatpush2.bf16.msra.mxu0 %v2423
  %2507 = vmatprep.subr.bf16.mxu0 0
  %2508 = vmatpush2.bf16.msra.mxu0 %v2422
  %2509 = vmatprep.subr.bf16.mxu0 0
  %2510 = vmatpush2.bf16.msra.mxu0 %v2421
  %2511 = vmatprep.subr.bf16.mxu0 0
  %2512 = vmatpush2.bf16.msra.mxu0 %v2420
  %2513 = vmatprep.subr.bf16.mxu0 0
  %2514 = vmatpush2.bf16.msra.mxu0 %v2419
  %2515 = vmatprep.subr.bf16.mxu0 0
  %2516 = vmatpush2.bf16.msra.mxu0 %v2418
  %2517 = vmatprep.subr.bf16.mxu0 0
  %2518 = vmatpush2.bf16.msra.mxu0 %v2417
  %2519 = vmatprep.mubr.bf16.mxu0 %v2250
  %2520 = vmatmul.mubr.bf16.gmra.mxu0 %v2249
  %v2521 = vpop.f32.mrf.mxu0
  %v2522 = vadd.f32 %v2263, %v2521
  %v2523 = vpop.f32.mrf.mxu0
  %v2524 = vpop.f32.mrf.mxu0
  %v2525 = vadd.f32 %v2263, %v2524
  %v2526 = vpop.f32.mrf.mxu0
  %2527 = vmatprep.mubr.bf16.mxu0 %v2255
  %2528 = vmatmul.mubr.bf16.gmra.mxu0 %v2254
  %v2529 = vpop.f32.mrf.mxu0
  %v2530 = vadd.f32 %v2263, %v2529
  %v2531 = vpop.f32.mrf.mxu0
  %v2532 = vpop.f32.mrf.mxu0
  %v2533 = vadd.f32 %v2263, %v2532
  %v2534 = vpop.f32.mrf.mxu0
  %2535 = vdwg.mxu0
  %2536 = vmatprep.subr.bf16.mxu0 0
  %2537 = vmatpush1.bf16.msra.mxu0 %v2432
  %2538 = vmatprep.subr.bf16.mxu0 0
  %2539 = vmatpush1.bf16.msra.mxu0 %v2431
  %2540 = vmatprep.subr.bf16.mxu0 0
  %2541 = vmatpush1.bf16.msra.mxu0 %v2430
  %2542 = vmatprep.subr.bf16.mxu0 0
  %2543 = vmatpush1.bf16.msra.mxu0 %v2429
  %2544 = vmatprep.subr.bf16.mxu0 0
  %2545 = vmatpush1.bf16.msra.mxu0 %v2428
  %2546 = vmatprep.subr.bf16.mxu0 0
  %2547 = vmatpush1.bf16.msra.mxu0 %v2427
  %2548 = vmatprep.subr.bf16.mxu0 0
  %2549 = vmatpush1.bf16.msra.mxu0 %v2426
  %2550 = vmatprep.subr.bf16.mxu0 0
  %2551 = vmatpush1.bf16.msra.mxu0 %v2425
  %2552 = vmatprep.subr.bf16.mxu0 0
  %2553 = vmatpush2.bf16.msra.mxu0 %v2440
  %2554 = vmatprep.subr.bf16.mxu0 0
  %2555 = vmatpush2.bf16.msra.mxu0 %v2439
  %2556 = vmatprep.subr.bf16.mxu0 0
  %2557 = vmatpush2.bf16.msra.mxu0 %v2438
  %2558 = vmatprep.subr.bf16.mxu0 0
  %2559 = vmatpush2.bf16.msra.mxu0 %v2437
  %2560 = vmatprep.subr.bf16.mxu0 0
  %2561 = vmatpush2.bf16.msra.mxu0 %v2436
  %2562 = vmatprep.subr.bf16.mxu0 0
  %2563 = vmatpush2.bf16.msra.mxu0 %v2435
  %2564 = vmatprep.subr.bf16.mxu0 0
  %2565 = vmatpush2.bf16.msra.mxu0 %v2434
  %2566 = vmatprep.subr.bf16.mxu0 0
  %2567 = vmatpush2.bf16.msra.mxu0 %v2433
  %2568 = vmatprep.mubr.bf16.mxu0 %v2252
  %2569 = vmatmul.mubr.bf16.gmra.mxu0 %v2251
  %v2570 = vpop.f32.mrf.mxu0
  %v2571 = vadd.f32 %v2522, %v2570
  %v2572 = vpop.f32.mrf.mxu0
  %v2573 = vpop.f32.mrf.mxu0
  %v2574 = vadd.f32 %v2525, %v2573
  %v2575 = vpop.f32.mrf.mxu0
  %2576 = vmatprep.mubr.bf16.mxu0 %v2257
  %2577 = vmatmul.mubr.bf16.gmra.mxu0 %v2256
  %v2578 = vpop.f32.mrf.mxu0
  %v2579 = vadd.f32 %v2530, %v2578
  %v2580 = vpop.f32.mrf.mxu0
  %v2581 = vpop.f32.mrf.mxu0
  %v2582 = vadd.f32 %v2533, %v2581
  %v2583 = vpop.f32.mrf.mxu0
  %2584 = vdwg.mxu0
  %2585 = vmatprep.subr.bf16.mxu0 0
  %2586 = vmatpush1.bf16.msra.mxu0 0
  %2587 = vmatprep.subr.bf16.mxu0 0
  %2588 = vmatpush1.bf16.msra.mxu0 0
  %2589 = vmatprep.subr.bf16.mxu0 0
  %2590 = vmatpush1.bf16.msra.mxu0 0
  %2591 = vmatprep.subr.bf16.mxu0 0
  %2592 = vmatpush1.bf16.msra.mxu0 0
  %2593 = vmatprep.subr.bf16.mxu0 0
  %2594 = vmatpush1.bf16.msra.mxu0 %v2444
  %2595 = vmatprep.subr.bf16.mxu0 0
  %2596 = vmatpush1.bf16.msra.mxu0 %v2443
  %2597 = vmatprep.subr.bf16.mxu0 0
  %2598 = vmatpush1.bf16.msra.mxu0 %v2442
  %2599 = vmatprep.subr.bf16.mxu0 0
  %2600 = vmatpush1.bf16.msra.mxu0 %v2441
  %2601 = vmatprep.subr.bf16.mxu0 0
  %2602 = vmatpush2.bf16.msra.mxu0 0
  %2603 = vmatprep.subr.bf16.mxu0 0
  %2604 = vmatpush2.bf16.msra.mxu0 0
  %2605 = vmatprep.subr.bf16.mxu0 0
  %2606 = vmatpush2.bf16.msra.mxu0 0
  %2607 = vmatprep.subr.bf16.mxu0 0
  %2608 = vmatpush2.bf16.msra.mxu0 0
  %2609 = vmatprep.subr.bf16.mxu0 0
  %2610 = vmatpush2.bf16.msra.mxu0 0
  %2611 = vmatprep.subr.bf16.mxu0 0
  %2612 = vmatpush2.bf16.msra.mxu0 0
  %2613 = vmatprep.subr.bf16.mxu0 0
  %2614 = vmatpush2.bf16.msra.mxu0 0
  %2615 = vmatprep.subr.bf16.mxu0 0
  %2616 = vmatpush2.bf16.msra.mxu0 0
  %2617 = vmatprep.mubr.bf16.mxu0 0
  %2618 = vmatmul.mubr.bf16.gmra.mxu0 %v2482
  %v2619 = vpop.f32.mrf.mxu0
  %v2620 = vadd.f32 %v2571, %v2619
  %v2621 = vpop.f32.mrf.mxu0
  %v2622 = vpop.f32.mrf.mxu0
  %v2623 = vadd.f32 %v2574, %v2622
  %v2624 = vpop.f32.mrf.mxu0
  %2625 = vmatprep.mubr.bf16.mxu0 0
  %2626 = vmatmul.mubr.bf16.gmra.mxu0 %v2485
  %v2627 = vpop.f32.mrf.mxu0
  %v2628 = vadd.f32 %v2579, %v2627
  %v2629 = vpop.f32.mrf.mxu0
  %v2630 = vpop.f32.mrf.mxu0
  %v2631 = vadd.f32 %v2582, %v2630
  %v2632 = vpop.f32.mrf.mxu0
  %2633 = vdwg.mxu0
  %v2634 = vmax.f32 %v2620, 0.0
  %v2635 = vmax.f32 %v2623, 0.0
  %v2636 = vmax.f32 %v2628, 0.0
  %v2637 = vmax.f32 %v2631, 0.0
  %s2638 = scalar_lea.vmem %s4, 864
  %v2639 = vld [vmem:[%s2638] sm:$0xf]
  %v2640 = vld [vmem:[%s2638 + $0x4] sm:$0xf]
  %v2641 = vld [vmem:[%s2638 + $0x8] sm:$0xf]
  %v2642 = vld [vmem:[%s2638 + $0xc] sm:$0xf]
  %v2643 = vld [vmem:[%s2638 + $0x10] sm:$0xf]
  %v2644 = vld [vmem:[%s2638 + $0x14] sm:$0xf]
  %v2645 = vld [vmem:[%s2638 + $0x18] sm:$0xf]
  %v2646 = vld [vmem:[%s2638 + $0x1c] sm:$0xf]
  %v2647 = vld [vmem:[%s2638 + $0x20] sm:$0xf]
  %v2648 = vld [vmem:[%s2638 + $0x24] sm:$0xf]
  %v2649 = vld [vmem:[%s2638 + $0x28] sm:$0xf]
  %v2650 = vld [vmem:[%s2638 + $0x2c] sm:$0xf]
  %v2651 = vld [vmem:[%s2638 + $0x30] sm:$0xf]
  %v2652 = vld [vmem:[%s2638 + $0x34] sm:$0xf]
  %v2653 = vld [vmem:[%s2638 + $0x38] sm:$0xf]
  %v2654 = vld [vmem:[%s2638 + $0x3c] sm:$0xf]
  %v2655 = vld [vmem:[%s2638 + $0x40] sm:$0xf]
  %v2656 = vld [vmem:[%s2638 + $0x44] sm:$0xf]
  %v2657 = vld [vmem:[%s2638 + $0x48] sm:$0xf]
  %v2658 = vld [vmem:[%s2638 + $0x4c] sm:$0xf]
  %v2659 = vld [vmem:[%s2638 + $0x50] sm:$0xf]
  %v2660 = vld [vmem:[%s2638 + $0x54] sm:$0xf]
  %v2661 = vld [vmem:[%s2638 + $0x58] sm:$0xf]
  %v2662 = vld [vmem:[%s2638 + $0x5c] sm:$0xf]
  %v2663 = vld [vmem:[%s2638 + $0x60] sm:$0xf]
  %v2664 = vld [vmem:[%s2638 + $0x64] sm:$0xf]
  %v2665 = vld [vmem:[%s2638 + $0x68] sm:$0xf]
  %v2666 = vld [vmem:[%s2638 + $0x6c] sm:$0xf]
  %v2667 = vld [vmem:[%s2638 + $0x70] sm:$0xf]
  %v2668 = vld [vmem:[%s2638 + $0x74] sm:$0xf]
  %v2669 = vld [vmem:[%s2638 + $0x78] sm:$0xf]
  %v2670 = vld [vmem:[%s2638 + $0x7c] sm:$0xf]
  %v2671 = vld [vmem:[%s2638 + $0x80] sm:$0xf]
  %v2672 = vld [vmem:[%s2638 + $0x84] sm:$0xf]
  %v2673 = vld [vmem:[%s2638 + $0x88] sm:$0xf]
  %v2674 = vld [vmem:[%s2638 + $0x8c] sm:$0xf]
  %v2675 = vld [vmem:[%s2638 + $0x90] sm:$0xf]
  %v2676 = vld [vmem:[%s2638 + $0x94] sm:$0xf]
  %v2677 = vld [vmem:[%s2638 + $0x98] sm:$0xf]
  %v2678 = vld [vmem:[%s2638 + $0x9c] sm:$0xf]
  %v2679 = vld [vmem:[%s2638 + $0xa0] sm:$0xf]
  %v2680 = vld [vmem:[%s2638 + $0xa4] sm:$0xf]
  %v2681 = vld [vmem:[%s2638 + $0xa8] sm:$0xf]
  %v2682 = vld [vmem:[%s2638 + $0xac] sm:$0xf]
  %v2683 = vld [vmem:[%s2638 + $0xb0] sm:$0xf]
  %v2684 = vld [vmem:[%s2638 + $0xb4] sm:$0xf]
  %v2685 = vld [vmem:[%s2638 + $0xb8] sm:$0xf]
  %v2686 = vld [vmem:[%s2638 + $0xbc] sm:$0xf]
  %v2687 = vld [vmem:[%s2638 + $0xc0] sm:$0xf]
  %v2688 = vld [vmem:[%s2638 + $0xc4] sm:$0xf]
  %v2689 = vld [vmem:[%s2638 + $0xc8] sm:$0xf]
  %v2690 = vld [vmem:[%s2638 + $0xcc] sm:$0xf]
  %v2691 = vld [vmem:[%s2638 + $0xd0] sm:$0xf]
  %v2692 = vld [vmem:[%s2638 + $0xd4] sm:$0xf]
  %v2693 = vld [vmem:[%s2638 + $0xd8] sm:$0xf]
  %v2694 = vld [vmem:[%s2638 + $0xdc] sm:$0xf]
  %v2695 = vld [vmem:[%s2638 + $0xe0] sm:$0xf]
  %v2696 = vld [vmem:[%s2638 + $0xe4] sm:$0xf]
  %v2697 = vld [vmem:[%s2638 + $0xe8] sm:$0xf]
  %v2698 = vld [vmem:[%s2638 + $0xec] sm:$0xf]
  %v2699 = vld [vmem:[%s2638 + $0xf0] sm:$0xf]
  %v2700 = vld [vmem:[%s2638 + $0xf4] sm:$0xf]
  %v2701 = vld [vmem:[%s2638 + $0xf8] sm:$0xf]
  %v2702 = vld [vmem:[%s2638 + $0xfc] sm:$0xf]
  %v2703 = vld [vmem:[%s2638 + $0x100] sm:$0xf]
  %v2704 = vld [vmem:[%s2638 + $0x104] sm:$0xf]
  %v2705 = vld [vmem:[%s2638 + $0x108] sm:$0xf]
  %v2706 = vld [vmem:[%s2638 + $0x10c] sm:$0xf]
  %v2707 = vld [vmem:[%s2638 + $0x110] sm:$0xf]
  %v2708 = vld [vmem:[%s2638 + $0x114] sm:$0xf]
  %v2709 = vld [vmem:[%s2638 + $0x118] sm:$0xf]
  %v2710 = vld [vmem:[%s2638 + $0x11c] sm:$0xf]
  %s2711 = scalar_lea.vmem %s5, 3
  %v2712 = vld [vmem:[%s2711] sm:$0x1]
  %v2713 = vrot.slane %v2634, 4
  %v2714 = vrot.slane %v2635, 4
  %v2715 = vrot.slane %v2636, 4
  %v2716 = vrot.slane %v2637, 4
  %v2717 = vsel %vm163, %v2715, %v2716
  %v2718 = vsel %vm163, %v2714, %v2715
  %v2719 = vsel %vm163, %v2713, %v2714
  %v2720 = vsel %vm163, %v2716, %v2713
  %v2721 = vmul.f32 %v2720, %v36
  %v2722 = vmul.f32 %v2719, %v37
  %v2723 = vmul.f32 %v2718, %v38
  %v2724 = vmul.f32 %v2717, %v39
  %v2725 = vrot.slane %v2634, 5
  %v2726 = vrot.slane %v2635, 5
  %v2727 = vrot.slane %v2636, 5
  %v2728 = vrot.slane %v2637, 5
  %v2729 = vsel %vm176, %v2727, %v2728
  %v2730 = vsel %vm176, %v2726, %v2727
  %v2731 = vsel %vm176, %v2725, %v2726
  %v2732 = vsel %vm176, %v2728, %v2725
  %v2733 = vmul.f32 %v2732, %v41
  %v2734 = vmul.f32 %v2731, %v42
  %v2735 = vmul.f32 %v2730, %v43
  %v2736 = vmul.f32 %v2729, %v44
  %v2737 = vrot.slane %v2634, 6
  %v2738 = vrot.slane %v2635, 6
  %v2739 = vrot.slane %v2636, 6
  %v2740 = vrot.slane %v2637, 6
  %v2741 = vsel %vm189, %v2739, %v2740
  %v2742 = vsel %vm189, %v2738, %v2739
  %v2743 = vsel %vm189, %v2737, %v2738
  %v2744 = vsel %vm189, %v2740, %v2737
  %v2745 = vmul.f32 %v2744, %v46
  %v2746 = vmul.f32 %v2743, %v47
  %v2747 = vmul.f32 %v2742, %v48
  %v2748 = vmul.f32 %v2741, %v49
  %v2749 = vrot.slane %v2634, 7
  %v2750 = vrot.slane %v2635, 7
  %v2751 = vrot.slane %v2636, 7
  %v2752 = vrot.slane %v2637, 7
  %v2753 = vsel %vm202, %v2751, %v2752
  %v2754 = vsel %vm202, %v2750, %v2751
  %v2755 = vsel %vm202, %v2749, %v2750
  %v2756 = vsel %vm202, %v2752, %v2749
  %v2757 = vmul.f32 %v2756, %v51
  %v2758 = vmul.f32 %v2755, %v52
  %v2759 = vmul.f32 %v2754, %v53
  %v2760 = vmul.f32 %v2753, %v54
  %v2761 = vmul.f32 %v2634, %v56
  %v2762 = vmul.f32 %v2635, %v57
  %v2763 = vmul.f32 %v2636, %v58
  %v2764 = vmul.f32 %v2637, %v59
  %v2765 = vrot.slane %v2634, 1
  %v2766 = vrot.slane %v2635, 1
  %v2767 = vrot.slane %v2636, 1
  %v2768 = vrot.slane %v2637, 1
  %v2769 = vsel %vm219, %v2767, %v2768
  %v2770 = vsel %vm219, %v2766, %v2767
  %v2771 = vsel %vm219, %v2765, %v2766
  %v2772 = vsel %vm219, %v2768, %v2765
  %v2773 = vmul.f32 %v2771, %v61
  %v2774 = vmul.f32 %v2770, %v62
  %v2775 = vmul.f32 %v2769, %v63
  %v2776 = vmul.f32 %v2772, %v64
  %v2777 = vrot.slane %v2634, 2
  %v2778 = vrot.slane %v2635, 2
  %v2779 = vrot.slane %v2636, 2
  %v2780 = vrot.slane %v2637, 2
  %v2781 = vsel %vm232, %v2779, %v2780
  %v2782 = vsel %vm232, %v2778, %v2779
  %v2783 = vsel %vm232, %v2777, %v2778
  %v2784 = vsel %vm232, %v2780, %v2777
  %v2785 = vmul.f32 %v2783, %v66
  %v2786 = vmul.f32 %v2782, %v67
  %v2787 = vmul.f32 %v2781, %v68
  %v2788 = vmul.f32 %v2784, %v69
  %v2789 = vrot.slane %v2634, 3
  %v2790 = vrot.slane %v2635, 3
  %v2791 = vrot.slane %v2636, 3
  %v2792 = vrot.slane %v2637, 3
  %v2793 = vsel %vm245, %v2791, %v2792
  %v2794 = vsel %vm245, %v2790, %v2791
  %v2795 = vsel %vm245, %v2789, %v2790
  %v2796 = vsel %vm245, %v2792, %v2789
  %v2797 = vmul.f32 %v2795, %v71
  %v2798 = vmul.f32 %v2794, %v72
  %v2799 = vmul.f32 %v2793, %v73
  %v2800 = vmul.f32 %v2796, %v74
  %v2801 = vmul.f32 %v2719, %v76
  %v2802 = vmul.f32 %v2718, %v77
  %v2803 = vmul.f32 %v2717, %v78
  %v2804 = vmul.f32 %v2720, %v79
  %2809 = vrot.lane.b32.xlu0 %v2733, 64
  %v2810 = vpop.permute.xlu0 %2809
  %2811 = vrot.lane.b32.xlu0 %v2734, 64
  %v2812 = vpop.permute.xlu0 %2811
  %2813 = vrot.lane.b32.xlu0 %v2735, 64
  %v2814 = vpop.permute.xlu0 %2813
  %2815 = vrot.lane.b32.xlu0 %v2736, 64
  %v2816 = vpop.permute.xlu0 %2815
  %2825 = vrot.lane.b32.xlu0 %v2757, 64
  %v2826 = vpop.permute.xlu0 %2825
  %2827 = vrot.lane.b32.xlu0 %v2758, 64
  %v2828 = vpop.permute.xlu0 %2827
  %2829 = vrot.lane.b32.xlu0 %v2759, 64
  %v2830 = vpop.permute.xlu0 %2829
  %2831 = vrot.lane.b32.xlu0 %v2760, 64
  %v2832 = vpop.permute.xlu0 %2831
  %2841 = vrot.lane.b32.xlu0 %v2773, 64
  %v2842 = vpop.permute.xlu0 %2841
  %2843 = vrot.lane.b32.xlu0 %v2774, 64
  %v2844 = vpop.permute.xlu0 %2843
  %2845 = vrot.lane.b32.xlu0 %v2775, 64
  %v2846 = vpop.permute.xlu0 %2845
  %2847 = vrot.lane.b32.xlu0 %v2776, 64
  %v2848 = vpop.permute.xlu0 %2847
  %2857 = vrot.lane.b32.xlu0 %v2797, 64
  %v2858 = vpop.permute.xlu0 %2857
  %2859 = vrot.lane.b32.xlu0 %v2798, 64
  %v2860 = vpop.permute.xlu0 %2859
  %2861 = vrot.lane.b32.xlu0 %v2799, 64
  %v2862 = vpop.permute.xlu0 %2861
  %2863 = vrot.lane.b32.xlu0 %v2800, 64
  %v2864 = vpop.permute.xlu0 %2863
  %v2869 = vsel %vm322, %v2721, %v2810
  %v2870 = vsel %vm322, %v2722, %v2812
  %v2871 = vsel %vm322, %v2723, %v2814
  %v2872 = vsel %vm322, %v2724, %v2816
  %v2873 = vsel %vm322, %v2745, %v2826
  %v2874 = vsel %vm322, %v2746, %v2828
  %v2875 = vsel %vm322, %v2747, %v2830
  %v2876 = vsel %vm322, %v2748, %v2832
  %v2877 = vsel %vm322, %v2761, %v2842
  %v2878 = vsel %vm322, %v2762, %v2844
  %v2879 = vsel %vm322, %v2763, %v2846
  %v2880 = vsel %vm322, %v2764, %v2848
  %v2881 = vsel %vm322, %v2785, %v2858
  %v2882 = vsel %vm322, %v2786, %v2860
  %v2883 = vsel %vm322, %v2787, %v2862
  %v2884 = vsel %vm322, %v2788, %v2864
  %v2885 = vpack.c.bf16 %v2870, %v2869
  %v2886 = vpack.c.bf16 %v2874, %v2873
  %v2887 = vpack.c.bf16 %v2878, %v2877
  %v2888 = vpack.c.bf16 %v2882, %v2881
  %v2889 = vpack.c.bf16 %v2802, %v2801
  %v2890 = vpack.c.bf16 %v2872, %v2871
  %v2891 = vpack.c.bf16 %v2876, %v2875
  %v2892 = vpack.c.bf16 %v2880, %v2879
  %v2893 = vpack.c.bf16 %v2884, %v2883
  %v2894 = vpack.c.bf16 %v2804, %v2803
  %v2896 = vlaneseq
  %v2897 = vshrl.u32 %v2896, 7
  %v2898 = vsub.s32 0, %v2897
  %v2899 = vrot.slane %v2712, %v2898
  %v2973 = vunpack.c.l.b16 %v2639
  %v2974 = vunpack.c.l.b16 %v2640
  %v2975 = vunpack.c.l.b16 %v2641
  %v2976 = vunpack.c.l.b16 %v2642
  %v2977 = vunpack.c.l.b16 %v2643
  %v2978 = vunpack.c.l.b16 %v2644
  %v2979 = vunpack.c.l.b16 %v2645
  %v2980 = vunpack.c.l.b16 %v2646
  %v2981 = vunpack.c.l.b16 %v2647
  %v2982 = vunpack.c.l.b16 %v2648
  %v2983 = vunpack.c.l.b16 %v2649
  %v2984 = vunpack.c.l.b16 %v2650
  %v2985 = vunpack.c.l.b16 %v2651
  %v2986 = vunpack.c.l.b16 %v2652
  %v2987 = vunpack.c.l.b16 %v2653
  %v2988 = vunpack.c.l.b16 %v2654
  %v2989 = vunpack.c.l.b16 %v2655
  %v2990 = vunpack.c.l.b16 %v2656
  %v2991 = vunpack.c.l.b16 %v2657
  %v2992 = vunpack.c.l.b16 %v2658
  %v2993 = vunpack.c.l.b16 %v2659
  %v2994 = vunpack.c.l.b16 %v2660
  %v2995 = vunpack.c.l.b16 %v2661
  %v2996 = vunpack.c.l.b16 %v2662
  %v2997 = vunpack.c.l.b16 %v2663
  %v2998 = vunpack.c.l.b16 %v2664
  %v2999 = vunpack.c.l.b16 %v2665
  %v3000 = vunpack.c.l.b16 %v2666
  %v3001 = vunpack.c.l.b16 %v2667
  %v3002 = vunpack.c.l.b16 %v2668
  %v3003 = vunpack.c.l.b16 %v2669
  %v3004 = vunpack.c.l.b16 %v2670
  %v3005 = vunpack.c.l.b16 %v2671
  %v3006 = vunpack.c.l.b16 %v2672
  %v3007 = vunpack.c.l.b16 %v2673
  %v3008 = vunpack.c.l.b16 %v2674
  %v3009 = vunpack.c.l.b16 %v2675
  %v3010 = vunpack.c.l.b16 %v2676
  %v3011 = vunpack.c.l.b16 %v2677
  %v3012 = vunpack.c.l.b16 %v2678
  %v3013 = vunpack.c.l.b16 %v2679
  %v3014 = vunpack.c.l.b16 %v2680
  %v3015 = vunpack.c.l.b16 %v2681
  %v3016 = vunpack.c.l.b16 %v2682
  %v3017 = vunpack.c.l.b16 %v2683
  %v3018 = vunpack.c.l.b16 %v2684
  %v3019 = vunpack.c.l.b16 %v2685
  %v3020 = vunpack.c.l.b16 %v2686
  %v3021 = vunpack.c.l.b16 %v2687
  %v3022 = vunpack.c.l.b16 %v2688
  %v3023 = vunpack.c.l.b16 %v2689
  %v3024 = vunpack.c.l.b16 %v2690
  %v3025 = vunpack.c.l.b16 %v2691
  %v3026 = vunpack.c.l.b16 %v2692
  %v3027 = vunpack.c.l.b16 %v2693
  %v3028 = vunpack.c.l.b16 %v2694
  %v3029 = vunpack.c.l.b16 %v2695
  %v3030 = vunpack.c.l.b16 %v2696
  %v3031 = vunpack.c.l.b16 %v2697
  %v3032 = vunpack.c.l.b16 %v2698
  %v3033 = vunpack.c.l.b16 %v2699
  %v3034 = vunpack.c.l.b16 %v2700
  %v3035 = vunpack.c.l.b16 %v2701
  %v3036 = vunpack.c.l.b16 %v2702
  %v3037 = vunpack.c.l.b16 %v2703
  %v3038 = vunpack.c.l.b16 %v2704
  %v3039 = vunpack.c.l.b16 %v2705
  %v3040 = vunpack.c.l.b16 %v2706
  %v3041 = vunpack.c.l.b16 %v2707
  %v3042 = vunpack.c.l.b16 %v2708
  %v3043 = vunpack.c.l.b16 %v2709
  %v3044 = vunpack.c.l.b16 %v2710
  %v3045 = vpack.c.b16 %v2974, %v2973
  %v3046 = vpack.c.b16 %v2976, %v2975
  %v3047 = vpack.c.b16 %v2978, %v2977
  %v3048 = vpack.c.b16 %v2980, %v2979
  %v3049 = vpack.c.b16 %v2982, %v2981
  %v3050 = vpack.c.b16 %v2984, %v2983
  %v3051 = vpack.c.b16 %v2986, %v2985
  %v3052 = vpack.c.b16 %v2988, %v2987
  %v3053 = vpack.c.b16 %v2990, %v2989
  %v3054 = vpack.c.b16 %v2992, %v2991
  %v3055 = vpack.c.b16 %v2994, %v2993
  %v3056 = vpack.c.b16 %v2996, %v2995
  %v3057 = vpack.c.b16 %v2998, %v2997
  %v3058 = vpack.c.b16 %v3000, %v2999
  %v3059 = vpack.c.b16 %v3002, %v3001
  %v3060 = vpack.c.b16 %v3004, %v3003
  %v3061 = vpack.c.b16 %v3006, %v3005
  %v3062 = vpack.c.b16 %v3008, %v3007
  %v3063 = vpack.c.b16 %v3010, %v3009
  %v3064 = vpack.c.b16 %v3012, %v3011
  %v3065 = vpack.c.b16 %v3014, %v3013
  %v3066 = vpack.c.b16 %v3016, %v3015
  %v3067 = vpack.c.b16 %v3018, %v3017
  %v3068 = vpack.c.b16 %v3020, %v3019
  %v3069 = vpack.c.b16 %v3022, %v3021
  %v3070 = vpack.c.b16 %v3024, %v3023
  %v3071 = vpack.c.b16 %v3026, %v3025
  %v3072 = vpack.c.b16 %v3028, %v3027
  %v3073 = vpack.c.b16 %v3030, %v3029
  %v3074 = vpack.c.b16 %v3032, %v3031
  %v3075 = vpack.c.b16 %v3034, %v3033
  %v3076 = vpack.c.b16 %v3036, %v3035
  %v3077 = vpack.c.b16 %v3038, %v3037
  %v3078 = vpack.c.b16 %v3040, %v3039
  %v3079 = vpack.c.b16 %v3042, %v3041
  %v3080 = vpack.c.b16 %v3044, %v3043
  %v3118 = vsel %vm322, %v2889, 0
  %v3121 = vsel %vm322, %v2894, 0
  %3123 = vmatprep.subr.bf16.mxu0 0
  %3124 = vmatpush1.bf16.msra.mxu0 %v3052
  %3125 = vmatprep.subr.bf16.mxu0 0
  %3126 = vmatpush1.bf16.msra.mxu0 %v3051
  %3127 = vmatprep.subr.bf16.mxu0 0
  %3128 = vmatpush1.bf16.msra.mxu0 %v3050
  %3129 = vmatprep.subr.bf16.mxu0 0
  %3130 = vmatpush1.bf16.msra.mxu0 %v3049
  %3131 = vmatprep.subr.bf16.mxu0 0
  %3132 = vmatpush1.bf16.msra.mxu0 %v3048
  %3133 = vmatprep.subr.bf16.mxu0 0
  %3134 = vmatpush1.bf16.msra.mxu0 %v3047
  %3135 = vmatprep.subr.bf16.mxu0 0
  %3136 = vmatpush1.bf16.msra.mxu0 %v3046
  %3137 = vmatprep.subr.bf16.mxu0 0
  %3138 = vmatpush1.bf16.msra.mxu0 %v3045
  %3139 = vmatprep.subr.bf16.mxu0 0
  %3140 = vmatpush2.bf16.msra.mxu0 %v3060
  %3141 = vmatprep.subr.bf16.mxu0 0
  %3142 = vmatpush2.bf16.msra.mxu0 %v3059
  %3143 = vmatprep.subr.bf16.mxu0 0
  %3144 = vmatpush2.bf16.msra.mxu0 %v3058
  %3145 = vmatprep.subr.bf16.mxu0 0
  %3146 = vmatpush2.bf16.msra.mxu0 %v3057
  %3147 = vmatprep.subr.bf16.mxu0 0
  %3148 = vmatpush2.bf16.msra.mxu0 %v3056
  %3149 = vmatprep.subr.bf16.mxu0 0
  %3150 = vmatpush2.bf16.msra.mxu0 %v3055
  %3151 = vmatprep.subr.bf16.mxu0 0
  %3152 = vmatpush2.bf16.msra.mxu0 %v3054
  %3153 = vmatprep.subr.bf16.mxu0 0
  %3154 = vmatpush2.bf16.msra.mxu0 %v3053
  %3155 = vmatprep.mubr.bf16.mxu0 %v2886
  %3156 = vmatmul.mubr.bf16.gmra.mxu0 %v2885
  %v3157 = vpop.f32.mrf.mxu0
  %v3158 = vadd.f32 %v2899, %v3157
  %v3159 = vpop.f32.mrf.mxu0
  %v3160 = vpop.f32.mrf.mxu0
  %v3161 = vadd.f32 %v2899, %v3160
  %v3162 = vpop.f32.mrf.mxu0
  %3163 = vmatprep.mubr.bf16.mxu0 %v2891
  %3164 = vmatmul.mubr.bf16.gmra.mxu0 %v2890
  %v3165 = vpop.f32.mrf.mxu0
  %v3166 = vadd.f32 %v2899, %v3165
  %v3167 = vpop.f32.mrf.mxu0
  %v3168 = vpop.f32.mrf.mxu0
  %v3169 = vadd.f32 %v2899, %v3168
  %v3170 = vpop.f32.mrf.mxu0
  %3171 = vdwg.mxu0
  %3172 = vmatprep.subr.bf16.mxu0 0
  %3173 = vmatpush1.bf16.msra.mxu0 %v3068
  %3174 = vmatprep.subr.bf16.mxu0 0
  %3175 = vmatpush1.bf16.msra.mxu0 %v3067
  %3176 = vmatprep.subr.bf16.mxu0 0
  %3177 = vmatpush1.bf16.msra.mxu0 %v3066
  %3178 = vmatprep.subr.bf16.mxu0 0
  %3179 = vmatpush1.bf16.msra.mxu0 %v3065
  %3180 = vmatprep.subr.bf16.mxu0 0
  %3181 = vmatpush1.bf16.msra.mxu0 %v3064
  %3182 = vmatprep.subr.bf16.mxu0 0
  %3183 = vmatpush1.bf16.msra.mxu0 %v3063
  %3184 = vmatprep.subr.bf16.mxu0 0
  %3185 = vmatpush1.bf16.msra.mxu0 %v3062
  %3186 = vmatprep.subr.bf16.mxu0 0
  %3187 = vmatpush1.bf16.msra.mxu0 %v3061
  %3188 = vmatprep.subr.bf16.mxu0 0
  %3189 = vmatpush2.bf16.msra.mxu0 %v3076
  %3190 = vmatprep.subr.bf16.mxu0 0
  %3191 = vmatpush2.bf16.msra.mxu0 %v3075
  %3192 = vmatprep.subr.bf16.mxu0 0
  %3193 = vmatpush2.bf16.msra.mxu0 %v3074
  %3194 = vmatprep.subr.bf16.mxu0 0
  %3195 = vmatpush2.bf16.msra.mxu0 %v3073
  %3196 = vmatprep.subr.bf16.mxu0 0
  %3197 = vmatpush2.bf16.msra.mxu0 %v3072
  %3198 = vmatprep.subr.bf16.mxu0 0
  %3199 = vmatpush2.bf16.msra.mxu0 %v3071
  %3200 = vmatprep.subr.bf16.mxu0 0
  %3201 = vmatpush2.bf16.msra.mxu0 %v3070
  %3202 = vmatprep.subr.bf16.mxu0 0
  %3203 = vmatpush2.bf16.msra.mxu0 %v3069
  %3204 = vmatprep.mubr.bf16.mxu0 %v2888
  %3205 = vmatmul.mubr.bf16.gmra.mxu0 %v2887
  %v3206 = vpop.f32.mrf.mxu0
  %v3207 = vadd.f32 %v3158, %v3206
  %v3208 = vpop.f32.mrf.mxu0
  %v3209 = vpop.f32.mrf.mxu0
  %v3210 = vadd.f32 %v3161, %v3209
  %v3211 = vpop.f32.mrf.mxu0
  %3212 = vmatprep.mubr.bf16.mxu0 %v2893
  %3213 = vmatmul.mubr.bf16.gmra.mxu0 %v2892
  %v3214 = vpop.f32.mrf.mxu0
  %v3215 = vadd.f32 %v3166, %v3214
  %v3216 = vpop.f32.mrf.mxu0
  %v3217 = vpop.f32.mrf.mxu0
  %v3218 = vadd.f32 %v3169, %v3217
  %v3219 = vpop.f32.mrf.mxu0
  %3220 = vdwg.mxu0
  %3221 = vmatprep.subr.bf16.mxu0 0
  %3222 = vmatpush1.bf16.msra.mxu0 0
  %3223 = vmatprep.subr.bf16.mxu0 0
  %3224 = vmatpush1.bf16.msra.mxu0 0
  %3225 = vmatprep.subr.bf16.mxu0 0
  %3226 = vmatpush1.bf16.msra.mxu0 0
  %3227 = vmatprep.subr.bf16.mxu0 0
  %3228 = vmatpush1.bf16.msra.mxu0 0
  %3229 = vmatprep.subr.bf16.mxu0 0
  %3230 = vmatpush1.bf16.msra.mxu0 %v3080
  %3231 = vmatprep.subr.bf16.mxu0 0
  %3232 = vmatpush1.bf16.msra.mxu0 %v3079
  %3233 = vmatprep.subr.bf16.mxu0 0
  %3234 = vmatpush1.bf16.msra.mxu0 %v3078
  %3235 = vmatprep.subr.bf16.mxu0 0
  %3236 = vmatpush1.bf16.msra.mxu0 %v3077
  %3237 = vmatprep.subr.bf16.mxu0 0
  %3238 = vmatpush2.bf16.msra.mxu0 0
  %3239 = vmatprep.subr.bf16.mxu0 0
  %3240 = vmatpush2.bf16.msra.mxu0 0
  %3241 = vmatprep.subr.bf16.mxu0 0
  %3242 = vmatpush2.bf16.msra.mxu0 0
  %3243 = vmatprep.subr.bf16.mxu0 0
  %3244 = vmatpush2.bf16.msra.mxu0 0
  %3245 = vmatprep.subr.bf16.mxu0 0
  %3246 = vmatpush2.bf16.msra.mxu0 0
  %3247 = vmatprep.subr.bf16.mxu0 0
  %3248 = vmatpush2.bf16.msra.mxu0 0
  %3249 = vmatprep.subr.bf16.mxu0 0
  %3250 = vmatpush2.bf16.msra.mxu0 0
  %3251 = vmatprep.subr.bf16.mxu0 0
  %3252 = vmatpush2.bf16.msra.mxu0 0
  %3253 = vmatprep.mubr.bf16.mxu0 0
  %3254 = vmatmul.mubr.bf16.gmra.mxu0 %v3118
  %v3255 = vpop.f32.mrf.mxu0
  %v3256 = vadd.f32 %v3207, %v3255
  %v3257 = vpop.f32.mrf.mxu0
  %v3258 = vpop.f32.mrf.mxu0
  %v3259 = vadd.f32 %v3210, %v3258
  %v3260 = vpop.f32.mrf.mxu0
  %3261 = vmatprep.mubr.bf16.mxu0 0
  %3262 = vmatmul.mubr.bf16.gmra.mxu0 %v3121
  %v3263 = vpop.f32.mrf.mxu0
  %v3264 = vadd.f32 %v3215, %v3263
  %v3265 = vpop.f32.mrf.mxu0
  %v3266 = vpop.f32.mrf.mxu0
  %v3267 = vadd.f32 %v3218, %v3266
  %v3268 = vpop.f32.mrf.mxu0
  %3269 = vdwg.mxu0
  %v3270 = vadd.f32 %v3256, %v1998
  %v3271 = vadd.f32 %v3259, %v1999
  %v3272 = vadd.f32 %v3264, %v2000
  %v3273 = vadd.f32 %v3267, %v2001
  %v3274 = vmax.f32 %v3270, 0.0
  %v3275 = vmax.f32 %v3271, 0.0
  %v3276 = vmax.f32 %v3272, 0.0
  %v3277 = vmax.f32 %v3273, 0.0
  %s3278 = scalar_lea.vmem %s4, 1152
  %v3279 = vld [vmem:[%s3278] sm:$0xf]
  %v3280 = vld [vmem:[%s3278 + $0x4] sm:$0xf]
  %v3281 = vld [vmem:[%s3278 + $0x8] sm:$0xf]
  %v3282 = vld [vmem:[%s3278 + $0xc] sm:$0xf]
  %v3283 = vld [vmem:[%s3278 + $0x10] sm:$0xf]
  %v3284 = vld [vmem:[%s3278 + $0x14] sm:$0xf]
  %v3285 = vld [vmem:[%s3278 + $0x18] sm:$0xf]
  %v3286 = vld [vmem:[%s3278 + $0x1c] sm:$0xf]
  %v3287 = vld [vmem:[%s3278 + $0x20] sm:$0xf]
  %v3288 = vld [vmem:[%s3278 + $0x24] sm:$0xf]
  %v3289 = vld [vmem:[%s3278 + $0x28] sm:$0xf]
  %v3290 = vld [vmem:[%s3278 + $0x2c] sm:$0xf]
  %v3291 = vld [vmem:[%s3278 + $0x30] sm:$0xf]
  %v3292 = vld [vmem:[%s3278 + $0x34] sm:$0xf]
  %v3293 = vld [vmem:[%s3278 + $0x38] sm:$0xf]
  %v3294 = vld [vmem:[%s3278 + $0x3c] sm:$0xf]
  %v3295 = vld [vmem:[%s3278 + $0x40] sm:$0xf]
  %v3296 = vld [vmem:[%s3278 + $0x44] sm:$0xf]
  %v3297 = vld [vmem:[%s3278 + $0x48] sm:$0xf]
  %v3298 = vld [vmem:[%s3278 + $0x4c] sm:$0xf]
  %v3299 = vld [vmem:[%s3278 + $0x50] sm:$0xf]
  %v3300 = vld [vmem:[%s3278 + $0x54] sm:$0xf]
  %v3301 = vld [vmem:[%s3278 + $0x58] sm:$0xf]
  %v3302 = vld [vmem:[%s3278 + $0x5c] sm:$0xf]
  %v3303 = vld [vmem:[%s3278 + $0x60] sm:$0xf]
  %v3304 = vld [vmem:[%s3278 + $0x64] sm:$0xf]
  %v3305 = vld [vmem:[%s3278 + $0x68] sm:$0xf]
  %v3306 = vld [vmem:[%s3278 + $0x6c] sm:$0xf]
  %v3307 = vld [vmem:[%s3278 + $0x70] sm:$0xf]
  %v3308 = vld [vmem:[%s3278 + $0x74] sm:$0xf]
  %v3309 = vld [vmem:[%s3278 + $0x78] sm:$0xf]
  %v3310 = vld [vmem:[%s3278 + $0x7c] sm:$0xf]
  %v3311 = vld [vmem:[%s3278 + $0x80] sm:$0xf]
  %v3312 = vld [vmem:[%s3278 + $0x84] sm:$0xf]
  %v3313 = vld [vmem:[%s3278 + $0x88] sm:$0xf]
  %v3314 = vld [vmem:[%s3278 + $0x8c] sm:$0xf]
  %v3315 = vld [vmem:[%s3278 + $0x90] sm:$0xf]
  %v3316 = vld [vmem:[%s3278 + $0x94] sm:$0xf]
  %v3317 = vld [vmem:[%s3278 + $0x98] sm:$0xf]
  %v3318 = vld [vmem:[%s3278 + $0x9c] sm:$0xf]
  %v3319 = vld [vmem:[%s3278 + $0xa0] sm:$0xf]
  %v3320 = vld [vmem:[%s3278 + $0xa4] sm:$0xf]
  %v3321 = vld [vmem:[%s3278 + $0xa8] sm:$0xf]
  %v3322 = vld [vmem:[%s3278 + $0xac] sm:$0xf]
  %v3323 = vld [vmem:[%s3278 + $0xb0] sm:$0xf]
  %v3324 = vld [vmem:[%s3278 + $0xb4] sm:$0xf]
  %v3325 = vld [vmem:[%s3278 + $0xb8] sm:$0xf]
  %v3326 = vld [vmem:[%s3278 + $0xbc] sm:$0xf]
  %v3327 = vld [vmem:[%s3278 + $0xc0] sm:$0xf]
  %v3328 = vld [vmem:[%s3278 + $0xc4] sm:$0xf]
  %v3329 = vld [vmem:[%s3278 + $0xc8] sm:$0xf]
  %v3330 = vld [vmem:[%s3278 + $0xcc] sm:$0xf]
  %v3331 = vld [vmem:[%s3278 + $0xd0] sm:$0xf]
  %v3332 = vld [vmem:[%s3278 + $0xd4] sm:$0xf]
  %v3333 = vld [vmem:[%s3278 + $0xd8] sm:$0xf]
  %v3334 = vld [vmem:[%s3278 + $0xdc] sm:$0xf]
  %v3335 = vld [vmem:[%s3278 + $0xe0] sm:$0xf]
  %v3336 = vld [vmem:[%s3278 + $0xe4] sm:$0xf]
  %v3337 = vld [vmem:[%s3278 + $0xe8] sm:$0xf]
  %v3338 = vld [vmem:[%s3278 + $0xec] sm:$0xf]
  %v3339 = vld [vmem:[%s3278 + $0xf0] sm:$0xf]
  %v3340 = vld [vmem:[%s3278 + $0xf4] sm:$0xf]
  %v3341 = vld [vmem:[%s3278 + $0xf8] sm:$0xf]
  %v3342 = vld [vmem:[%s3278 + $0xfc] sm:$0xf]
  %v3343 = vld [vmem:[%s3278 + $0x100] sm:$0xf]
  %v3344 = vld [vmem:[%s3278 + $0x104] sm:$0xf]
  %v3345 = vld [vmem:[%s3278 + $0x108] sm:$0xf]
  %v3346 = vld [vmem:[%s3278 + $0x10c] sm:$0xf]
  %v3347 = vld [vmem:[%s3278 + $0x110] sm:$0xf]
  %v3348 = vld [vmem:[%s3278 + $0x114] sm:$0xf]
  %v3349 = vld [vmem:[%s3278 + $0x118] sm:$0xf]
  %v3350 = vld [vmem:[%s3278 + $0x11c] sm:$0xf]
  %s3351 = scalar_lea.vmem %s5, 4
  %v3352 = vld [vmem:[%s3351] sm:$0x1]
  %v3353 = vrot.slane %v3274, 4
  %v3354 = vrot.slane %v3275, 4
  %v3355 = vrot.slane %v3276, 4
  %v3356 = vrot.slane %v3277, 4
  %v3357 = vsel %vm163, %v3355, %v3356
  %v3358 = vsel %vm163, %v3354, %v3355
  %v3359 = vsel %vm163, %v3353, %v3354
  %v3360 = vsel %vm163, %v3356, %v3353
  %v3361 = vmul.f32 %v3360, %v36
  %v3362 = vmul.f32 %v3359, %v37
  %v3363 = vmul.f32 %v3358, %v38
  %v3364 = vmul.f32 %v3357, %v39
  %v3365 = vrot.slane %v3274, 5
  %v3366 = vrot.slane %v3275, 5
  %v3367 = vrot.slane %v3276, 5
  %v3368 = vrot.slane %v3277, 5
  %v3369 = vsel %vm176, %v3367, %v3368
  %v3370 = vsel %vm176, %v3366, %v3367
  %v3371 = vsel %vm176, %v3365, %v3366
  %v3372 = vsel %vm176, %v3368, %v3365
  %v3373 = vmul.f32 %v3372, %v41
  %v3374 = vmul.f32 %v3371, %v42
  %v3375 = vmul.f32 %v3370, %v43
  %v3376 = vmul.f32 %v3369, %v44
  %v3377 = vrot.slane %v3274, 6
  %v3378 = vrot.slane %v3275, 6
  %v3379 = vrot.slane %v3276, 6
  %v3380 = vrot.slane %v3277, 6
  %v3381 = vsel %vm189, %v3379, %v3380
  %v3382 = vsel %vm189, %v3378, %v3379
  %v3383 = vsel %vm189, %v3377, %v3378
  %v3384 = vsel %vm189, %v3380, %v3377
  %v3385 = vmul.f32 %v3384, %v46
  %v3386 = vmul.f32 %v3383, %v47
  %v3387 = vmul.f32 %v3382, %v48
  %v3388 = vmul.f32 %v3381, %v49
  %v3389 = vrot.slane %v3274, 7
  %v3390 = vrot.slane %v3275, 7
  %v3391 = vrot.slane %v3276, 7
  %v3392 = vrot.slane %v3277, 7
  %v3393 = vsel %vm202, %v3391, %v3392
  %v3394 = vsel %vm202, %v3390, %v3391
  %v3395 = vsel %vm202, %v3389, %v3390
  %v3396 = vsel %vm202, %v3392, %v3389
  %v3397 = vmul.f32 %v3396, %v51
  %v3398 = vmul.f32 %v3395, %v52
  %v3399 = vmul.f32 %v3394, %v53
  %v3400 = vmul.f32 %v3393, %v54
  %v3401 = vmul.f32 %v3274, %v56
  %v3402 = vmul.f32 %v3275, %v57
  %v3403 = vmul.f32 %v3276, %v58
  %v3404 = vmul.f32 %v3277, %v59
  %v3405 = vrot.slane %v3274, 1
  %v3406 = vrot.slane %v3275, 1
  %v3407 = vrot.slane %v3276, 1
  %v3408 = vrot.slane %v3277, 1
  %v3409 = vsel %vm219, %v3407, %v3408
  %v3410 = vsel %vm219, %v3406, %v3407
  %v3411 = vsel %vm219, %v3405, %v3406
  %v3412 = vsel %vm219, %v3408, %v3405
  %v3413 = vmul.f32 %v3411, %v61
  %v3414 = vmul.f32 %v3410, %v62
  %v3415 = vmul.f32 %v3409, %v63
  %v3416 = vmul.f32 %v3412, %v64
  %v3417 = vrot.slane %v3274, 2
  %v3418 = vrot.slane %v3275, 2
  %v3419 = vrot.slane %v3276, 2
  %v3420 = vrot.slane %v3277, 2
  %v3421 = vsel %vm232, %v3419, %v3420
  %v3422 = vsel %vm232, %v3418, %v3419
  %v3423 = vsel %vm232, %v3417, %v3418
  %v3424 = vsel %vm232, %v3420, %v3417
  %v3425 = vmul.f32 %v3423, %v66
  %v3426 = vmul.f32 %v3422, %v67
  %v3427 = vmul.f32 %v3421, %v68
  %v3428 = vmul.f32 %v3424, %v69
  %v3429 = vrot.slane %v3274, 3
  %v3430 = vrot.slane %v3275, 3
  %v3431 = vrot.slane %v3276, 3
  %v3432 = vrot.slane %v3277, 3
  %v3433 = vsel %vm245, %v3431, %v3432
  %v3434 = vsel %vm245, %v3430, %v3431
  %v3435 = vsel %vm245, %v3429, %v3430
  %v3436 = vsel %vm245, %v3432, %v3429
  %v3437 = vmul.f32 %v3435, %v71
  %v3438 = vmul.f32 %v3434, %v72
  %v3439 = vmul.f32 %v3433, %v73
  %v3440 = vmul.f32 %v3436, %v74
  %v3441 = vmul.f32 %v3359, %v76
  %v3442 = vmul.f32 %v3358, %v77
  %v3443 = vmul.f32 %v3357, %v78
  %v3444 = vmul.f32 %v3360, %v79
  %3449 = vrot.lane.b32.xlu0 %v3373, 64
  %v3450 = vpop.permute.xlu0 %3449
  %3451 = vrot.lane.b32.xlu0 %v3374, 64
  %v3452 = vpop.permute.xlu0 %3451
  %3453 = vrot.lane.b32.xlu0 %v3375, 64
  %v3454 = vpop.permute.xlu0 %3453
  %3455 = vrot.lane.b32.xlu0 %v3376, 64
  %v3456 = vpop.permute.xlu0 %3455
  %3465 = vrot.lane.b32.xlu0 %v3397, 64
  %v3466 = vpop.permute.xlu0 %3465
  %3467 = vrot.lane.b32.xlu0 %v3398, 64
  %v3468 = vpop.permute.xlu0 %3467
  %3469 = vrot.lane.b32.xlu0 %v3399, 64
  %v3470 = vpop.permute.xlu0 %3469
  %3471 = vrot.lane.b32.xlu0 %v3400, 64
  %v3472 = vpop.permute.xlu0 %3471
  %3481 = vrot.lane.b32.xlu0 %v3413, 64
  %v3482 = vpop.permute.xlu0 %3481
  %3483 = vrot.lane.b32.xlu0 %v3414, 64
  %v3484 = vpop.permute.xlu0 %3483
  %3485 = vrot.lane.b32.xlu0 %v3415, 64
  %v3486 = vpop.permute.xlu0 %3485
  %3487 = vrot.lane.b32.xlu0 %v3416, 64
  %v3488 = vpop.permute.xlu0 %3487
  %3497 = vrot.lane.b32.xlu0 %v3437, 64
  %v3498 = vpop.permute.xlu0 %3497
  %3499 = vrot.lane.b32.xlu0 %v3438, 64
  %v3500 = vpop.permute.xlu0 %3499
  %3501 = vrot.lane.b32.xlu0 %v3439, 64
  %v3502 = vpop.permute.xlu0 %3501
  %3503 = vrot.lane.b32.xlu0 %v3440, 64
  %v3504 = vpop.permute.xlu0 %3503
  %v3509 = vsel %vm322, %v3361, %v3450
  %v3510 = vsel %vm322, %v3362, %v3452
  %v3511 = vsel %vm322, %v3363, %v3454
  %v3512 = vsel %vm322, %v3364, %v3456
  %v3513 = vsel %vm322, %v3385, %v3466
  %v3514 = vsel %vm322, %v3386, %v3468
  %v3515 = vsel %vm322, %v3387, %v3470
  %v3516 = vsel %vm322, %v3388, %v3472
  %v3517 = vsel %vm322, %v3401, %v3482
  %v3518 = vsel %vm322, %v3402, %v3484
  %v3519 = vsel %vm322, %v3403, %v3486
  %v3520 = vsel %vm322, %v3404, %v3488
  %v3521 = vsel %vm322, %v3425, %v3498
  %v3522 = vsel %vm322, %v3426, %v3500
  %v3523 = vsel %vm322, %v3427, %v3502
  %v3524 = vsel %vm322, %v3428, %v3504
  %v3525 = vpack.c.bf16 %v3510, %v3509
  %v3526 = vpack.c.bf16 %v3514, %v3513
  %v3527 = vpack.c.bf16 %v3518, %v3517
  %v3528 = vpack.c.bf16 %v3522, %v3521
  %v3529 = vpack.c.bf16 %v3442, %v3441
  %v3530 = vpack.c.bf16 %v3512, %v3511
  %v3531 = vpack.c.bf16 %v3516, %v3515
  %v3532 = vpack.c.bf16 %v3520, %v3519
  %v3533 = vpack.c.bf16 %v3524, %v3523
  %v3534 = vpack.c.bf16 %v3444, %v3443
  %v3536 = vlaneseq
  %v3537 = vshrl.u32 %v3536, 7
  %v3538 = vsub.s32 0, %v3537
  %v3539 = vrot.slane %v3352, %v3538
  %v3613 = vunpack.c.l.b16 %v3279
  %v3614 = vunpack.c.l.b16 %v3280
  %v3615 = vunpack.c.l.b16 %v3281
  %v3616 = vunpack.c.l.b16 %v3282
  %v3617 = vunpack.c.l.b16 %v3283
  %v3618 = vunpack.c.l.b16 %v3284
  %v3619 = vunpack.c.l.b16 %v3285
  %v3620 = vunpack.c.l.b16 %v3286
  %v3621 = vunpack.c.l.b16 %v3287
  %v3622 = vunpack.c.l.b16 %v3288
  %v3623 = vunpack.c.l.b16 %v3289
  %v3624 = vunpack.c.l.b16 %v3290
  %v3625 = vunpack.c.l.b16 %v3291
  %v3626 = vunpack.c.l.b16 %v3292
  %v3627 = vunpack.c.l.b16 %v3293
  %v3628 = vunpack.c.l.b16 %v3294
  %v3629 = vunpack.c.l.b16 %v3295
  %v3630 = vunpack.c.l.b16 %v3296
  %v3631 = vunpack.c.l.b16 %v3297
  %v3632 = vunpack.c.l.b16 %v3298
  %v3633 = vunpack.c.l.b16 %v3299
  %v3634 = vunpack.c.l.b16 %v3300
  %v3635 = vunpack.c.l.b16 %v3301
  %v3636 = vunpack.c.l.b16 %v3302
  %v3637 = vunpack.c.l.b16 %v3303
  %v3638 = vunpack.c.l.b16 %v3304
  %v3639 = vunpack.c.l.b16 %v3305
  %v3640 = vunpack.c.l.b16 %v3306
  %v3641 = vunpack.c.l.b16 %v3307
  %v3642 = vunpack.c.l.b16 %v3308
  %v3643 = vunpack.c.l.b16 %v3309
  %v3644 = vunpack.c.l.b16 %v3310
  %v3645 = vunpack.c.l.b16 %v3311
  %v3646 = vunpack.c.l.b16 %v3312
  %v3647 = vunpack.c.l.b16 %v3313
  %v3648 = vunpack.c.l.b16 %v3314
  %v3649 = vunpack.c.l.b16 %v3315
  %v3650 = vunpack.c.l.b16 %v3316
  %v3651 = vunpack.c.l.b16 %v3317
  %v3652 = vunpack.c.l.b16 %v3318
  %v3653 = vunpack.c.l.b16 %v3319
  %v3654 = vunpack.c.l.b16 %v3320
  %v3655 = vunpack.c.l.b16 %v3321
  %v3656 = vunpack.c.l.b16 %v3322
  %v3657 = vunpack.c.l.b16 %v3323
  %v3658 = vunpack.c.l.b16 %v3324
  %v3659 = vunpack.c.l.b16 %v3325
  %v3660 = vunpack.c.l.b16 %v3326
  %v3661 = vunpack.c.l.b16 %v3327
  %v3662 = vunpack.c.l.b16 %v3328
  %v3663 = vunpack.c.l.b16 %v3329
  %v3664 = vunpack.c.l.b16 %v3330
  %v3665 = vunpack.c.l.b16 %v3331
  %v3666 = vunpack.c.l.b16 %v3332
  %v3667 = vunpack.c.l.b16 %v3333
  %v3668 = vunpack.c.l.b16 %v3334
  %v3669 = vunpack.c.l.b16 %v3335
  %v3670 = vunpack.c.l.b16 %v3336
  %v3671 = vunpack.c.l.b16 %v3337
  %v3672 = vunpack.c.l.b16 %v3338
  %v3673 = vunpack.c.l.b16 %v3339
  %v3674 = vunpack.c.l.b16 %v3340
  %v3675 = vunpack.c.l.b16 %v3341
  %v3676 = vunpack.c.l.b16 %v3342
  %v3677 = vunpack.c.l.b16 %v3343
  %v3678 = vunpack.c.l.b16 %v3344
  %v3679 = vunpack.c.l.b16 %v3345
  %v3680 = vunpack.c.l.b16 %v3346
  %v3681 = vunpack.c.l.b16 %v3347
  %v3682 = vunpack.c.l.b16 %v3348
  %v3683 = vunpack.c.l.b16 %v3349
  %v3684 = vunpack.c.l.b16 %v3350
  %v3685 = vpack.c.b16 %v3614, %v3613
  %v3686 = vpack.c.b16 %v3616, %v3615
  %v3687 = vpack.c.b16 %v3618, %v3617
  %v3688 = vpack.c.b16 %v3620, %v3619
  %v3689 = vpack.c.b16 %v3622, %v3621
  %v3690 = vpack.c.b16 %v3624, %v3623
  %v3691 = vpack.c.b16 %v3626, %v3625
  %v3692 = vpack.c.b16 %v3628, %v3627
  %v3693 = vpack.c.b16 %v3630, %v3629
  %v3694 = vpack.c.b16 %v3632, %v3631
  %v3695 = vpack.c.b16 %v3634, %v3633
  %v3696 = vpack.c.b16 %v3636, %v3635
  %v3697 = vpack.c.b16 %v3638, %v3637
  %v3698 = vpack.c.b16 %v3640, %v3639
  %v3699 = vpack.c.b16 %v3642, %v3641
  %v3700 = vpack.c.b16 %v3644, %v3643
  %v3701 = vpack.c.b16 %v3646, %v3645
  %v3702 = vpack.c.b16 %v3648, %v3647
  %v3703 = vpack.c.b16 %v3650, %v3649
  %v3704 = vpack.c.b16 %v3652, %v3651
  %v3705 = vpack.c.b16 %v3654, %v3653
  %v3706 = vpack.c.b16 %v3656, %v3655
  %v3707 = vpack.c.b16 %v3658, %v3657
  %v3708 = vpack.c.b16 %v3660, %v3659
  %v3709 = vpack.c.b16 %v3662, %v3661
  %v3710 = vpack.c.b16 %v3664, %v3663
  %v3711 = vpack.c.b16 %v3666, %v3665
  %v3712 = vpack.c.b16 %v3668, %v3667
  %v3713 = vpack.c.b16 %v3670, %v3669
  %v3714 = vpack.c.b16 %v3672, %v3671
  %v3715 = vpack.c.b16 %v3674, %v3673
  %v3716 = vpack.c.b16 %v3676, %v3675
  %v3717 = vpack.c.b16 %v3678, %v3677
  %v3718 = vpack.c.b16 %v3680, %v3679
  %v3719 = vpack.c.b16 %v3682, %v3681
  %v3720 = vpack.c.b16 %v3684, %v3683
  %v3758 = vsel %vm322, %v3529, 0
  %v3761 = vsel %vm322, %v3534, 0
  %3763 = vmatprep.subr.bf16.mxu0 0
  %3764 = vmatpush1.bf16.msra.mxu0 %v3692
  %3765 = vmatprep.subr.bf16.mxu0 0
  %3766 = vmatpush1.bf16.msra.mxu0 %v3691
  %3767 = vmatprep.subr.bf16.mxu0 0
  %3768 = vmatpush1.bf16.msra.mxu0 %v3690
  %3769 = vmatprep.subr.bf16.mxu0 0
  %3770 = vmatpush1.bf16.msra.mxu0 %v3689
  %3771 = vmatprep.subr.bf16.mxu0 0
  %3772 = vmatpush1.bf16.msra.mxu0 %v3688
  %3773 = vmatprep.subr.bf16.mxu0 0
  %3774 = vmatpush1.bf16.msra.mxu0 %v3687
  %3775 = vmatprep.subr.bf16.mxu0 0
  %3776 = vmatpush1.bf16.msra.mxu0 %v3686
  %3777 = vmatprep.subr.bf16.mxu0 0
  %3778 = vmatpush1.bf16.msra.mxu0 %v3685
  %3779 = vmatprep.subr.bf16.mxu0 0
  %3780 = vmatpush2.bf16.msra.mxu0 %v3700
  %3781 = vmatprep.subr.bf16.mxu0 0
  %3782 = vmatpush2.bf16.msra.mxu0 %v3699
  %3783 = vmatprep.subr.bf16.mxu0 0
  %3784 = vmatpush2.bf16.msra.mxu0 %v3698
  %3785 = vmatprep.subr.bf16.mxu0 0
  %3786 = vmatpush2.bf16.msra.mxu0 %v3697
  %3787 = vmatprep.subr.bf16.mxu0 0
  %3788 = vmatpush2.bf16.msra.mxu0 %v3696
  %3789 = vmatprep.subr.bf16.mxu0 0
  %3790 = vmatpush2.bf16.msra.mxu0 %v3695
  %3791 = vmatprep.subr.bf16.mxu0 0
  %3792 = vmatpush2.bf16.msra.mxu0 %v3694
  %3793 = vmatprep.subr.bf16.mxu0 0
  %3794 = vmatpush2.bf16.msra.mxu0 %v3693
  %3795 = vmatprep.mubr.bf16.mxu0 %v3526
  %3796 = vmatmul.mubr.bf16.gmra.mxu0 %v3525
  %v3797 = vpop.f32.mrf.mxu0
  %v3798 = vadd.f32 %v3539, %v3797
  %v3799 = vpop.f32.mrf.mxu0
  %v3800 = vpop.f32.mrf.mxu0
  %v3801 = vadd.f32 %v3539, %v3800
  %v3802 = vpop.f32.mrf.mxu0
  %3803 = vmatprep.mubr.bf16.mxu0 %v3531
  %3804 = vmatmul.mubr.bf16.gmra.mxu0 %v3530
  %v3805 = vpop.f32.mrf.mxu0
  %v3806 = vadd.f32 %v3539, %v3805
  %v3807 = vpop.f32.mrf.mxu0
  %v3808 = vpop.f32.mrf.mxu0
  %v3809 = vadd.f32 %v3539, %v3808
  %v3810 = vpop.f32.mrf.mxu0
  %3811 = vdwg.mxu0
  %3812 = vmatprep.subr.bf16.mxu0 0
  %3813 = vmatpush1.bf16.msra.mxu0 %v3708
  %3814 = vmatprep.subr.bf16.mxu0 0
  %3815 = vmatpush1.bf16.msra.mxu0 %v3707
  %3816 = vmatprep.subr.bf16.mxu0 0
  %3817 = vmatpush1.bf16.msra.mxu0 %v3706
  %3818 = vmatprep.subr.bf16.mxu0 0
  %3819 = vmatpush1.bf16.msra.mxu0 %v3705
  %3820 = vmatprep.subr.bf16.mxu0 0
  %3821 = vmatpush1.bf16.msra.mxu0 %v3704
  %3822 = vmatprep.subr.bf16.mxu0 0
  %3823 = vmatpush1.bf16.msra.mxu0 %v3703
  %3824 = vmatprep.subr.bf16.mxu0 0
  %3825 = vmatpush1.bf16.msra.mxu0 %v3702
  %3826 = vmatprep.subr.bf16.mxu0 0
  %3827 = vmatpush1.bf16.msra.mxu0 %v3701
  %3828 = vmatprep.subr.bf16.mxu0 0
  %3829 = vmatpush2.bf16.msra.mxu0 %v3716
  %3830 = vmatprep.subr.bf16.mxu0 0
  %3831 = vmatpush2.bf16.msra.mxu0 %v3715
  %3832 = vmatprep.subr.bf16.mxu0 0
  %3833 = vmatpush2.bf16.msra.mxu0 %v3714
  %3834 = vmatprep.subr.bf16.mxu0 0
  %3835 = vmatpush2.bf16.msra.mxu0 %v3713
  %3836 = vmatprep.subr.bf16.mxu0 0
  %3837 = vmatpush2.bf16.msra.mxu0 %v3712
  %3838 = vmatprep.subr.bf16.mxu0 0
  %3839 = vmatpush2.bf16.msra.mxu0 %v3711
  %3840 = vmatprep.subr.bf16.mxu0 0
  %3841 = vmatpush2.bf16.msra.mxu0 %v3710
  %3842 = vmatprep.subr.bf16.mxu0 0
  %3843 = vmatpush2.bf16.msra.mxu0 %v3709
  %3844 = vmatprep.mubr.bf16.mxu0 %v3528
  %3845 = vmatmul.mubr.bf16.gmra.mxu0 %v3527
  %v3846 = vpop.f32.mrf.mxu0
  %v3847 = vadd.f32 %v3798, %v3846
  %v3848 = vpop.f32.mrf.mxu0
  %v3849 = vpop.f32.mrf.mxu0
  %v3850 = vadd.f32 %v3801, %v3849
  %v3851 = vpop.f32.mrf.mxu0
  %3852 = vmatprep.mubr.bf16.mxu0 %v3533
  %3853 = vmatmul.mubr.bf16.gmra.mxu0 %v3532
  %v3854 = vpop.f32.mrf.mxu0
  %v3855 = vadd.f32 %v3806, %v3854
  %v3856 = vpop.f32.mrf.mxu0
  %v3857 = vpop.f32.mrf.mxu0
  %v3858 = vadd.f32 %v3809, %v3857
  %v3859 = vpop.f32.mrf.mxu0
  %3860 = vdwg.mxu0
  %3861 = vmatprep.subr.bf16.mxu0 0
  %3862 = vmatpush1.bf16.msra.mxu0 0
  %3863 = vmatprep.subr.bf16.mxu0 0
  %3864 = vmatpush1.bf16.msra.mxu0 0
  %3865 = vmatprep.subr.bf16.mxu0 0
  %3866 = vmatpush1.bf16.msra.mxu0 0
  %3867 = vmatprep.subr.bf16.mxu0 0
  %3868 = vmatpush1.bf16.msra.mxu0 0
  %3869 = vmatprep.subr.bf16.mxu0 0
  %3870 = vmatpush1.bf16.msra.mxu0 %v3720
  %3871 = vmatprep.subr.bf16.mxu0 0
  %3872 = vmatpush1.bf16.msra.mxu0 %v3719
  %3873 = vmatprep.subr.bf16.mxu0 0
  %3874 = vmatpush1.bf16.msra.mxu0 %v3718
  %3875 = vmatprep.subr.bf16.mxu0 0
  %3876 = vmatpush1.bf16.msra.mxu0 %v3717
  %3877 = vmatprep.subr.bf16.mxu0 0
  %3878 = vmatpush2.bf16.msra.mxu0 0
  %3879 = vmatprep.subr.bf16.mxu0 0
  %3880 = vmatpush2.bf16.msra.mxu0 0
  %3881 = vmatprep.subr.bf16.mxu0 0
  %3882 = vmatpush2.bf16.msra.mxu0 0
  %3883 = vmatprep.subr.bf16.mxu0 0
  %3884 = vmatpush2.bf16.msra.mxu0 0
  %3885 = vmatprep.subr.bf16.mxu0 0
  %3886 = vmatpush2.bf16.msra.mxu0 0
  %3887 = vmatprep.subr.bf16.mxu0 0
  %3888 = vmatpush2.bf16.msra.mxu0 0
  %3889 = vmatprep.subr.bf16.mxu0 0
  %3890 = vmatpush2.bf16.msra.mxu0 0
  %3891 = vmatprep.subr.bf16.mxu0 0
  %3892 = vmatpush2.bf16.msra.mxu0 0
  %3893 = vmatprep.mubr.bf16.mxu0 0
  %3894 = vmatmul.mubr.bf16.gmra.mxu0 %v3758
  %v3895 = vpop.f32.mrf.mxu0
  %v3896 = vadd.f32 %v3847, %v3895
  %v3897 = vpop.f32.mrf.mxu0
  %v3898 = vpop.f32.mrf.mxu0
  %v3899 = vadd.f32 %v3850, %v3898
  %v3900 = vpop.f32.mrf.mxu0
  %3901 = vmatprep.mubr.bf16.mxu0 0
  %3902 = vmatmul.mubr.bf16.gmra.mxu0 %v3761
  %v3903 = vpop.f32.mrf.mxu0
  %v3904 = vadd.f32 %v3855, %v3903
  %v3905 = vpop.f32.mrf.mxu0
  %v3906 = vpop.f32.mrf.mxu0
  %v3907 = vadd.f32 %v3858, %v3906
  %v3908 = vpop.f32.mrf.mxu0
  %3909 = vdwg.mxu0
  %v3910 = vmax.f32 %v3896, 0.0
  %v3911 = vmax.f32 %v3899, 0.0
  %v3912 = vmax.f32 %v3904, 0.0
  %v3913 = vmax.f32 %v3907, 0.0
  %s3914 = scalar_lea.vmem %s4, 1440
  %v3915 = vld [vmem:[%s3914] sm:$0xf]
  %v3916 = vld [vmem:[%s3914 + $0x4] sm:$0xf]
  %v3917 = vld [vmem:[%s3914 + $0x8] sm:$0xf]
  %v3918 = vld [vmem:[%s3914 + $0xc] sm:$0xf]
  %v3919 = vld [vmem:[%s3914 + $0x10] sm:$0xf]
  %v3920 = vld [vmem:[%s3914 + $0x14] sm:$0xf]
  %v3921 = vld [vmem:[%s3914 + $0x18] sm:$0xf]
  %v3922 = vld [vmem:[%s3914 + $0x1c] sm:$0xf]
  %v3923 = vld [vmem:[%s3914 + $0x20] sm:$0xf]
  %v3924 = vld [vmem:[%s3914 + $0x24] sm:$0xf]
  %v3925 = vld [vmem:[%s3914 + $0x28] sm:$0xf]
  %v3926 = vld [vmem:[%s3914 + $0x2c] sm:$0xf]
  %v3927 = vld [vmem:[%s3914 + $0x30] sm:$0xf]
  %v3928 = vld [vmem:[%s3914 + $0x34] sm:$0xf]
  %v3929 = vld [vmem:[%s3914 + $0x38] sm:$0xf]
  %v3930 = vld [vmem:[%s3914 + $0x3c] sm:$0xf]
  %v3931 = vld [vmem:[%s3914 + $0x40] sm:$0xf]
  %v3932 = vld [vmem:[%s3914 + $0x44] sm:$0xf]
  %v3933 = vld [vmem:[%s3914 + $0x48] sm:$0xf]
  %v3934 = vld [vmem:[%s3914 + $0x4c] sm:$0xf]
  %v3935 = vld [vmem:[%s3914 + $0x50] sm:$0xf]
  %v3936 = vld [vmem:[%s3914 + $0x54] sm:$0xf]
  %v3937 = vld [vmem:[%s3914 + $0x58] sm:$0xf]
  %v3938 = vld [vmem:[%s3914 + $0x5c] sm:$0xf]
  %v3939 = vld [vmem:[%s3914 + $0x60] sm:$0xf]
  %v3940 = vld [vmem:[%s3914 + $0x64] sm:$0xf]
  %v3941 = vld [vmem:[%s3914 + $0x68] sm:$0xf]
  %v3942 = vld [vmem:[%s3914 + $0x6c] sm:$0xf]
  %v3943 = vld [vmem:[%s3914 + $0x70] sm:$0xf]
  %v3944 = vld [vmem:[%s3914 + $0x74] sm:$0xf]
  %v3945 = vld [vmem:[%s3914 + $0x78] sm:$0xf]
  %v3946 = vld [vmem:[%s3914 + $0x7c] sm:$0xf]
  %v3947 = vld [vmem:[%s3914 + $0x80] sm:$0xf]
  %v3948 = vld [vmem:[%s3914 + $0x84] sm:$0xf]
  %v3949 = vld [vmem:[%s3914 + $0x88] sm:$0xf]
  %v3950 = vld [vmem:[%s3914 + $0x8c] sm:$0xf]
  %v3951 = vld [vmem:[%s3914 + $0x90] sm:$0xf]
  %v3952 = vld [vmem:[%s3914 + $0x94] sm:$0xf]
  %v3953 = vld [vmem:[%s3914 + $0x98] sm:$0xf]
  %v3954 = vld [vmem:[%s3914 + $0x9c] sm:$0xf]
  %v3955 = vld [vmem:[%s3914 + $0xa0] sm:$0xf]
  %v3956 = vld [vmem:[%s3914 + $0xa4] sm:$0xf]
  %v3957 = vld [vmem:[%s3914 + $0xa8] sm:$0xf]
  %v3958 = vld [vmem:[%s3914 + $0xac] sm:$0xf]
  %v3959 = vld [vmem:[%s3914 + $0xb0] sm:$0xf]
  %v3960 = vld [vmem:[%s3914 + $0xb4] sm:$0xf]
  %v3961 = vld [vmem:[%s3914 + $0xb8] sm:$0xf]
  %v3962 = vld [vmem:[%s3914 + $0xbc] sm:$0xf]
  %v3963 = vld [vmem:[%s3914 + $0xc0] sm:$0xf]
  %v3964 = vld [vmem:[%s3914 + $0xc4] sm:$0xf]
  %v3965 = vld [vmem:[%s3914 + $0xc8] sm:$0xf]
  %v3966 = vld [vmem:[%s3914 + $0xcc] sm:$0xf]
  %v3967 = vld [vmem:[%s3914 + $0xd0] sm:$0xf]
  %v3968 = vld [vmem:[%s3914 + $0xd4] sm:$0xf]
  %v3969 = vld [vmem:[%s3914 + $0xd8] sm:$0xf]
  %v3970 = vld [vmem:[%s3914 + $0xdc] sm:$0xf]
  %v3971 = vld [vmem:[%s3914 + $0xe0] sm:$0xf]
  %v3972 = vld [vmem:[%s3914 + $0xe4] sm:$0xf]
  %v3973 = vld [vmem:[%s3914 + $0xe8] sm:$0xf]
  %v3974 = vld [vmem:[%s3914 + $0xec] sm:$0xf]
  %v3975 = vld [vmem:[%s3914 + $0xf0] sm:$0xf]
  %v3976 = vld [vmem:[%s3914 + $0xf4] sm:$0xf]
  %v3977 = vld [vmem:[%s3914 + $0xf8] sm:$0xf]
  %v3978 = vld [vmem:[%s3914 + $0xfc] sm:$0xf]
  %v3979 = vld [vmem:[%s3914 + $0x100] sm:$0xf]
  %v3980 = vld [vmem:[%s3914 + $0x104] sm:$0xf]
  %v3981 = vld [vmem:[%s3914 + $0x108] sm:$0xf]
  %v3982 = vld [vmem:[%s3914 + $0x10c] sm:$0xf]
  %v3983 = vld [vmem:[%s3914 + $0x110] sm:$0xf]
  %v3984 = vld [vmem:[%s3914 + $0x114] sm:$0xf]
  %v3985 = vld [vmem:[%s3914 + $0x118] sm:$0xf]
  %v3986 = vld [vmem:[%s3914 + $0x11c] sm:$0xf]
  %s3987 = scalar_lea.vmem %s5, 5
  %v3988 = vld [vmem:[%s3987] sm:$0x1]
  %v3989 = vrot.slane %v3910, 4
  %v3990 = vrot.slane %v3911, 4
  %v3991 = vrot.slane %v3912, 4
  %v3992 = vrot.slane %v3913, 4
  %v3993 = vsel %vm163, %v3991, %v3992
  %v3994 = vsel %vm163, %v3990, %v3991
  %v3995 = vsel %vm163, %v3989, %v3990
  %v3996 = vsel %vm163, %v3992, %v3989
  %v3997 = vmul.f32 %v3996, %v36
  %v3998 = vmul.f32 %v3995, %v37
  %v3999 = vmul.f32 %v3994, %v38
  %v4000 = vmul.f32 %v3993, %v39
  %v4001 = vrot.slane %v3910, 5
  %v4002 = vrot.slane %v3911, 5
  %v4003 = vrot.slane %v3912, 5
  %v4004 = vrot.slane %v3913, 5
  %v4005 = vsel %vm176, %v4003, %v4004
  %v4006 = vsel %vm176, %v4002, %v4003
  %v4007 = vsel %vm176, %v4001, %v4002
  %v4008 = vsel %vm176, %v4004, %v4001
  %v4009 = vmul.f32 %v4008, %v41
  %v4010 = vmul.f32 %v4007, %v42
  %v4011 = vmul.f32 %v4006, %v43
  %v4012 = vmul.f32 %v4005, %v44
  %v4013 = vrot.slane %v3910, 6
  %v4014 = vrot.slane %v3911, 6
  %v4015 = vrot.slane %v3912, 6
  %v4016 = vrot.slane %v3913, 6
  %v4017 = vsel %vm189, %v4015, %v4016
  %v4018 = vsel %vm189, %v4014, %v4015
  %v4019 = vsel %vm189, %v4013, %v4014
  %v4020 = vsel %vm189, %v4016, %v4013
  %v4021 = vmul.f32 %v4020, %v46
  %v4022 = vmul.f32 %v4019, %v47
  %v4023 = vmul.f32 %v4018, %v48
  %v4024 = vmul.f32 %v4017, %v49
  %v4025 = vrot.slane %v3910, 7
  %v4026 = vrot.slane %v3911, 7
  %v4027 = vrot.slane %v3912, 7
  %v4028 = vrot.slane %v3913, 7
  %v4029 = vsel %vm202, %v4027, %v4028
  %v4030 = vsel %vm202, %v4026, %v4027
  %v4031 = vsel %vm202, %v4025, %v4026
  %v4032 = vsel %vm202, %v4028, %v4025
  %v4033 = vmul.f32 %v4032, %v51
  %v4034 = vmul.f32 %v4031, %v52
  %v4035 = vmul.f32 %v4030, %v53
  %v4036 = vmul.f32 %v4029, %v54
  %v4037 = vmul.f32 %v3910, %v56
  %v4038 = vmul.f32 %v3911, %v57
  %v4039 = vmul.f32 %v3912, %v58
  %v4040 = vmul.f32 %v3913, %v59
  %v4041 = vrot.slane %v3910, 1
  %v4042 = vrot.slane %v3911, 1
  %v4043 = vrot.slane %v3912, 1
  %v4044 = vrot.slane %v3913, 1
  %v4045 = vsel %vm219, %v4043, %v4044
  %v4046 = vsel %vm219, %v4042, %v4043
  %v4047 = vsel %vm219, %v4041, %v4042
  %v4048 = vsel %vm219, %v4044, %v4041
  %v4049 = vmul.f32 %v4047, %v61
  %v4050 = vmul.f32 %v4046, %v62
  %v4051 = vmul.f32 %v4045, %v63
  %v4052 = vmul.f32 %v4048, %v64
  %v4053 = vrot.slane %v3910, 2
  %v4054 = vrot.slane %v3911, 2
  %v4055 = vrot.slane %v3912, 2
  %v4056 = vrot.slane %v3913, 2
  %v4057 = vsel %vm232, %v4055, %v4056
  %v4058 = vsel %vm232, %v4054, %v4055
  %v4059 = vsel %vm232, %v4053, %v4054
  %v4060 = vsel %vm232, %v4056, %v4053
  %v4061 = vmul.f32 %v4059, %v66
  %v4062 = vmul.f32 %v4058, %v67
  %v4063 = vmul.f32 %v4057, %v68
  %v4064 = vmul.f32 %v4060, %v69
  %v4065 = vrot.slane %v3910, 3
  %v4066 = vrot.slane %v3911, 3
  %v4067 = vrot.slane %v3912, 3
  %v4068 = vrot.slane %v3913, 3
  %v4069 = vsel %vm245, %v4067, %v4068
  %v4070 = vsel %vm245, %v4066, %v4067
  %v4071 = vsel %vm245, %v4065, %v4066
  %v4072 = vsel %vm245, %v4068, %v4065
  %v4073 = vmul.f32 %v4071, %v71
  %v4074 = vmul.f32 %v4070, %v72
  %v4075 = vmul.f32 %v4069, %v73
  %v4076 = vmul.f32 %v4072, %v74
  %v4077 = vmul.f32 %v3995, %v76
  %v4078 = vmul.f32 %v3994, %v77
  %v4079 = vmul.f32 %v3993, %v78
  %v4080 = vmul.f32 %v3996, %v79
  %4085 = vrot.lane.b32.xlu0 %v4009, 64
  %v4086 = vpop.permute.xlu0 %4085
  %4087 = vrot.lane.b32.xlu0 %v4010, 64
  %v4088 = vpop.permute.xlu0 %4087
  %4089 = vrot.lane.b32.xlu0 %v4011, 64
  %v4090 = vpop.permute.xlu0 %4089
  %4091 = vrot.lane.b32.xlu0 %v4012, 64
  %v4092 = vpop.permute.xlu0 %4091
  %4101 = vrot.lane.b32.xlu0 %v4033, 64
  %v4102 = vpop.permute.xlu0 %4101
  %4103 = vrot.lane.b32.xlu0 %v4034, 64
  %v4104 = vpop.permute.xlu0 %4103
  %4105 = vrot.lane.b32.xlu0 %v4035, 64
  %v4106 = vpop.permute.xlu0 %4105
  %4107 = vrot.lane.b32.xlu0 %v4036, 64
  %v4108 = vpop.permute.xlu0 %4107
  %4117 = vrot.lane.b32.xlu0 %v4049, 64
  %v4118 = vpop.permute.xlu0 %4117
  %4119 = vrot.lane.b32.xlu0 %v4050, 64
  %v4120 = vpop.permute.xlu0 %4119
  %4121 = vrot.lane.b32.xlu0 %v4051, 64
  %v4122 = vpop.permute.xlu0 %4121
  %4123 = vrot.lane.b32.xlu0 %v4052, 64
  %v4124 = vpop.permute.xlu0 %4123
  %4133 = vrot.lane.b32.xlu0 %v4073, 64
  %v4134 = vpop.permute.xlu0 %4133
  %4135 = vrot.lane.b32.xlu0 %v4074, 64
  %v4136 = vpop.permute.xlu0 %4135
  %4137 = vrot.lane.b32.xlu0 %v4075, 64
  %v4138 = vpop.permute.xlu0 %4137
  %4139 = vrot.lane.b32.xlu0 %v4076, 64
  %v4140 = vpop.permute.xlu0 %4139
  %v4145 = vsel %vm322, %v3997, %v4086
  %v4146 = vsel %vm322, %v3998, %v4088
  %v4147 = vsel %vm322, %v3999, %v4090
  %v4148 = vsel %vm322, %v4000, %v4092
  %v4149 = vsel %vm322, %v4021, %v4102
  %v4150 = vsel %vm322, %v4022, %v4104
  %v4151 = vsel %vm322, %v4023, %v4106
  %v4152 = vsel %vm322, %v4024, %v4108
  %v4153 = vsel %vm322, %v4037, %v4118
  %v4154 = vsel %vm322, %v4038, %v4120
  %v4155 = vsel %vm322, %v4039, %v4122
  %v4156 = vsel %vm322, %v4040, %v4124
  %v4157 = vsel %vm322, %v4061, %v4134
  %v4158 = vsel %vm322, %v4062, %v4136
  %v4159 = vsel %vm322, %v4063, %v4138
  %v4160 = vsel %vm322, %v4064, %v4140
  %v4161 = vpack.c.bf16 %v4146, %v4145
  %v4162 = vpack.c.bf16 %v4150, %v4149
  %v4163 = vpack.c.bf16 %v4154, %v4153
  %v4164 = vpack.c.bf16 %v4158, %v4157
  %v4165 = vpack.c.bf16 %v4078, %v4077
  %v4166 = vpack.c.bf16 %v4148, %v4147
  %v4167 = vpack.c.bf16 %v4152, %v4151
  %v4168 = vpack.c.bf16 %v4156, %v4155
  %v4169 = vpack.c.bf16 %v4160, %v4159
  %v4170 = vpack.c.bf16 %v4080, %v4079
  %v4172 = vlaneseq
  %v4173 = vshrl.u32 %v4172, 7
  %v4174 = vsub.s32 0, %v4173
  %v4175 = vrot.slane %v3988, %v4174
  %v4249 = vunpack.c.l.b16 %v3915
  %v4250 = vunpack.c.l.b16 %v3916
  %v4251 = vunpack.c.l.b16 %v3917
  %v4252 = vunpack.c.l.b16 %v3918
  %v4253 = vunpack.c.l.b16 %v3919
  %v4254 = vunpack.c.l.b16 %v3920
  %v4255 = vunpack.c.l.b16 %v3921
  %v4256 = vunpack.c.l.b16 %v3922
  %v4257 = vunpack.c.l.b16 %v3923
  %v4258 = vunpack.c.l.b16 %v3924
  %v4259 = vunpack.c.l.b16 %v3925
  %v4260 = vunpack.c.l.b16 %v3926
  %v4261 = vunpack.c.l.b16 %v3927
  %v4262 = vunpack.c.l.b16 %v3928
  %v4263 = vunpack.c.l.b16 %v3929
  %v4264 = vunpack.c.l.b16 %v3930
  %v4265 = vunpack.c.l.b16 %v3931
  %v4266 = vunpack.c.l.b16 %v3932
  %v4267 = vunpack.c.l.b16 %v3933
  %v4268 = vunpack.c.l.b16 %v3934
  %v4269 = vunpack.c.l.b16 %v3935
  %v4270 = vunpack.c.l.b16 %v3936
  %v4271 = vunpack.c.l.b16 %v3937
  %v4272 = vunpack.c.l.b16 %v3938
  %v4273 = vunpack.c.l.b16 %v3939
  %v4274 = vunpack.c.l.b16 %v3940
  %v4275 = vunpack.c.l.b16 %v3941
  %v4276 = vunpack.c.l.b16 %v3942
  %v4277 = vunpack.c.l.b16 %v3943
  %v4278 = vunpack.c.l.b16 %v3944
  %v4279 = vunpack.c.l.b16 %v3945
  %v4280 = vunpack.c.l.b16 %v3946
  %v4281 = vunpack.c.l.b16 %v3947
  %v4282 = vunpack.c.l.b16 %v3948
  %v4283 = vunpack.c.l.b16 %v3949
  %v4284 = vunpack.c.l.b16 %v3950
  %v4285 = vunpack.c.l.b16 %v3951
  %v4286 = vunpack.c.l.b16 %v3952
  %v4287 = vunpack.c.l.b16 %v3953
  %v4288 = vunpack.c.l.b16 %v3954
  %v4289 = vunpack.c.l.b16 %v3955
  %v4290 = vunpack.c.l.b16 %v3956
  %v4291 = vunpack.c.l.b16 %v3957
  %v4292 = vunpack.c.l.b16 %v3958
  %v4293 = vunpack.c.l.b16 %v3959
  %v4294 = vunpack.c.l.b16 %v3960
  %v4295 = vunpack.c.l.b16 %v3961
  %v4296 = vunpack.c.l.b16 %v3962
  %v4297 = vunpack.c.l.b16 %v3963
  %v4298 = vunpack.c.l.b16 %v3964
  %v4299 = vunpack.c.l.b16 %v3965
  %v4300 = vunpack.c.l.b16 %v3966
  %v4301 = vunpack.c.l.b16 %v3967
  %v4302 = vunpack.c.l.b16 %v3968
  %v4303 = vunpack.c.l.b16 %v3969
  %v4304 = vunpack.c.l.b16 %v3970
  %v4305 = vunpack.c.l.b16 %v3971
  %v4306 = vunpack.c.l.b16 %v3972
  %v4307 = vunpack.c.l.b16 %v3973
  %v4308 = vunpack.c.l.b16 %v3974
  %v4309 = vunpack.c.l.b16 %v3975
  %v4310 = vunpack.c.l.b16 %v3976
  %v4311 = vunpack.c.l.b16 %v3977
  %v4312 = vunpack.c.l.b16 %v3978
  %v4313 = vunpack.c.l.b16 %v3979
  %v4314 = vunpack.c.l.b16 %v3980
  %v4315 = vunpack.c.l.b16 %v3981
  %v4316 = vunpack.c.l.b16 %v3982
  %v4317 = vunpack.c.l.b16 %v3983
  %v4318 = vunpack.c.l.b16 %v3984
  %v4319 = vunpack.c.l.b16 %v3985
  %v4320 = vunpack.c.l.b16 %v3986
  %v4321 = vpack.c.b16 %v4250, %v4249
  %v4322 = vpack.c.b16 %v4252, %v4251
  %v4323 = vpack.c.b16 %v4254, %v4253
  %v4324 = vpack.c.b16 %v4256, %v4255
  %v4325 = vpack.c.b16 %v4258, %v4257
  %v4326 = vpack.c.b16 %v4260, %v4259
  %v4327 = vpack.c.b16 %v4262, %v4261
  %v4328 = vpack.c.b16 %v4264, %v4263
  %v4329 = vpack.c.b16 %v4266, %v4265
  %v4330 = vpack.c.b16 %v4268, %v4267
  %v4331 = vpack.c.b16 %v4270, %v4269
  %v4332 = vpack.c.b16 %v4272, %v4271
  %v4333 = vpack.c.b16 %v4274, %v4273
  %v4334 = vpack.c.b16 %v4276, %v4275
  %v4335 = vpack.c.b16 %v4278, %v4277
  %v4336 = vpack.c.b16 %v4280, %v4279
  %v4337 = vpack.c.b16 %v4282, %v4281
  %v4338 = vpack.c.b16 %v4284, %v4283
  %v4339 = vpack.c.b16 %v4286, %v4285
  %v4340 = vpack.c.b16 %v4288, %v4287
  %v4341 = vpack.c.b16 %v4290, %v4289
  %v4342 = vpack.c.b16 %v4292, %v4291
  %v4343 = vpack.c.b16 %v4294, %v4293
  %v4344 = vpack.c.b16 %v4296, %v4295
  %v4345 = vpack.c.b16 %v4298, %v4297
  %v4346 = vpack.c.b16 %v4300, %v4299
  %v4347 = vpack.c.b16 %v4302, %v4301
  %v4348 = vpack.c.b16 %v4304, %v4303
  %v4349 = vpack.c.b16 %v4306, %v4305
  %v4350 = vpack.c.b16 %v4308, %v4307
  %v4351 = vpack.c.b16 %v4310, %v4309
  %v4352 = vpack.c.b16 %v4312, %v4311
  %v4353 = vpack.c.b16 %v4314, %v4313
  %v4354 = vpack.c.b16 %v4316, %v4315
  %v4355 = vpack.c.b16 %v4318, %v4317
  %v4356 = vpack.c.b16 %v4320, %v4319
  %v4394 = vsel %vm322, %v4165, 0
  %v4397 = vsel %vm322, %v4170, 0
  %4399 = vmatprep.subr.bf16.mxu0 0
  %4400 = vmatpush1.bf16.msra.mxu0 %v4328
  %4401 = vmatprep.subr.bf16.mxu0 0
  %4402 = vmatpush1.bf16.msra.mxu0 %v4327
  %4403 = vmatprep.subr.bf16.mxu0 0
  %4404 = vmatpush1.bf16.msra.mxu0 %v4326
  %4405 = vmatprep.subr.bf16.mxu0 0
  %4406 = vmatpush1.bf16.msra.mxu0 %v4325
  %4407 = vmatprep.subr.bf16.mxu0 0
  %4408 = vmatpush1.bf16.msra.mxu0 %v4324
  %4409 = vmatprep.subr.bf16.mxu0 0
  %4410 = vmatpush1.bf16.msra.mxu0 %v4323
  %4411 = vmatprep.subr.bf16.mxu0 0
  %4412 = vmatpush1.bf16.msra.mxu0 %v4322
  %4413 = vmatprep.subr.bf16.mxu0 0
  %4414 = vmatpush1.bf16.msra.mxu0 %v4321
  %4415 = vmatprep.subr.bf16.mxu0 0
  %4416 = vmatpush2.bf16.msra.mxu0 %v4336
  %4417 = vmatprep.subr.bf16.mxu0 0
  %4418 = vmatpush2.bf16.msra.mxu0 %v4335
  %4419 = vmatprep.subr.bf16.mxu0 0
  %4420 = vmatpush2.bf16.msra.mxu0 %v4334
  %4421 = vmatprep.subr.bf16.mxu0 0
  %4422 = vmatpush2.bf16.msra.mxu0 %v4333
  %4423 = vmatprep.subr.bf16.mxu0 0
  %4424 = vmatpush2.bf16.msra.mxu0 %v4332
  %4425 = vmatprep.subr.bf16.mxu0 0
  %4426 = vmatpush2.bf16.msra.mxu0 %v4331
  %4427 = vmatprep.subr.bf16.mxu0 0
  %4428 = vmatpush2.bf16.msra.mxu0 %v4330
  %4429 = vmatprep.subr.bf16.mxu0 0
  %4430 = vmatpush2.bf16.msra.mxu0 %v4329
  %4431 = vmatprep.mubr.bf16.mxu0 %v4162
  %4432 = vmatmul.mubr.bf16.gmra.mxu0 %v4161
  %v4433 = vpop.f32.mrf.mxu0
  %v4434 = vadd.f32 %v4175, %v4433
  %v4435 = vpop.f32.mrf.mxu0
  %v4436 = vpop.f32.mrf.mxu0
  %v4437 = vadd.f32 %v4175, %v4436
  %v4438 = vpop.f32.mrf.mxu0
  %4439 = vmatprep.mubr.bf16.mxu0 %v4167
  %4440 = vmatmul.mubr.bf16.gmra.mxu0 %v4166
  %v4441 = vpop.f32.mrf.mxu0
  %v4442 = vadd.f32 %v4175, %v4441
  %v4443 = vpop.f32.mrf.mxu0
  %v4444 = vpop.f32.mrf.mxu0
  %v4445 = vadd.f32 %v4175, %v4444
  %v4446 = vpop.f32.mrf.mxu0
  %4447 = vdwg.mxu0
  %4448 = vmatprep.subr.bf16.mxu0 0
  %4449 = vmatpush1.bf16.msra.mxu0 %v4344
  %4450 = vmatprep.subr.bf16.mxu0 0
  %4451 = vmatpush1.bf16.msra.mxu0 %v4343
  %4452 = vmatprep.subr.bf16.mxu0 0
  %4453 = vmatpush1.bf16.msra.mxu0 %v4342
  %4454 = vmatprep.subr.bf16.mxu0 0
  %4455 = vmatpush1.bf16.msra.mxu0 %v4341
  %4456 = vmatprep.subr.bf16.mxu0 0
  %4457 = vmatpush1.bf16.msra.mxu0 %v4340
  %4458 = vmatprep.subr.bf16.mxu0 0
  %4459 = vmatpush1.bf16.msra.mxu0 %v4339
  %4460 = vmatprep.subr.bf16.mxu0 0
  %4461 = vmatpush1.bf16.msra.mxu0 %v4338
  %4462 = vmatprep.subr.bf16.mxu0 0
  %4463 = vmatpush1.bf16.msra.mxu0 %v4337
  %4464 = vmatprep.subr.bf16.mxu0 0
  %4465 = vmatpush2.bf16.msra.mxu0 %v4352
  %4466 = vmatprep.subr.bf16.mxu0 0
  %4467 = vmatpush2.bf16.msra.mxu0 %v4351
  %4468 = vmatprep.subr.bf16.mxu0 0
  %4469 = vmatpush2.bf16.msra.mxu0 %v4350
  %4470 = vmatprep.subr.bf16.mxu0 0
  %4471 = vmatpush2.bf16.msra.mxu0 %v4349
  %4472 = vmatprep.subr.bf16.mxu0 0
  %4473 = vmatpush2.bf16.msra.mxu0 %v4348
  %4474 = vmatprep.subr.bf16.mxu0 0
  %4475 = vmatpush2.bf16.msra.mxu0 %v4347
  %4476 = vmatprep.subr.bf16.mxu0 0
  %4477 = vmatpush2.bf16.msra.mxu0 %v4346
  %4478 = vmatprep.subr.bf16.mxu0 0
  %4479 = vmatpush2.bf16.msra.mxu0 %v4345
  %4480 = vmatprep.mubr.bf16.mxu0 %v4164
  %4481 = vmatmul.mubr.bf16.gmra.mxu0 %v4163
  %v4482 = vpop.f32.mrf.mxu0
  %v4483 = vadd.f32 %v4434, %v4482
  %v4484 = vpop.f32.mrf.mxu0
  %v4485 = vpop.f32.mrf.mxu0
  %v4486 = vadd.f32 %v4437, %v4485
  %v4487 = vpop.f32.mrf.mxu0
  %4488 = vmatprep.mubr.bf16.mxu0 %v4169
  %4489 = vmatmul.mubr.bf16.gmra.mxu0 %v4168
  %v4490 = vpop.f32.mrf.mxu0
  %v4491 = vadd.f32 %v4442, %v4490
  %v4492 = vpop.f32.mrf.mxu0
  %v4493 = vpop.f32.mrf.mxu0
  %v4494 = vadd.f32 %v4445, %v4493
  %v4495 = vpop.f32.mrf.mxu0
  %4496 = vdwg.mxu0
  %4497 = vmatprep.subr.bf16.mxu0 0
  %4498 = vmatpush1.bf16.msra.mxu0 0
  %4499 = vmatprep.subr.bf16.mxu0 0
  %4500 = vmatpush1.bf16.msra.mxu0 0
  %4501 = vmatprep.subr.bf16.mxu0 0
  %4502 = vmatpush1.bf16.msra.mxu0 0
  %4503 = vmatprep.subr.bf16.mxu0 0
  %4504 = vmatpush1.bf16.msra.mxu0 0
  %4505 = vmatprep.subr.bf16.mxu0 0
  %4506 = vmatpush1.bf16.msra.mxu0 %v4356
  %4507 = vmatprep.subr.bf16.mxu0 0
  %4508 = vmatpush1.bf16.msra.mxu0 %v4355
  %4509 = vmatprep.subr.bf16.mxu0 0
  %4510 = vmatpush1.bf16.msra.mxu0 %v4354
  %4511 = vmatprep.subr.bf16.mxu0 0
  %4512 = vmatpush1.bf16.msra.mxu0 %v4353
  %4513 = vmatprep.subr.bf16.mxu0 0
  %4514 = vmatpush2.bf16.msra.mxu0 0
  %4515 = vmatprep.subr.bf16.mxu0 0
  %4516 = vmatpush2.bf16.msra.mxu0 0
  %4517 = vmatprep.subr.bf16.mxu0 0
  %4518 = vmatpush2.bf16.msra.mxu0 0
  %4519 = vmatprep.subr.bf16.mxu0 0
  %4520 = vmatpush2.bf16.msra.mxu0 0
  %4521 = vmatprep.subr.bf16.mxu0 0
  %4522 = vmatpush2.bf16.msra.mxu0 0
  %4523 = vmatprep.subr.bf16.mxu0 0
  %4524 = vmatpush2.bf16.msra.mxu0 0
  %4525 = vmatprep.subr.bf16.mxu0 0
  %4526 = vmatpush2.bf16.msra.mxu0 0
  %4527 = vmatprep.subr.bf16.mxu0 0
  %4528 = vmatpush2.bf16.msra.mxu0 0
  %4529 = vmatprep.mubr.bf16.mxu0 0
  %4530 = vmatmul.mubr.bf16.gmra.mxu0 %v4394
  %v4531 = vpop.f32.mrf.mxu0
  %v4532 = vadd.f32 %v4483, %v4531
  %v4533 = vpop.f32.mrf.mxu0
  %v4534 = vpop.f32.mrf.mxu0
  %v4535 = vadd.f32 %v4486, %v4534
  %v4536 = vpop.f32.mrf.mxu0
  %4537 = vmatprep.mubr.bf16.mxu0 0
  %4538 = vmatmul.mubr.bf16.gmra.mxu0 %v4397
  %v4539 = vpop.f32.mrf.mxu0
  %v4540 = vadd.f32 %v4491, %v4539
  %v4541 = vpop.f32.mrf.mxu0
  %v4542 = vpop.f32.mrf.mxu0
  %v4543 = vadd.f32 %v4494, %v4542
  %v4544 = vpop.f32.mrf.mxu0
  %4545 = vdwg.mxu0
  %v4546 = vadd.f32 %v4532, %v3274
  %v4547 = vadd.f32 %v4535, %v3275
  %v4548 = vadd.f32 %v4540, %v3276
  %v4549 = vadd.f32 %v4543, %v3277
  %v4550 = vmax.f32 %v4546, 0.0
  %v4551 = vmax.f32 %v4547, 0.0
  %v4552 = vmax.f32 %v4548, 0.0
  %v4553 = vmax.f32 %v4549, 0.0
  %v4554 = vld [vmem:[%s6] sm:$0xf]
  %v4555 = vld [vmem:[%s6 + $0x4] sm:$0xf]
  %v4556 = vld [vmem:[%s6 + $0x8] sm:$0xf]
  %v4557 = vld [vmem:[%s6 + $0xc] sm:$0xf]
  %v4558 = vld [vmem:[%s6 + $0x10] sm:$0xf]
  %v4559 = vld [vmem:[%s6 + $0x14] sm:$0xf]
  %v4560 = vld [vmem:[%s6 + $0x18] sm:$0xf]
  %v4561 = vld [vmem:[%s6 + $0x1c] sm:$0xf]
  %v4562 = vld [vmem:[%s6 + $0x20] sm:$0xf]
  %v4563 = vld [vmem:[%s6 + $0x24] sm:$0xf]
  %v4564 = vld [vmem:[%s6 + $0x28] sm:$0xf]
  %v4565 = vld [vmem:[%s6 + $0x2c] sm:$0xf]
  %v4566 = vld [vmem:[%s6 + $0x30] sm:$0xf]
  %v4567 = vld [vmem:[%s6 + $0x34] sm:$0xf]
  %v4568 = vld [vmem:[%s6 + $0x38] sm:$0xf]
  %v4569 = vld [vmem:[%s6 + $0x3c] sm:$0xf]
  %v4570 = vld [vmem:[%s6 + $0x40] sm:$0xf]
  %v4571 = vld [vmem:[%s6 + $0x44] sm:$0xf]
  %v4572 = vld [vmem:[%s6 + $0x48] sm:$0xf]
  %v4573 = vld [vmem:[%s6 + $0x4c] sm:$0xf]
  %v4574 = vld [vmem:[%s6 + $0x50] sm:$0xf]
  %v4575 = vld [vmem:[%s6 + $0x54] sm:$0xf]
  %v4576 = vld [vmem:[%s6 + $0x58] sm:$0xf]
  %v4577 = vld [vmem:[%s6 + $0x5c] sm:$0xf]
  %v4578 = vld [vmem:[%s6 + $0x60] sm:$0xf]
  %v4579 = vld [vmem:[%s6 + $0x64] sm:$0xf]
  %v4580 = vld [vmem:[%s6 + $0x68] sm:$0xf]
  %v4581 = vld [vmem:[%s6 + $0x6c] sm:$0xf]
  %v4582 = vld [vmem:[%s6 + $0x70] sm:$0xf]
  %v4583 = vld [vmem:[%s6 + $0x74] sm:$0xf]
  %v4584 = vld [vmem:[%s6 + $0x78] sm:$0xf]
  %v4585 = vld [vmem:[%s6 + $0x7c] sm:$0xf]
  %v4586 = vld [vmem:[%s6 + $0x80] sm:$0xf]
  %v4587 = vld [vmem:[%s6 + $0x84] sm:$0xf]
  %v4588 = vld [vmem:[%s6 + $0x88] sm:$0xf]
  %v4589 = vld [vmem:[%s6 + $0x8c] sm:$0xf]
  %v4590 = vld [vmem:[%s6 + $0x90] sm:$0xf]
  %v4591 = vld [vmem:[%s6 + $0x94] sm:$0xf]
  %v4592 = vld [vmem:[%s6 + $0x98] sm:$0xf]
  %v4593 = vld [vmem:[%s6 + $0x9c] sm:$0xf]
  %v4594 = vld [vmem:[%s6 + $0xa0] sm:$0xf]
  %v4595 = vld [vmem:[%s6 + $0xa4] sm:$0xf]
  %v4596 = vld [vmem:[%s6 + $0xa8] sm:$0xf]
  %v4597 = vld [vmem:[%s6 + $0xac] sm:$0xf]
  %v4598 = vld [vmem:[%s6 + $0xb0] sm:$0xf]
  %v4599 = vld [vmem:[%s6 + $0xb4] sm:$0xf]
  %v4600 = vld [vmem:[%s6 + $0xb8] sm:$0xf]
  %v4601 = vld [vmem:[%s6 + $0xbc] sm:$0xf]
  %v4602 = vld [vmem:[%s6 + $0xc0] sm:$0xf]
  %v4603 = vld [vmem:[%s6 + $0xc4] sm:$0xf]
  %v4604 = vld [vmem:[%s6 + $0xc8] sm:$0xf]
  %v4605 = vld [vmem:[%s6 + $0xcc] sm:$0xf]
  %v4606 = vld [vmem:[%s6 + $0xd0] sm:$0xf]
  %v4607 = vld [vmem:[%s6 + $0xd4] sm:$0xf]
  %v4608 = vld [vmem:[%s6 + $0xd8] sm:$0xf]
  %v4609 = vld [vmem:[%s6 + $0xdc] sm:$0xf]
  %v4610 = vld [vmem:[%s6 + $0xe0] sm:$0xf]
  %v4611 = vld [vmem:[%s6 + $0xe4] sm:$0xf]
  %v4612 = vld [vmem:[%s6 + $0xe8] sm:$0xf]
  %v4613 = vld [vmem:[%s6 + $0xec] sm:$0xf]
  %v4614 = vld [vmem:[%s6 + $0xf0] sm:$0xf]
  %v4615 = vld [vmem:[%s6 + $0xf4] sm:$0xf]
  %v4616 = vld [vmem:[%s6 + $0xf8] sm:$0xf]
  %v4617 = vld [vmem:[%s6 + $0xfc] sm:$0xf]
  %v4618 = vld [vmem:[%s6 + $0x100] sm:$0xf]
  %v4619 = vld [vmem:[%s6 + $0x104] sm:$0xf]
  %v4620 = vld [vmem:[%s6 + $0x108] sm:$0xf]
  %v4621 = vld [vmem:[%s6 + $0x10c] sm:$0xf]
  %v4622 = vld [vmem:[%s6 + $0x110] sm:$0xf]
  %v4623 = vld [vmem:[%s6 + $0x114] sm:$0xf]
  %v4624 = vld [vmem:[%s6 + $0x118] sm:$0xf]
  %v4625 = vld [vmem:[%s6 + $0x11c] sm:$0xf]
  %v4626 = vld [vmem:[%s7] sm:$0x1]
  %v4627 = vrot.slane %v4550, 4
  %v4628 = vrot.slane %v4551, 4
  %v4629 = vrot.slane %v4552, 4
  %v4630 = vrot.slane %v4553, 4
  %v4631 = vsel %vm163, %v4629, %v4630
  %v4632 = vsel %vm163, %v4628, %v4629
  %v4633 = vsel %vm163, %v4627, %v4628
  %v4634 = vsel %vm163, %v4630, %v4627
  %v4635 = vmul.f32 %v4634, %v36
  %v4636 = vmul.f32 %v4633, %v37
  %v4637 = vmul.f32 %v4632, %v38
  %v4638 = vmul.f32 %v4631, %v39
  %v4639 = vrot.slane %v4550, 5
  %v4640 = vrot.slane %v4551, 5
  %v4641 = vrot.slane %v4552, 5
  %v4642 = vrot.slane %v4553, 5
  %v4643 = vsel %vm176, %v4641, %v4642
  %v4644 = vsel %vm176, %v4640, %v4641
  %v4645 = vsel %vm176, %v4639, %v4640
  %v4646 = vsel %vm176, %v4642, %v4639
  %v4647 = vmul.f32 %v4646, %v41
  %v4648 = vmul.f32 %v4645, %v42
  %v4649 = vmul.f32 %v4644, %v43
  %v4650 = vmul.f32 %v4643, %v44
  %v4651 = vrot.slane %v4550, 6
  %v4652 = vrot.slane %v4551, 6
  %v4653 = vrot.slane %v4552, 6
  %v4654 = vrot.slane %v4553, 6
  %v4655 = vsel %vm189, %v4653, %v4654
  %v4656 = vsel %vm189, %v4652, %v4653
  %v4657 = vsel %vm189, %v4651, %v4652
  %v4658 = vsel %vm189, %v4654, %v4651
  %v4659 = vmul.f32 %v4658, %v46
  %v4660 = vmul.f32 %v4657, %v47
  %v4661 = vmul.f32 %v4656, %v48
  %v4662 = vmul.f32 %v4655, %v49
  %v4663 = vrot.slane %v4550, 7
  %v4664 = vrot.slane %v4551, 7
  %v4665 = vrot.slane %v4552, 7
  %v4666 = vrot.slane %v4553, 7
  %v4667 = vsel %vm202, %v4665, %v4666
  %v4668 = vsel %vm202, %v4664, %v4665
  %v4669 = vsel %vm202, %v4663, %v4664
  %v4670 = vsel %vm202, %v4666, %v4663
  %v4671 = vmul.f32 %v4670, %v51
  %v4672 = vmul.f32 %v4669, %v52
  %v4673 = vmul.f32 %v4668, %v53
  %v4674 = vmul.f32 %v4667, %v54
  %v4675 = vmul.f32 %v4550, %v56
  %v4676 = vmul.f32 %v4551, %v57
  %v4677 = vmul.f32 %v4552, %v58
  %v4678 = vmul.f32 %v4553, %v59
  %v4679 = vrot.slane %v4550, 1
  %v4680 = vrot.slane %v4551, 1
  %v4681 = vrot.slane %v4552, 1
  %v4682 = vrot.slane %v4553, 1
  %v4683 = vsel %vm219, %v4681, %v4682
  %v4684 = vsel %vm219, %v4680, %v4681
  %v4685 = vsel %vm219, %v4679, %v4680
  %v4686 = vsel %vm219, %v4682, %v4679
  %v4687 = vmul.f32 %v4685, %v61
  %v4688 = vmul.f32 %v4684, %v62
  %v4689 = vmul.f32 %v4683, %v63
  %v4690 = vmul.f32 %v4686, %v64
  %v4691 = vrot.slane %v4550, 2
  %v4692 = vrot.slane %v4551, 2
  %v4693 = vrot.slane %v4552, 2
  %v4694 = vrot.slane %v4553, 2
  %v4695 = vsel %vm232, %v4693, %v4694
  %v4696 = vsel %vm232, %v4692, %v4693
  %v4697 = vsel %vm232, %v4691, %v4692
  %v4698 = vsel %vm232, %v4694, %v4691
  %v4699 = vmul.f32 %v4697, %v66
  %v4700 = vmul.f32 %v4696, %v67
  %v4701 = vmul.f32 %v4695, %v68
  %v4702 = vmul.f32 %v4698, %v69
  %v4703 = vrot.slane %v4550, 3
  %v4704 = vrot.slane %v4551, 3
  %v4705 = vrot.slane %v4552, 3
  %v4706 = vrot.slane %v4553, 3
  %v4707 = vsel %vm245, %v4705, %v4706
  %v4708 = vsel %vm245, %v4704, %v4705
  %v4709 = vsel %vm245, %v4703, %v4704
  %v4710 = vsel %vm245, %v4706, %v4703
  %v4711 = vmul.f32 %v4709, %v71
  %v4712 = vmul.f32 %v4708, %v72
  %v4713 = vmul.f32 %v4707, %v73
  %v4714 = vmul.f32 %v4710, %v74
  %v4715 = vmul.f32 %v4633, %v76
  %v4716 = vmul.f32 %v4632, %v77
  %v4717 = vmul.f32 %v4631, %v78
  %v4718 = vmul.f32 %v4634, %v79
  %4723 = vrot.lane.b32.xlu0 %v4647, 64
  %v4724 = vpop.permute.xlu0 %4723
  %4725 = vrot.lane.b32.xlu0 %v4648, 64
  %v4726 = vpop.permute.xlu0 %4725
  %4727 = vrot.lane.b32.xlu0 %v4649, 64
  %v4728 = vpop.permute.xlu0 %4727
  %4729 = vrot.lane.b32.xlu0 %v4650, 64
  %v4730 = vpop.permute.xlu0 %4729
  %4739 = vrot.lane.b32.xlu0 %v4671, 64
  %v4740 = vpop.permute.xlu0 %4739
  %4741 = vrot.lane.b32.xlu0 %v4672, 64
  %v4742 = vpop.permute.xlu0 %4741
  %4743 = vrot.lane.b32.xlu0 %v4673, 64
  %v4744 = vpop.permute.xlu0 %4743
  %4745 = vrot.lane.b32.xlu0 %v4674, 64
  %v4746 = vpop.permute.xlu0 %4745
  %4755 = vrot.lane.b32.xlu0 %v4687, 64
  %v4756 = vpop.permute.xlu0 %4755
  %4757 = vrot.lane.b32.xlu0 %v4688, 64
  %v4758 = vpop.permute.xlu0 %4757
  %4759 = vrot.lane.b32.xlu0 %v4689, 64
  %v4760 = vpop.permute.xlu0 %4759
  %4761 = vrot.lane.b32.xlu0 %v4690, 64
  %v4762 = vpop.permute.xlu0 %4761
  %4771 = vrot.lane.b32.xlu0 %v4711, 64
  %v4772 = vpop.permute.xlu0 %4771
  %4773 = vrot.lane.b32.xlu0 %v4712, 64
  %v4774 = vpop.permute.xlu0 %4773
  %4775 = vrot.lane.b32.xlu0 %v4713, 64
  %v4776 = vpop.permute.xlu0 %4775
  %4777 = vrot.lane.b32.xlu0 %v4714, 64
  %v4778 = vpop.permute.xlu0 %4777
  %v4783 = vsel %vm322, %v4635, %v4724
  %v4784 = vsel %vm322, %v4636, %v4726
  %v4785 = vsel %vm322, %v4637, %v4728
  %v4786 = vsel %vm322, %v4638, %v4730
  %v4787 = vsel %vm322, %v4659, %v4740
  %v4788 = vsel %vm322, %v4660, %v4742
  %v4789 = vsel %vm322, %v4661, %v4744
  %v4790 = vsel %vm322, %v4662, %v4746
  %v4791 = vsel %vm322, %v4675, %v4756
  %v4792 = vsel %vm322, %v4676, %v4758
  %v4793 = vsel %vm322, %v4677, %v4760
  %v4794 = vsel %vm322, %v4678, %v4762
  %v4795 = vsel %vm322, %v4699, %v4772
  %v4796 = vsel %vm322, %v4700, %v4774
  %v4797 = vsel %vm322, %v4701, %v4776
  %v4798 = vsel %vm322, %v4702, %v4778
  %v4799 = vpack.c.bf16 %v4784, %v4783
  %v4800 = vpack.c.bf16 %v4788, %v4787
  %v4801 = vpack.c.bf16 %v4792, %v4791
  %v4802 = vpack.c.bf16 %v4796, %v4795
  %v4803 = vpack.c.bf16 %v4716, %v4715
  %v4804 = vpack.c.bf16 %v4786, %v4785
  %v4805 = vpack.c.bf16 %v4790, %v4789
  %v4806 = vpack.c.bf16 %v4794, %v4793
  %v4807 = vpack.c.bf16 %v4798, %v4797
  %v4808 = vpack.c.bf16 %v4718, %v4717
  %v4810 = vlaneseq
  %v4811 = vshrl.u32 %v4810, 7
  %v4812 = vsub.s32 0, %v4811
  %v4813 = vrot.slane %v4626, %v4812
  %v4887 = vunpack.c.l.b16 %v4554
  %v4888 = vunpack.c.l.b16 %v4555
  %v4889 = vunpack.c.l.b16 %v4556
  %v4890 = vunpack.c.l.b16 %v4557
  %v4891 = vunpack.c.l.b16 %v4558
  %v4892 = vunpack.c.l.b16 %v4559
  %v4893 = vunpack.c.l.b16 %v4560
  %v4894 = vunpack.c.l.b16 %v4561
  %v4895 = vunpack.c.l.b16 %v4562
  %v4896 = vunpack.c.l.b16 %v4563
  %v4897 = vunpack.c.l.b16 %v4564
  %v4898 = vunpack.c.l.b16 %v4565
  %v4899 = vunpack.c.l.b16 %v4566
  %v4900 = vunpack.c.l.b16 %v4567
  %v4901 = vunpack.c.l.b16 %v4568
  %v4902 = vunpack.c.l.b16 %v4569
  %v4903 = vunpack.c.l.b16 %v4570
  %v4904 = vunpack.c.l.b16 %v4571
  %v4905 = vunpack.c.l.b16 %v4572
  %v4906 = vunpack.c.l.b16 %v4573
  %v4907 = vunpack.c.l.b16 %v4574
  %v4908 = vunpack.c.l.b16 %v4575
  %v4909 = vunpack.c.l.b16 %v4576
  %v4910 = vunpack.c.l.b16 %v4577
  %v4911 = vunpack.c.l.b16 %v4578
  %v4912 = vunpack.c.l.b16 %v4579
  %v4913 = vunpack.c.l.b16 %v4580
  %v4914 = vunpack.c.l.b16 %v4581
  %v4915 = vunpack.c.l.b16 %v4582
  %v4916 = vunpack.c.l.b16 %v4583
  %v4917 = vunpack.c.l.b16 %v4584
  %v4918 = vunpack.c.l.b16 %v4585
  %v4919 = vunpack.c.l.b16 %v4586
  %v4920 = vunpack.c.l.b16 %v4587
  %v4921 = vunpack.c.l.b16 %v4588
  %v4922 = vunpack.c.l.b16 %v4589
  %v4923 = vunpack.c.l.b16 %v4590
  %v4924 = vunpack.c.l.b16 %v4591
  %v4925 = vunpack.c.l.b16 %v4592
  %v4926 = vunpack.c.l.b16 %v4593
  %v4927 = vunpack.c.l.b16 %v4594
  %v4928 = vunpack.c.l.b16 %v4595
  %v4929 = vunpack.c.l.b16 %v4596
  %v4930 = vunpack.c.l.b16 %v4597
  %v4931 = vunpack.c.l.b16 %v4598
  %v4932 = vunpack.c.l.b16 %v4599
  %v4933 = vunpack.c.l.b16 %v4600
  %v4934 = vunpack.c.l.b16 %v4601
  %v4935 = vunpack.c.l.b16 %v4602
  %v4936 = vunpack.c.l.b16 %v4603
  %v4937 = vunpack.c.l.b16 %v4604
  %v4938 = vunpack.c.l.b16 %v4605
  %v4939 = vunpack.c.l.b16 %v4606
  %v4940 = vunpack.c.l.b16 %v4607
  %v4941 = vunpack.c.l.b16 %v4608
  %v4942 = vunpack.c.l.b16 %v4609
  %v4943 = vunpack.c.l.b16 %v4610
  %v4944 = vunpack.c.l.b16 %v4611
  %v4945 = vunpack.c.l.b16 %v4612
  %v4946 = vunpack.c.l.b16 %v4613
  %v4947 = vunpack.c.l.b16 %v4614
  %v4948 = vunpack.c.l.b16 %v4615
  %v4949 = vunpack.c.l.b16 %v4616
  %v4950 = vunpack.c.l.b16 %v4617
  %v4951 = vunpack.c.l.b16 %v4618
  %v4952 = vunpack.c.l.b16 %v4619
  %v4953 = vunpack.c.l.b16 %v4620
  %v4954 = vunpack.c.l.b16 %v4621
  %v4955 = vunpack.c.l.b16 %v4622
  %v4956 = vunpack.c.l.b16 %v4623
  %v4957 = vunpack.c.l.b16 %v4624
  %v4958 = vunpack.c.l.b16 %v4625
  %v4959 = vpack.c.b16 %v4888, %v4887
  %v4960 = vpack.c.b16 %v4890, %v4889
  %v4961 = vpack.c.b16 %v4892, %v4891
  %v4962 = vpack.c.b16 %v4894, %v4893
  %v4963 = vpack.c.b16 %v4896, %v4895
  %v4964 = vpack.c.b16 %v4898, %v4897
  %v4965 = vpack.c.b16 %v4900, %v4899
  %v4966 = vpack.c.b16 %v4902, %v4901
  %v4967 = vpack.c.b16 %v4904, %v4903
  %v4968 = vpack.c.b16 %v4906, %v4905
  %v4969 = vpack.c.b16 %v4908, %v4907
  %v4970 = vpack.c.b16 %v4910, %v4909
  %v4971 = vpack.c.b16 %v4912, %v4911
  %v4972 = vpack.c.b16 %v4914, %v4913
  %v4973 = vpack.c.b16 %v4916, %v4915
  %v4974 = vpack.c.b16 %v4918, %v4917
  %v4975 = vpack.c.b16 %v4920, %v4919
  %v4976 = vpack.c.b16 %v4922, %v4921
  %v4977 = vpack.c.b16 %v4924, %v4923
  %v4978 = vpack.c.b16 %v4926, %v4925
  %v4979 = vpack.c.b16 %v4928, %v4927
  %v4980 = vpack.c.b16 %v4930, %v4929
  %v4981 = vpack.c.b16 %v4932, %v4931
  %v4982 = vpack.c.b16 %v4934, %v4933
  %v4983 = vpack.c.b16 %v4936, %v4935
  %v4984 = vpack.c.b16 %v4938, %v4937
  %v4985 = vpack.c.b16 %v4940, %v4939
  %v4986 = vpack.c.b16 %v4942, %v4941
  %v4987 = vpack.c.b16 %v4944, %v4943
  %v4988 = vpack.c.b16 %v4946, %v4945
  %v4989 = vpack.c.b16 %v4948, %v4947
  %v4990 = vpack.c.b16 %v4950, %v4949
  %v4991 = vpack.c.b16 %v4952, %v4951
  %v4992 = vpack.c.b16 %v4954, %v4953
  %v4993 = vpack.c.b16 %v4956, %v4955
  %v4994 = vpack.c.b16 %v4958, %v4957
  %v5032 = vsel %vm322, %v4803, 0
  %v5035 = vsel %vm322, %v4808, 0
  %5037 = vmatprep.subr.bf16.mxu0 0
  %5038 = vmatpush1.bf16.msra.mxu0 %v4966
  %5039 = vmatprep.subr.bf16.mxu0 0
  %5040 = vmatpush1.bf16.msra.mxu0 %v4965
  %5041 = vmatprep.subr.bf16.mxu0 0
  %5042 = vmatpush1.bf16.msra.mxu0 %v4964
  %5043 = vmatprep.subr.bf16.mxu0 0
  %5044 = vmatpush1.bf16.msra.mxu0 %v4963
  %5045 = vmatprep.subr.bf16.mxu0 0
  %5046 = vmatpush1.bf16.msra.mxu0 %v4962
  %5047 = vmatprep.subr.bf16.mxu0 0
  %5048 = vmatpush1.bf16.msra.mxu0 %v4961
  %5049 = vmatprep.subr.bf16.mxu0 0
  %5050 = vmatpush1.bf16.msra.mxu0 %v4960
  %5051 = vmatprep.subr.bf16.mxu0 0
  %5052 = vmatpush1.bf16.msra.mxu0 %v4959
  %5053 = vmatprep.subr.bf16.mxu0 0
  %5054 = vmatpush2.bf16.msra.mxu0 %v4974
  %5055 = vmatprep.subr.bf16.mxu0 0
  %5056 = vmatpush2.bf16.msra.mxu0 %v4973
  %5057 = vmatprep.subr.bf16.mxu0 0
  %5058 = vmatpush2.bf16.msra.mxu0 %v4972
  %5059 = vmatprep.subr.bf16.mxu0 0
  %5060 = vmatpush2.bf16.msra.mxu0 %v4971
  %5061 = vmatprep.subr.bf16.mxu0 0
  %5062 = vmatpush2.bf16.msra.mxu0 %v4970
  %5063 = vmatprep.subr.bf16.mxu0 0
  %5064 = vmatpush2.bf16.msra.mxu0 %v4969
  %5065 = vmatprep.subr.bf16.mxu0 0
  %5066 = vmatpush2.bf16.msra.mxu0 %v4968
  %5067 = vmatprep.subr.bf16.mxu0 0
  %5068 = vmatpush2.bf16.msra.mxu0 %v4967
  %5069 = vmatprep.mubr.bf16.mxu0 %v4800
  %5070 = vmatmul.mubr.bf16.gmra.mxu0 %v4799
  %v5071 = vpop.f32.mrf.mxu0
  %v5072 = vadd.f32 %v4813, %v5071
  %v5073 = vpop.f32.mrf.mxu0
  %v5074 = vpop.f32.mrf.mxu0
  %v5075 = vadd.f32 %v4813, %v5074
  %v5076 = vpop.f32.mrf.mxu0
  %5077 = vmatprep.mubr.bf16.mxu0 %v4805
  %5078 = vmatmul.mubr.bf16.gmra.mxu0 %v4804
  %v5079 = vpop.f32.mrf.mxu0
  %v5080 = vadd.f32 %v4813, %v5079
  %v5081 = vpop.f32.mrf.mxu0
  %v5082 = vpop.f32.mrf.mxu0
  %v5083 = vadd.f32 %v4813, %v5082
  %v5084 = vpop.f32.mrf.mxu0
  %5085 = vdwg.mxu0
  %5086 = vmatprep.subr.bf16.mxu0 0
  %5087 = vmatpush1.bf16.msra.mxu0 %v4982
  %5088 = vmatprep.subr.bf16.mxu0 0
  %5089 = vmatpush1.bf16.msra.mxu0 %v4981
  %5090 = vmatprep.subr.bf16.mxu0 0
  %5091 = vmatpush1.bf16.msra.mxu0 %v4980
  %5092 = vmatprep.subr.bf16.mxu0 0
  %5093 = vmatpush1.bf16.msra.mxu0 %v4979
  %5094 = vmatprep.subr.bf16.mxu0 0
  %5095 = vmatpush1.bf16.msra.mxu0 %v4978
  %5096 = vmatprep.subr.bf16.mxu0 0
  %5097 = vmatpush1.bf16.msra.mxu0 %v4977
  %5098 = vmatprep.subr.bf16.mxu0 0
  %5099 = vmatpush1.bf16.msra.mxu0 %v4976
  %5100 = vmatprep.subr.bf16.mxu0 0
  %5101 = vmatpush1.bf16.msra.mxu0 %v4975
  %5102 = vmatprep.subr.bf16.mxu0 0
  %5103 = vmatpush2.bf16.msra.mxu0 %v4990
  %5104 = vmatprep.subr.bf16.mxu0 0
  %5105 = vmatpush2.bf16.msra.mxu0 %v4989
  %5106 = vmatprep.subr.bf16.mxu0 0
  %5107 = vmatpush2.bf16.msra.mxu0 %v4988
  %5108 = vmatprep.subr.bf16.mxu0 0
  %5109 = vmatpush2.bf16.msra.mxu0 %v4987
  %5110 = vmatprep.subr.bf16.mxu0 0
  %5111 = vmatpush2.bf16.msra.mxu0 %v4986
  %5112 = vmatprep.subr.bf16.mxu0 0
  %5113 = vmatpush2.bf16.msra.mxu0 %v4985
  %5114 = vmatprep.subr.bf16.mxu0 0
  %5115 = vmatpush2.bf16.msra.mxu0 %v4984
  %5116 = vmatprep.subr.bf16.mxu0 0
  %5117 = vmatpush2.bf16.msra.mxu0 %v4983
  %5118 = vmatprep.mubr.bf16.mxu0 %v4802
  %5119 = vmatmul.mubr.bf16.gmra.mxu0 %v4801
  %v5120 = vpop.f32.mrf.mxu0
  %v5121 = vadd.f32 %v5072, %v5120
  %v5122 = vpop.f32.mrf.mxu0
  %v5123 = vpop.f32.mrf.mxu0
  %v5124 = vadd.f32 %v5075, %v5123
  %v5125 = vpop.f32.mrf.mxu0
  %5126 = vmatprep.mubr.bf16.mxu0 %v4807
  %5127 = vmatmul.mubr.bf16.gmra.mxu0 %v4806
  %v5128 = vpop.f32.mrf.mxu0
  %v5129 = vadd.f32 %v5080, %v5128
  %v5130 = vpop.f32.mrf.mxu0
  %v5131 = vpop.f32.mrf.mxu0
  %v5132 = vadd.f32 %v5083, %v5131
  %v5133 = vpop.f32.mrf.mxu0
  %5134 = vdwg.mxu0
  %5135 = vmatprep.subr.bf16.mxu0 0
  %5136 = vmatpush1.bf16.msra.mxu0 0
  %5137 = vmatprep.subr.bf16.mxu0 0
  %5138 = vmatpush1.bf16.msra.mxu0 0
  %5139 = vmatprep.subr.bf16.mxu0 0
  %5140 = vmatpush1.bf16.msra.mxu0 0
  %5141 = vmatprep.subr.bf16.mxu0 0
  %5142 = vmatpush1.bf16.msra.mxu0 0
  %5143 = vmatprep.subr.bf16.mxu0 0
  %5144 = vmatpush1.bf16.msra.mxu0 %v4994
  %5145 = vmatprep.subr.bf16.mxu0 0
  %5146 = vmatpush1.bf16.msra.mxu0 %v4993
  %5147 = vmatprep.subr.bf16.mxu0 0
  %5148 = vmatpush1.bf16.msra.mxu0 %v4992
  %5149 = vmatprep.subr.bf16.mxu0 0
  %5150 = vmatpush1.bf16.msra.mxu0 %v4991
  %5151 = vmatprep.subr.bf16.mxu0 0
  %5152 = vmatpush2.bf16.msra.mxu0 0
  %5153 = vmatprep.subr.bf16.mxu0 0
  %5154 = vmatpush2.bf16.msra.mxu0 0
  %5155 = vmatprep.subr.bf16.mxu0 0
  %5156 = vmatpush2.bf16.msra.mxu0 0
  %5157 = vmatprep.subr.bf16.mxu0 0
  %5158 = vmatpush2.bf16.msra.mxu0 0
  %5159 = vmatprep.subr.bf16.mxu0 0
  %5160 = vmatpush2.bf16.msra.mxu0 0
  %5161 = vmatprep.subr.bf16.mxu0 0
  %5162 = vmatpush2.bf16.msra.mxu0 0
  %5163 = vmatprep.subr.bf16.mxu0 0
  %5164 = vmatpush2.bf16.msra.mxu0 0
  %5165 = vmatprep.subr.bf16.mxu0 0
  %5166 = vmatpush2.bf16.msra.mxu0 0
  %5167 = vmatprep.mubr.bf16.mxu0 0
  %5168 = vmatmul.mubr.bf16.gmra.mxu0 %v5032
  %v5169 = vpop.f32.mrf.mxu0
  %v5170 = vadd.f32 %v5121, %v5169
  %v5171 = vpop.f32.mrf.mxu0
  %v5172 = vpop.f32.mrf.mxu0
  %v5173 = vadd.f32 %v5124, %v5172
  %v5174 = vpop.f32.mrf.mxu0
  %5175 = vmatprep.mubr.bf16.mxu0 0
  %5176 = vmatmul.mubr.bf16.gmra.mxu0 %v5035
  %v5177 = vpop.f32.mrf.mxu0
  %v5178 = vadd.f32 %v5129, %v5177
  %v5179 = vpop.f32.mrf.mxu0
  %v5180 = vpop.f32.mrf.mxu0
  %v5181 = vadd.f32 %v5132, %v5180
  %v5182 = vpop.f32.mrf.mxu0
  %5183 = vdwg.mxu0
  %v5184 = vmax.f32 %v5170, 0.0
  %v5185 = vmax.f32 %v5173, 0.0
  %v5186 = vmax.f32 %v5178, 0.0
  %v5187 = vmax.f32 %v5181, 0.0
  %v5188 = vpack.c.bf16 %v5185, %v5184
  %v5189 = vpack.c.bf16 %v5187, %v5186
  %v5190 = vld [vmem:[%s8] sm:$0xff]
  %v5191 = vld [vmem:[%s8 + $0x8] sm:$0xff]
  %v5192 = vld [vmem:[%s8 + $0x10] sm:$0xff]
  %v5193 = vld [vmem:[%s8 + $0x18] sm:$0xff]
  %v5194 = vld [vmem:[%s8 + $0x20] sm:$0xf]
  %v5195 = vld [vmem:[%s8 + $0x24] sm:$0xff]
  %v5196 = vld [vmem:[%s8 + $0x2c] sm:$0xff]
  %v5197 = vld [vmem:[%s8 + $0x34] sm:$0xff]
  %v5198 = vld [vmem:[%s8 + $0x3c] sm:$0xff]
  %v5199 = vld [vmem:[%s8 + $0x44] sm:$0xf]
  %v5200 = vld [vmem:[%s8 + $0x48] sm:$0xff]
  %v5201 = vld [vmem:[%s8 + $0x50] sm:$0xff]
  %v5202 = vld [vmem:[%s8 + $0x58] sm:$0xff]
  %v5203 = vld [vmem:[%s8 + $0x60] sm:$0xff]
  %v5204 = vld [vmem:[%s8 + $0x68] sm:$0xf]
  %v5205 = vld [vmem:[%s8 + $0x6c] sm:$0xff]
  %v5206 = vld [vmem:[%s8 + $0x74] sm:$0xff]
  %v5207 = vld [vmem:[%s8 + $0x7c] sm:$0xff]
  %v5208 = vld [vmem:[%s8 + $0x84] sm:$0xff]
  %v5209 = vld [vmem:[%s8 + $0x8c] sm:$0xf]
  %v5210 = vld [vmem:[%s8 + $0x90] sm:$0xff]
  %v5211 = vld [vmem:[%s8 + $0x98] sm:$0xff]
  %v5212 = vld [vmem:[%s8 + $0xa0] sm:$0xff]
  %v5213 = vld [vmem:[%s8 + $0xa8] sm:$0xff]
  %v5214 = vld [vmem:[%s8 + $0xb0] sm:$0xf]
  %v5215 = vld [vmem:[%s8 + $0xb4] sm:$0xff]
  %v5216 = vld [vmem:[%s8 + $0xbc] sm:$0xff]
  %v5217 = vld [vmem:[%s8 + $0xc4] sm:$0xff]
  %v5218 = vld [vmem:[%s8 + $0xcc] sm:$0xff]
  %v5219 = vld [vmem:[%s8 + $0xd4] sm:$0xf]
  %v5220 = vld [vmem:[%s8 + $0xd8] sm:$0xff]
  %v5221 = vld [vmem:[%s8 + $0xe0] sm:$0xff]
  %v5222 = vld [vmem:[%s8 + $0xe8] sm:$0xff]
  %v5223 = vld [vmem:[%s8 + $0xf0] sm:$0xff]
  %v5224 = vld [vmem:[%s8 + $0xf8] sm:$0xf]
  %v5225 = vld [vmem:[%s8 + $0xfc] sm:$0xff]
  %v5226 = vld [vmem:[%s8 + $0x104] sm:$0xff]
  %v5227 = vld [vmem:[%s8 + $0x10c] sm:$0xff]
  %v5228 = vld [vmem:[%s8 + $0x114] sm:$0xff]
  %v5229 = vld [vmem:[%s8 + $0x11c] sm:$0xf]
  %v5270 = vunpack.c.l.b16 %v5190
  %v5271 = vunpack.c.h.b16 %v5190
  %v5272 = vunpack.c.l.b16 %v5191
  %v5273 = vunpack.c.h.b16 %v5191
  %v5274 = vunpack.c.l.b16 %v5192
  %v5275 = vunpack.c.h.b16 %v5192
  %v5276 = vunpack.c.l.b16 %v5193
  %v5277 = vunpack.c.h.b16 %v5193
  %v5278 = vunpack.c.l.b16 %v5194
  %v5279 = vunpack.c.l.b16 %v5195
  %v5280 = vunpack.c.h.b16 %v5195
  %v5281 = vunpack.c.l.b16 %v5196
  %v5282 = vunpack.c.h.b16 %v5196
  %v5283 = vunpack.c.l.b16 %v5197
  %v5284 = vunpack.c.h.b16 %v5197
  %v5285 = vunpack.c.l.b16 %v5198
  %v5286 = vunpack.c.h.b16 %v5198
  %v5287 = vunpack.c.l.b16 %v5199
  %v5288 = vunpack.c.l.b16 %v5200
  %v5289 = vunpack.c.h.b16 %v5200
  %v5290 = vunpack.c.l.b16 %v5201
  %v5291 = vunpack.c.h.b16 %v5201
  %v5292 = vunpack.c.l.b16 %v5202
  %v5293 = vunpack.c.h.b16 %v5202
  %v5294 = vunpack.c.l.b16 %v5203
  %v5295 = vunpack.c.h.b16 %v5203
  %v5296 = vunpack.c.l.b16 %v5204
  %v5297 = vunpack.c.l.b16 %v5205
  %v5298 = vunpack.c.h.b16 %v5205
  %v5299 = vunpack.c.l.b16 %v5206
  %v5300 = vunpack.c.h.b16 %v5206
  %v5301 = vunpack.c.l.b16 %v5207
  %v5302 = vunpack.c.h.b16 %v5207
  %v5303 = vunpack.c.l.b16 %v5208
  %v5304 = vunpack.c.h.b16 %v5208
  %v5305 = vunpack.c.l.b16 %v5209
  %v5306 = vunpack.c.l.b16 %v5210
  %v5307 = vunpack.c.h.b16 %v5210
  %v5308 = vunpack.c.l.b16 %v5211
  %v5309 = vunpack.c.h.b16 %v5211
  %v5310 = vunpack.c.l.b16 %v5212
  %v5311 = vunpack.c.h.b16 %v5212
  %v5312 = vunpack.c.l.b16 %v5213
  %v5313 = vunpack.c.h.b16 %v5213
  %v5314 = vunpack.c.l.b16 %v5214
  %v5315 = vunpack.c.l.b16 %v5215
  %v5316 = vunpack.c.h.b16 %v5215
  %v5317 = vunpack.c.l.b16 %v5216
  %v5318 = vunpack.c.h.b16 %v5216
  %v5319 = vunpack.c.l.b16 %v5217
  %v5320 = vunpack.c.h.b16 %v5217
  %v5321 = vunpack.c.l.b16 %v5218
  %v5322 = vunpack.c.h.b16 %v5218
  %v5323 = vunpack.c.l.b16 %v5219
  %v5324 = vunpack.c.l.b16 %v5220
  %v5325 = vunpack.c.h.b16 %v5220
  %v5326 = vunpack.c.l.b16 %v5221
  %v5327 = vunpack.c.h.b16 %v5221
  %v5328 = vunpack.c.l.b16 %v5222
  %v5329 = vunpack.c.h.b16 %v5222
  %v5330 = vunpack.c.l.b16 %v5223
  %v5331 = vunpack.c.h.b16 %v5223
  %v5332 = vunpack.c.l.b16 %v5224
  %v5333 = vunpack.c.l.b16 %v5225
  %v5334 = vunpack.c.h.b16 %v5225
  %v5335 = vunpack.c.l.b16 %v5226
  %v5336 = vunpack.c.h.b16 %v5226
  %v5337 = vunpack.c.l.b16 %v5227
  %v5338 = vunpack.c.h.b16 %v5227
  %v5339 = vunpack.c.l.b16 %v5228
  %v5340 = vunpack.c.h.b16 %v5228
  %v5341 = vunpack.c.l.b16 %v5229
  %v5342 = vpack.c.b16 %v5279, %v5270
  %v5343 = vpack.c.b16 %v5280, %v5271
  %v5344 = vpack.c.b16 %v5281, %v5272
  %v5345 = vpack.c.b16 %v5282, %v5273
  %v5346 = vpack.c.b16 %v5283, %v5274
  %v5347 = vpack.c.b16 %v5284, %v5275
  %v5348 = vpack.c.b16 %v5285, %v5276
  %v5349 = vpack.c.b16 %v5286, %v5277
  %v5350 = vpack.c.b16 %v5287, %v5278
  %v5351 = vpack.c.b16 %v5297, %v5288
  %v5352 = vpack.c.b16 %v5298, %v5289
  %v5353 = vpack.c.b16 %v5299, %v5290
  %v5354 = vpack.c.b16 %v5300, %v5291
  %v5355 = vpack.c.b16 %v5301, %v5292
  %v5356 = vpack.c.b16 %v5302, %v5293
  %v5357 = vpack.c.b16 %v5303, %v5294
  %v5358 = vpack.c.b16 %v5304, %v5295
  %v5359 = vpack.c.b16 %v5305, %v5296
  %v5360 = vpack.c.b16 %v5315, %v5306
  %v5361 = vpack.c.b16 %v5316, %v5307
  %v5362 = vpack.c.b16 %v5317, %v5308
  %v5363 = vpack.c.b16 %v5318, %v5309
  %v5364 = vpack.c.b16 %v5319, %v5310
  %v5365 = vpack.c.b16 %v5320, %v5311
  %v5366 = vpack.c.b16 %v5321, %v5312
  %v5367 = vpack.c.b16 %v5322, %v5313
  %v5368 = vpack.c.b16 %v5323, %v5314
  %v5369 = vpack.c.b16 %v5333, %v5324
  %v5370 = vpack.c.b16 %v5334, %v5325
  %v5371 = vpack.c.b16 %v5335, %v5326
  %v5372 = vpack.c.b16 %v5336, %v5327
  %v5373 = vpack.c.b16 %v5337, %v5328
  %v5374 = vpack.c.b16 %v5338, %v5329
  %v5375 = vpack.c.b16 %v5339, %v5330
  %v5376 = vpack.c.b16 %v5340, %v5331
  %v5377 = vpack.c.b16 %v5341, %v5332
  %v5415 = vsel %vm322, %v5188, 0
  %v5418 = vsel %vm322, %v5189, 0
  %5420 = vmatprep.subr.bf16.mxu0 0
  %5421 = vmatpush1.bf16.msra.mxu0 0
  %5422 = vmatprep.subr.bf16.mxu0 0
  %5423 = vmatpush1.bf16.msra.mxu0 0
  %5424 = vmatprep.subr.bf16.mxu0 0
  %5425 = vmatpush1.bf16.msra.mxu0 0
  %5426 = vmatprep.subr.bf16.mxu0 0
  %5427 = vmatpush1.bf16.msra.mxu0 0
  %5428 = vmatprep.subr.bf16.mxu0 %v5370
  %5429 = vmatpush1.bf16.msra.mxu0 %v5369
  %5430 = vmatprep.subr.bf16.mxu0 %v5361
  %5431 = vmatpush1.bf16.msra.mxu0 %v5360
  %5432 = vmatprep.subr.bf16.mxu0 %v5352
  %5433 = vmatpush1.bf16.msra.mxu0 %v5351
  %5434 = vmatprep.subr.bf16.mxu0 %v5343
  %5435 = vmatpush1.bf16.msra.mxu0 %v5342
  %5436 = vmatprep.subr.bf16.mxu0 0
  %5437 = vmatpush2.bf16.msra.mxu0 0
  %5438 = vmatprep.subr.bf16.mxu0 0
  %5439 = vmatpush2.bf16.msra.mxu0 0
  %5440 = vmatprep.subr.bf16.mxu0 0
  %5441 = vmatpush2.bf16.msra.mxu0 0
  %5442 = vmatprep.subr.bf16.mxu0 0
  %5443 = vmatpush2.bf16.msra.mxu0 0
  %5444 = vmatprep.subr.bf16.mxu0 0
  %5445 = vmatpush2.bf16.msra.mxu0 0
  %5446 = vmatprep.subr.bf16.mxu0 0
  %5447 = vmatpush2.bf16.msra.mxu0 0
  %5448 = vmatprep.subr.bf16.mxu0 0
  %5449 = vmatpush2.bf16.msra.mxu0 0
  %5450 = vmatprep.subr.bf16.mxu0 0
  %5451 = vmatpush2.bf16.msra.mxu0 0
  %5452 = vmatprep.mubr.bf16.mxu0 0
  %5453 = vmatmul.mubr.bf16.gmra.mxu0 %v5415
  %v5454 = vpop.f32.mrf.mxu0
  %v5455 = vadd.f32 0.0, %v5454
  %v5456 = vpop.f32.mrf.mxu0
  %v5457 = vadd.f32 0.0, %v5456
  %v5458 = vpop.f32.mrf.mxu0
  %v5459 = vadd.f32 0.0, %v5458
  %v5460 = vpop.f32.mrf.mxu0
  %v5461 = vadd.f32 0.0, %v5460
  %5462 = vmatprep.mubr.bf16.mxu0 0
  %5463 = vmatmul.mubr.bf16.gmra.mxu0 %v5418
  %v5464 = vpop.f32.mrf.mxu0
  %v5465 = vadd.f32 0.0, %v5464
  %v5466 = vpop.f32.mrf.mxu0
  %v5467 = vadd.f32 0.0, %v5466
  %v5468 = vpop.f32.mrf.mxu0
  %v5469 = vadd.f32 0.0, %v5468
  %v5470 = vpop.f32.mrf.mxu0
  %v5471 = vadd.f32 0.0, %v5470
  %5472 = vdwg.mxu0
  %5473 = vmatprep.subr.bf16.mxu0 0
  %5474 = vmatpush1.bf16.msra.mxu0 0
  %5475 = vmatprep.subr.bf16.mxu0 0
  %5476 = vmatpush1.bf16.msra.mxu0 0
  %5477 = vmatprep.subr.bf16.mxu0 0
  %5478 = vmatpush1.bf16.msra.mxu0 0
  %5479 = vmatprep.subr.bf16.mxu0 0
  %5480 = vmatpush1.bf16.msra.mxu0 0
  %5481 = vmatprep.subr.bf16.mxu0 %v5372
  %5482 = vmatpush1.bf16.msra.mxu0 %v5371
  %5483 = vmatprep.subr.bf16.mxu0 %v5363
  %5484 = vmatpush1.bf16.msra.mxu0 %v5362
  %5485 = vmatprep.subr.bf16.mxu0 %v5354
  %5486 = vmatpush1.bf16.msra.mxu0 %v5353
  %5487 = vmatprep.subr.bf16.mxu0 %v5345
  %5488 = vmatpush1.bf16.msra.mxu0 %v5344
  %5489 = vmatprep.subr.bf16.mxu0 0
  %5490 = vmatpush2.bf16.msra.mxu0 0
  %5491 = vmatprep.subr.bf16.mxu0 0
  %5492 = vmatpush2.bf16.msra.mxu0 0
  %5493 = vmatprep.subr.bf16.mxu0 0
  %5494 = vmatpush2.bf16.msra.mxu0 0
  %5495 = vmatprep.subr.bf16.mxu0 0
  %5496 = vmatpush2.bf16.msra.mxu0 0
  %5497 = vmatprep.subr.bf16.mxu0 0
  %5498 = vmatpush2.bf16.msra.mxu0 0
  %5499 = vmatprep.subr.bf16.mxu0 0
  %5500 = vmatpush2.bf16.msra.mxu0 0
  %5501 = vmatprep.subr.bf16.mxu0 0
  %5502 = vmatpush2.bf16.msra.mxu0 0
  %5503 = vmatprep.subr.bf16.mxu0 0
  %5504 = vmatpush2.bf16.msra.mxu0 0
  %5505 = vmatprep.mubr.bf16.mxu0 0
  %5506 = vmatmul.mubr.bf16.gmra.mxu0 %v5415
  %v5507 = vpop.f32.mrf.mxu0
  %v5508 = vadd.f32 0.0, %v5507
  %v5509 = vpop.f32.mrf.mxu0
  %v5510 = vadd.f32 0.0, %v5509
  %v5511 = vpop.f32.mrf.mxu0
  %v5512 = vadd.f32 0.0, %v5511
  %v5513 = vpop.f32.mrf.mxu0
  %v5514 = vadd.f32 0.0, %v5513
  %5515 = vmatprep.mubr.bf16.mxu0 0
  %5516 = vmatmul.mubr.bf16.gmra.mxu0 %v5418
  %v5517 = vpop.f32.mrf.mxu0
  %v5518 = vadd.f32 0.0, %v5517
  %v5519 = vpop.f32.mrf.mxu0
  %v5520 = vadd.f32 0.0, %v5519
  %v5521 = vpop.f32.mrf.mxu0
  %v5522 = vadd.f32 0.0, %v5521
  %v5523 = vpop.f32.mrf.mxu0
  %v5524 = vadd.f32 0.0, %v5523
  %5525 = vdwg.mxu0
  %5526 = vmatprep.subr.bf16.mxu0 0
  %5527 = vmatpush1.bf16.msra.mxu0 0
  %5528 = vmatprep.subr.bf16.mxu0 0
  %5529 = vmatpush1.bf16.msra.mxu0 0
  %5530 = vmatprep.subr.bf16.mxu0 0
  %5531 = vmatpush1.bf16.msra.mxu0 0
  %5532 = vmatprep.subr.bf16.mxu0 0
  %5533 = vmatpush1.bf16.msra.mxu0 0
  %5534 = vmatprep.subr.bf16.mxu0 %v5374
  %5535 = vmatpush1.bf16.msra.mxu0 %v5373
  %5536 = vmatprep.subr.bf16.mxu0 %v5365
  %5537 = vmatpush1.bf16.msra.mxu0 %v5364
  %5538 = vmatprep.subr.bf16.mxu0 %v5356
  %5539 = vmatpush1.bf16.msra.mxu0 %v5355
  %5540 = vmatprep.subr.bf16.mxu0 %v5347
  %5541 = vmatpush1.bf16.msra.mxu0 %v5346
  %5542 = vmatprep.subr.bf16.mxu0 0
  %5543 = vmatpush2.bf16.msra.mxu0 0
  %5544 = vmatprep.subr.bf16.mxu0 0
  %5545 = vmatpush2.bf16.msra.mxu0 0
  %5546 = vmatprep.subr.bf16.mxu0 0
  %5547 = vmatpush2.bf16.msra.mxu0 0
  %5548 = vmatprep.subr.bf16.mxu0 0
  %5549 = vmatpush2.bf16.msra.mxu0 0
  %5550 = vmatprep.subr.bf16.mxu0 0
  %5551 = vmatpush2.bf16.msra.mxu0 0
  %5552 = vmatprep.subr.bf16.mxu0 0
  %5553 = vmatpush2.bf16.msra.mxu0 0
  %5554 = vmatprep.subr.bf16.mxu0 0
  %5555 = vmatpush2.bf16.msra.mxu0 0
  %5556 = vmatprep.subr.bf16.mxu0 0
  %5557 = vmatpush2.bf16.msra.mxu0 0
  %5558 = vmatprep.mubr.bf16.mxu0 0
  %5559 = vmatmul.mubr.bf16.gmra.mxu0 %v5415
  %v5560 = vpop.f32.mrf.mxu0
  %v5561 = vadd.f32 0.0, %v5560
  %v5562 = vpop.f32.mrf.mxu0
  %v5563 = vadd.f32 0.0, %v5562
  %v5564 = vpop.f32.mrf.mxu0
  %v5565 = vadd.f32 0.0, %v5564
  %v5566 = vpop.f32.mrf.mxu0
  %v5567 = vadd.f32 0.0, %v5566
  %5568 = vmatprep.mubr.bf16.mxu0 0
  %5569 = vmatmul.mubr.bf16.gmra.mxu0 %v5418
  %v5570 = vpop.f32.mrf.mxu0
  %v5571 = vadd.f32 0.0, %v5570
  %v5572 = vpop.f32.mrf.mxu0
  %v5573 = vadd.f32 0.0, %v5572
  %v5574 = vpop.f32.mrf.mxu0
  %v5575 = vadd.f32 0.0, %v5574
  %v5576 = vpop.f32.mrf.mxu0
  %v5577 = vadd.f32 0.0, %v5576
  %5578 = vdwg.mxu0
  %5579 = vmatprep.subr.bf16.mxu0 0
  %5580 = vmatpush1.bf16.msra.mxu0 0
  %5581 = vmatprep.subr.bf16.mxu0 0
  %5582 = vmatpush1.bf16.msra.mxu0 0
  %5583 = vmatprep.subr.bf16.mxu0 0
  %5584 = vmatpush1.bf16.msra.mxu0 0
  %5585 = vmatprep.subr.bf16.mxu0 0
  %5586 = vmatpush1.bf16.msra.mxu0 0
  %5587 = vmatprep.subr.bf16.mxu0 %v5376
  %5588 = vmatpush1.bf16.msra.mxu0 %v5375
  %5589 = vmatprep.subr.bf16.mxu0 %v5367
  %5590 = vmatpush1.bf16.msra.mxu0 %v5366
  %5591 = vmatprep.subr.bf16.mxu0 %v5358
  %5592 = vmatpush1.bf16.msra.mxu0 %v5357
  %5593 = vmatprep.subr.bf16.mxu0 %v5349
  %5594 = vmatpush1.bf16.msra.mxu0 %v5348
  %5595 = vmatprep.subr.bf16.mxu0 0
  %5596 = vmatpush2.bf16.msra.mxu0 0
  %5597 = vmatprep.subr.bf16.mxu0 0
  %5598 = vmatpush2.bf16.msra.mxu0 0
  %5599 = vmatprep.subr.bf16.mxu0 0
  %5600 = vmatpush2.bf16.msra.mxu0 0
  %5601 = vmatprep.subr.bf16.mxu0 0
  %5602 = vmatpush2.bf16.msra.mxu0 0
  %5603 = vmatprep.subr.bf16.mxu0 0
  %5604 = vmatpush2.bf16.msra.mxu0 0
  %5605 = vmatprep.subr.bf16.mxu0 0
  %5606 = vmatpush2.bf16.msra.mxu0 0
  %5607 = vmatprep.subr.bf16.mxu0 0
  %5608 = vmatpush2.bf16.msra.mxu0 0
  %5609 = vmatprep.subr.bf16.mxu0 0
  %5610 = vmatpush2.bf16.msra.mxu0 0
  %5611 = vmatprep.mubr.bf16.mxu0 0
  %5612 = vmatmul.mubr.bf16.gmra.mxu0 %v5415
  %v5613 = vpop.f32.mrf.mxu0
  %v5614 = vadd.f32 0.0, %v5613
  %v5615 = vpop.f32.mrf.mxu0
  %v5616 = vadd.f32 0.0, %v5615
  %v5617 = vpop.f32.mrf.mxu0
  %v5618 = vadd.f32 0.0, %v5617
  %v5619 = vpop.f32.mrf.mxu0
  %v5620 = vadd.f32 0.0, %v5619
  %5621 = vmatprep.mubr.bf16.mxu0 0
  %5622 = vmatmul.mubr.bf16.gmra.mxu0 %v5418
  %v5623 = vpop.f32.mrf.mxu0
  %v5624 = vadd.f32 0.0, %v5623
  %v5625 = vpop.f32.mrf.mxu0
  %v5626 = vadd.f32 0.0, %v5625
  %v5627 = vpop.f32.mrf.mxu0
  %v5628 = vadd.f32 0.0, %v5627
  %v5629 = vpop.f32.mrf.mxu0
  %v5630 = vadd.f32 0.0, %v5629
  %5631 = vdwg.mxu0
  %5632 = vmatprep.subr.bf16.mxu0 0
  %5633 = vmatpush1.bf16.msra.mxu0 0
  %5634 = vmatprep.subr.bf16.mxu0 0
  %5635 = vmatpush1.bf16.msra.mxu0 0
  %5636 = vmatprep.subr.bf16.mxu0 0
  %5637 = vmatpush1.bf16.msra.mxu0 0
  %5638 = vmatprep.subr.bf16.mxu0 0
  %5639 = vmatpush1.bf16.msra.mxu0 0
  %5640 = vmatprep.subr.bf16.mxu0 0
  %5641 = vmatpush1.bf16.msra.mxu0 %v5377
  %5642 = vmatprep.subr.bf16.mxu0 0
  %5643 = vmatpush1.bf16.msra.mxu0 %v5368
  %5644 = vmatprep.subr.bf16.mxu0 0
  %5645 = vmatpush1.bf16.msra.mxu0 %v5359
  %5646 = vmatprep.subr.bf16.mxu0 0
  %5647 = vmatpush1.bf16.msra.mxu0 %v5350
  %5648 = vmatprep.subr.bf16.mxu0 0
  %5649 = vmatpush2.bf16.msra.mxu0 0
  %5650 = vmatprep.subr.bf16.mxu0 0
  %5651 = vmatpush2.bf16.msra.mxu0 0
  %5652 = vmatprep.subr.bf16.mxu0 0
  %5653 = vmatpush2.bf16.msra.mxu0 0
  %5654 = vmatprep.subr.bf16.mxu0 0
  %5655 = vmatpush2.bf16.msra.mxu0 0
  %5656 = vmatprep.subr.bf16.mxu0 0
  %5657 = vmatpush2.bf16.msra.mxu0 0
  %5658 = vmatprep.subr.bf16.mxu0 0
  %5659 = vmatpush2.bf16.msra.mxu0 0
  %5660 = vmatprep.subr.bf16.mxu0 0
  %5661 = vmatpush2.bf16.msra.mxu0 0
  %5662 = vmatprep.subr.bf16.mxu0 0
  %5663 = vmatpush2.bf16.msra.mxu0 0
  %5664 = vmatprep.mubr.bf16.mxu0 0
  %5665 = vmatmul.mubr.bf16.gmra.mxu0 %v5415
  %v5666 = vpop.f32.mrf.mxu0
  %v5667 = vadd.f32 0.0, %v5666
  %v5668 = vpop.f32.mrf.mxu0
  %v5669 = vpop.f32.mrf.mxu0
  %v5670 = vadd.f32 0.0, %v5669
  %v5671 = vpop.f32.mrf.mxu0
  %5672 = vmatprep.mubr.bf16.mxu0 0
  %5673 = vmatmul.mubr.bf16.gmra.mxu0 %v5418
  %v5674 = vpop.f32.mrf.mxu0
  %v5675 = vadd.f32 0.0, %v5674
  %v5676 = vpop.f32.mrf.mxu0
  %v5677 = vpop.f32.mrf.mxu0
  %v5678 = vadd.f32 0.0, %v5677
  %v5679 = vpop.f32.mrf.mxu0
  %5680 = vdwg.mxu0
  %v5681 = vrot.slane %v5457, 1
  %v5682 = vrot.slane %v5461, 1
  %v5683 = vrot.slane %v5467, 1
  %v5684 = vrot.slane %v5471, 1
  %v5685 = vsel %vm219, %v5683, %v5684
  %v5686 = vsel %vm219, %v5682, %v5683
  %v5687 = vsel %vm219, %v5681, %v5682
  %v5688 = vsel %vm219, %v5684, %v5681
  %v5689 = vadd.f32 %v5455, %v5687
  %v5690 = vadd.f32 %v5459, %v5686
  %v5691 = vadd.f32 %v5465, %v5685
  %v5692 = vadd.f32 %v5469, %v5688
  %v5693 = vrot.slane %v5508, 2
  %v5694 = vrot.slane %v5512, 2
  %v5695 = vrot.slane %v5518, 2
  %v5696 = vrot.slane %v5522, 2
  %v5697 = vsel %vm232, %v5695, %v5696
  %v5698 = vsel %vm232, %v5694, %v5695
  %v5699 = vsel %vm232, %v5693, %v5694
  %v5700 = vsel %vm232, %v5696, %v5693
  %v5701 = vadd.f32 %v5689, %v5699
  %v5702 = vadd.f32 %v5690, %v5698
  %v5703 = vadd.f32 %v5691, %v5697
  %v5704 = vadd.f32 %v5692, %v5700
  %v5705 = vrot.slane %v5510, 3
  %v5706 = vrot.slane %v5514, 3
  %v5707 = vrot.slane %v5520, 3
  %v5708 = vrot.slane %v5524, 3
  %v5709 = vsel %vm245, %v5707, %v5708
  %v5710 = vsel %vm245, %v5706, %v5707
  %v5711 = vsel %vm245, %v5705, %v5706
  %v5712 = vsel %vm245, %v5708, %v5705
  %v5713 = vadd.f32 %v5701, %v5711
  %v5714 = vadd.f32 %v5702, %v5710
  %v5715 = vadd.f32 %v5703, %v5709
  %v5716 = vadd.f32 %v5704, %v5712
  %v5717 = vrot.slane %v5561, 4
  %v5718 = vrot.slane %v5565, 4
  %v5719 = vrot.slane %v5571, 4
  %v5720 = vrot.slane %v5575, 4
  %v5721 = vsel %vm163, %v5719, %v5720
  %v5722 = vsel %vm163, %v5718, %v5719
  %v5723 = vsel %vm163, %v5717, %v5718
  %v5724 = vsel %vm163, %v5720, %v5717
  %v5725 = vadd.f32 %v5713, %v5723
  %v5726 = vadd.f32 %v5714, %v5722
  %v5727 = vadd.f32 %v5715, %v5721
  %v5728 = vadd.f32 %v5716, %v5724
  %v5729 = vrot.slane %v5563, 5
  %v5730 = vrot.slane %v5567, 5
  %v5731 = vrot.slane %v5573, 5
  %v5732 = vrot.slane %v5577, 5
  %v5733 = vsel %vm176, %v5731, %v5732
  %v5734 = vsel %vm176, %v5730, %v5731
  %v5735 = vsel %vm176, %v5729, %v5730
  %v5736 = vsel %vm176, %v5732, %v5729
  %v5737 = vadd.f32 %v5725, %v5735
  %v5738 = vadd.f32 %v5726, %v5734
  %v5739 = vadd.f32 %v5727, %v5733
  %v5740 = vadd.f32 %v5728, %v5736
  %v5741 = vrot.slane %v5614, 6
  %v5742 = vrot.slane %v5618, 6
  %v5743 = vrot.slane %v5624, 6
  %v5744 = vrot.slane %v5628, 6
  %v5745 = vsel %vm189, %v5743, %v5744
  %v5746 = vsel %vm189, %v5742, %v5743
  %v5747 = vsel %vm189, %v5741, %v5742
  %v5748 = vsel %vm189, %v5744, %v5741
  %v5749 = vadd.f32 %v5737, %v5747
  %v5750 = vadd.f32 %v5738, %v5746
  %v5751 = vadd.f32 %v5739, %v5745
  %v5752 = vadd.f32 %v5740, %v5748
  %v5753 = vrot.slane %v5616, 7
  %v5754 = vrot.slane %v5620, 7
  %v5755 = vrot.slane %v5626, 7
  %v5756 = vrot.slane %v5630, 7
  %v5757 = vsel %vm202, %v5755, %v5756
  %v5758 = vsel %vm202, %v5754, %v5755
  %v5759 = vsel %vm202, %v5753, %v5754
  %v5760 = vsel %vm202, %v5756, %v5753
  %v5761 = vadd.f32 %v5749, %v5759
  %v5762 = vadd.f32 %v5750, %v5758
  %v5763 = vadd.f32 %v5751, %v5757
  %v5764 = vadd.f32 %v5752, %v5760
  %v5765 = vadd.f32 %v5761, %v5670
  %v5766 = vadd.f32 %v5762, %v5675
  %v5767 = vadd.f32 %v5763, %v5678
  %v5768 = vadd.f32 %v5764, %v5667
  %v5769 = vld [vmem:[%s9] sm:$0x1]
  %v5771 = vlaneseq
  %v5772 = vshrl.u32 %v5771, 7
  %v5773 = vsub.s32 0, %v5772
  %v5774 = vrot.slane %v5769, %v5773
  %v5776 = vadd.f32 %v5765, %v5774
  %v5777 = vadd.f32 %v5766, %v5774
  %v5778 = vadd.f32 %v5767, %v5774
  %v5779 = vadd.f32 %v5768, %v5774
  %v5780 = vlaneseq
  %v5781 = vand.u32 %v5780, 127
  %vm5782 = vcmp.lt.s32.totalorder %v5781, 9
  %v5783 = vsel %vm5782, %v5776, -1e+30
  %v5784 = vsel %vm5782, %v5777, -1e+30
  %v5785 = vsel %vm5782, %v5778, -1e+30
  %v5786 = vsel %vm5782, %v5779, -1e+30
  %5787 = vmax.xlane.f32.xlu0 %v5783
  %v5788 = vpop.xlane.xlu0 %5787
  %5789 = vmax.xlane.f32.xlu0 %v5784
  %v5790 = vpop.xlane.xlu0 %5789
  %5791 = vmax.xlane.f32.xlu0 %v5785
  %v5792 = vpop.xlane.xlu0 %5791
  %5793 = vmax.xlane.f32.xlu0 %v5786
  %v5794 = vpop.xlane.xlu0 %5793
  %v5795 = vsub.f32 %v5783, %v5788
  %v5796 = vsub.f32 %v5784, %v5790
  %v5797 = vsub.f32 %v5785, %v5792
  %v5798 = vsub.f32 %v5786, %v5794
  %v5799 = vmul.f32 %v5795, 1.442695
  %v5800 = vpow.pop %v5799
  %v5801 = vmul.f32 %v5796, 1.442695
  %v5802 = vpow.pop %v5801
  %v5803 = vmul.f32 %v5797, 1.442695
  %v5804 = vpow.pop %v5803
  %v5805 = vmul.f32 %v5798, 1.442695
  %v5806 = vpow.pop %v5805
  %5807 = vadd.xlane.f32.xlu0 %v5800
  %v5808 = vpop.xlane.xlu0 %5807
  %5809 = vadd.xlane.f32.xlu0 %v5802
  %v5810 = vpop.xlane.xlu0 %5809
  %5811 = vadd.xlane.f32.xlu0 %v5804
  %v5812 = vpop.xlane.xlu0 %5811
  %5813 = vadd.xlane.f32.xlu0 %v5806
  %v5814 = vpop.xlane.xlu0 %5813
  %v5815 = vrcp.pop %v5808
  %v5816 = vrcp.pop %v5810
  %v5817 = vrcp.pop %v5812
  %v5818 = vrcp.pop %v5814
  %v5819 = vmul.f32 %v5800, %v5815
  %v5820 = vmul.f32 %v5802, %v5816
  %v5821 = vmul.f32 %v5804, %v5817
  %v5822 = vmul.f32 %v5806, %v5818
  %v5823 = vtanh.pop %v5776
  %v5824 = vtanh.pop %v5777
  %v5825 = vtanh.pop %v5778
  %v5826 = vtanh.pop %v5779
  %vm5827 = vcmp.eq.s32.totalorder %v5781, 9
  %v5828 = vsel %vm5827, %v5823, %v5819
  %v5829 = vsel %vm5827, %v5824, %v5820
  %v5830 = vsel %vm5827, %v5825, %v5821
  %v5831 = vsel %vm5827, %v5826, %v5822
  %5832 = vst [vmem:[%s10] sm:$0xff] %v5828
  %5833 = vst [vmem:[%s10 + $0x8] sm:$0xff] %v5829
  %5834 = vst [vmem:[%s10 + $0x10] sm:$0xff] %v5830
  %5835 = vst [vmem:[%s10 + $0x18] sm:$0xff] %v5831
  // Predicated region
  $region42: #{qnetwork_forward.1} parent=0 // pred_check
    _
  $region43: #{qnetwork_forward.1} parent=0 // pred_check_branch
    %5837 = sbr.rel (0) target = $region45
  $region44: #{qnetwork_forward.1} parent=0 // pred_region
    _
  $region45: #{qnetwork_forward.1} parent=0 // pred_fallthru
    _
  // Predicated region
  $region46: #{qnetwork_forward.1} parent=0 // pred_check
    _
  $region47: #{qnetwork_forward.1} parent=0 // pred_check_branch
    %5839 = sbr.rel (0) target = $region49
  $region48: #{qnetwork_forward.1} parent=0 // pred_region
    _
  $region49: #{qnetwork_forward.1} parent=0 // pred_fallthru
    _

</llo_original>
